<compile_context>
chip_gen: v6e
topology: v6e:2x2x1
jax: 0.10.0
libtpu: 0.0.40
codegen_flags: <defaults>
</compile_context>

<pallas_src>
import jax
import jax.numpy as jnp
from jax.experimental import pallas as pl
from jax.experimental.pallas import tpu as pltpu


# ---------------------------------------------------------------------------
# Kernel 1: fused 1x1 conv + folded BN + SiLU (tiled matmul over pixels)
# ---------------------------------------------------------------------------

def _conv1x1_bn_silu_kernel(x_ref, w_ref, scale_ref, bias_ref, o_ref):
    """x_ref: (TM, Cin), w_ref: (Cin, Cout), scale/bias: (1, Cout), o: (TM, Cout)."""
    y = jnp.dot(x_ref[...], w_ref[...], preferred_element_type=jnp.float32)
    y = y * scale_ref[...] + bias_ref[...]
    o_ref[...] = (y * jax.nn.sigmoid(y)).astype(o_ref.dtype)      # SiLU


def conv1x1_bn_silu(x_nhwc, w, scale, bias, block_m=256):
    """x_nhwc: (N,H,W,Cin) -> (N,H,W,Cout). Tiled over M = N*H*W."""
    N, H, W, Cin = x_nhwc.shape
    Cout = w.shape[1]
    M = N * H * W
    tm = min(block_m, M)
    num_m = (M + tm - 1) // tm
    Mp = num_m * tm

    x2d = x_nhwc.reshape(M, Cin)
    if Mp != M:                                   # pad rows to a whole tile
        x2d = jnp.pad(x2d, ((0, Mp - M), (0, 0)))

    out2d = pl.pallas_call(
        _conv1x1_bn_silu_kernel,
        out_shape=jax.ShapeDtypeStruct((Mp, Cout), x_nhwc.dtype),
        grid=(num_m,),
        in_specs=[
            pl.BlockSpec((tm, Cin), lambda i: (i, 0)),     # pixel tile
            pl.BlockSpec((Cin, Cout), lambda i: (0, 0)),   # weight: resident
            pl.BlockSpec((1, Cout), lambda i: (0, 0)),     # folded-BN scale
            pl.BlockSpec((1, Cout), lambda i: (0, 0)),     # folded-BN bias
        ],
        out_specs=pl.BlockSpec((tm, Cout), lambda i: (i, 0)),
        compiler_params=pltpu.CompilerParams(
            dimension_semantics=("parallel",)),
    )(x2d, w, scale, bias)

    if Mp != M:
        out2d = out2d[:M]
    return out2d.reshape(N, H, W, Cout)


# ---------------------------------------------------------------------------
# Kernel 2: fused 3x3 'same' conv + folded BN + SiLU (+ optional fused residual)
# ---------------------------------------------------------------------------

def _make_conv3x3_kernel(H, W, Cin, Cout, add_input_residual):
    """3x3 stride-1 pad-1 conv on the flattened (H*W, C) view of one image.

    The conv is 9 shifted matmuls: out[m] += xpad[m + (dh-1)*W + (dw-1)] @ W[dh,dw],
    with the vertical halo supplied by a zero-padded VMEM scratch and the
    horizontal (left/right image border) wrap removed by a column mask.
    """
    M = H * W
    P = W + 1                                   # max |row shift| in flat coords

    def kernel(y_ref, w_ref, scale_ref, bias_ref, o_ref, pad_ref):
        # Zero halo strips + copy the image into the padded VMEM scratch.
        pad_ref[0:P, :] = jnp.zeros((P, Cin), dtype=pad_ref.dtype)
        pad_ref[P + M:, :] = jnp.zeros((P, Cin), dtype=pad_ref.dtype)
        y = y_ref[0]                            # (M, Cin)
        pad_ref[P:P + M, :] = y

        # Hoisted column index of each output pixel (for border masking).
        col = jax.lax.broadcasted_iota(jnp.int32, (M, 1), 0) % W

        acc = jnp.zeros((M, Cout), jnp.float32)
        for dh in range(3):
            for dw in range(3):
                off = (dh - 1) * W + (dw - 1)
                a = pad_ref[P + off:P + off + M, :]
                if dw == 0:                     # left neighbour invalid at w==0
                    a = jnp.where(col != 0, a, 0.0)
                elif dw == 2:                   # right neighbour invalid at w==W-1
                    a = jnp.where(col != W - 1, a, 0.0)
                acc = acc + jnp.dot(a, w_ref[dh * 3 + dw],
                                    preferred_element_type=jnp.float32)

        z = acc * scale_ref[...] + bias_ref[...]
        z = z * jax.nn.sigmoid(z)               # SiLU
        if add_input_residual:                  # fused skip connection (n == 1)
            z = z + y.astype(z.dtype)
        o_ref[0] = z.astype(o_ref.dtype)

    return kernel


def conv3x3_bn_silu(y_nhwc, w9, scale, bias, add_input_residual=False):
    """y_nhwc: (N,H,W,Cin) -> (N,H,W,Cout). w9: (9, Cin, Cout) = [dh*3+dw]."""
    N, H, W, Cin = y_nhwc.shape
    Cout = w9.shape[2]
    if add_input_residual:
        assert Cin == Cout, "fused residual requires Cin == Cout"
    M = H * W
    P = W + 1

    y3 = y_nhwc.reshape(N, M, Cin)
    kernel = _make_conv3x3_kernel(H, W, Cin, Cout, add_input_residual)

    out3 = pl.pallas_call(
        kernel,
        out_shape=jax.ShapeDtypeStruct((N, M, Cout), y_nhwc.dtype),
        grid=(N,),
        in_specs=[
            pl.BlockSpec((1, M, Cin), lambda nb: (nb, 0, 0)),    # one image
            pl.BlockSpec((9, Cin, Cout), lambda nb: (0, 0, 0)),  # weights resident
            pl.BlockSpec((1, Cout), lambda nb: (0, 0)),
            pl.BlockSpec((1, Cout), lambda nb: (0, 0)),
        ],
        out_specs=pl.BlockSpec((1, M, Cout), lambda nb: (nb, 0, 0)),
        scratch_shapes=[pltpu.VMEM((M + 2 * P, Cin), y_nhwc.dtype)],
        compiler_params=pltpu.CompilerParams(
            dimension_semantics=("parallel",)),
    )(y3, w9, scale, bias)

    return out3.reshape(N, H, W, Cout)


# ---------------------------------------------------------------------------
# C1 module: params + forward
# ---------------------------------------------------------------------------

def make_c1_params(key, c1, c2, n=1, dtype=jnp.float32, eps=1e-3):
    """Deterministic synthetic parameters (conv weights + folded BatchNorm)."""
    keys = jax.random.split(key, 1 + n)

    def fold_bn(k, c):
        kg, kb, km, kv = jax.random.split(k, 4)
        gamma = 1.0 + 0.1 * jax.random.normal(kg, (c,))
        beta = 0.1 * jax.random.normal(kb, (c,))
        mean = 0.05 * jax.random.normal(km, (c,))
        var = jnp.abs(jax.random.normal(kv, (c,))) + 0.5
        s = gamma / jnp.sqrt(var + eps)
        b = beta - mean * s
        return s[None, :].astype(dtype), b[None, :].astype(dtype)

    k1w, k1bn = jax.random.split(keys[0])
    w1 = (0.1 * jax.random.normal(k1w, (c1, c2))).astype(dtype)   # (Cin, Cout)
    s1, b1 = fold_bn(k1bn, c2)

    m = []
    for i in range(n):
        kw, kbn = jax.random.split(keys[1 + i])
        w = (0.1 * jax.random.normal(kw, (9, c2, c2))).astype(dtype)
        s, b = fold_bn(kbn, c2)
        m.append(dict(w=w, s=s, b=b))
    return dict(w1=w1, s1=s1, b1=b1, m=m)


def c1_forward(x_nchw, params):
    """C1 forward: NCHW in/out (PyTorch convention), NHWC compute."""
    x = jnp.transpose(x_nchw, (0, 2, 3, 1))                       # NCHW -> NHWC
    y = conv1x1_bn_silu(x, params["w1"], params["s1"], params["b1"])

    blocks = params["m"]
    if len(blocks) == 1:
        # n == 1 (default): the residual input equals the conv input -> fuse it.
        out = conv3x3_bn_silu(y, blocks[0]["w"], blocks[0]["s"], blocks[0]["b"],
                              add_input_residual=True)
    else:
        z = y
        for blk in blocks:
            z = conv3x3_bn_silu(z, blk["w"], blk["s"], blk["b"])
        out = z + y  # TODO(synk): fuse the final residual add into the last conv for n > 1
    return jnp.transpose(out, (0, 3, 1, 2))                       # NHWC -> NCHW


# ---------------------------------------------------------------------------
# Pure-JAX reference (for correctness check)
# ---------------------------------------------------------------------------

def c1_forward_ref(x_nchw, params):
    hp = jax.lax.Precision.HIGHEST
    x = jnp.transpose(x_nchw, (0, 2, 3, 1))
    y = jnp.einsum("nhwc,cd->nhwd", x, params["w1"], precision=hp)
    y = y * params["s1"].reshape(1, 1, 1, -1) + params["b1"].reshape(1, 1, 1, -1)
    y = y * jax.nn.sigmoid(y)
    z = y
    for blk in params["m"]:
        cin, cout = blk["w"].shape[1], blk["w"].shape[2]
        w4 = blk["w"].reshape(3, 3, cin, cout)                    # HWIO
        z = jax.lax.conv_general_dilated(
            z, w4, (1, 1), "SAME",
            dimension_numbers=("NHWC", "HWIO", "NHWC"), precision=hp)
        z = z * blk["s"].reshape(1, 1, 1, -1) + blk["b"].reshape(1, 1, 1, -1)
        z = z * jax.nn.sigmoid(z)
    out = z + y
    return jnp.transpose(out, (0, 3, 1, 2))


# ---------------------------------------------------------------------------
# Demo
# ---------------------------------------------------------------------------

if __name__ == "__main__":
    key = jax.random.PRNGKey(0)
    kx, kp = jax.random.split(key)

    N, C1_IN, H, W = 2, 4, 16, 16
    C2_OUT = 8
    x = jax.random.normal(kx, (N, C1_IN, H, W), dtype=jnp.float32)
    params = make_c1_params(kp, C1_IN, C2_OUT, n=1)

    out = jax.block_until_ready(jax.jit(c1_forward)(x, params))
    assert out.shape == (N, C2_OUT, H, W), out.shape
    assert bool(jnp.all(jnp.isfinite(out)))

    ref = jax.block_until_ready(jax.jit(c1_forward_ref)(x, params))
    max_err = float(jnp.max(jnp.abs(out - ref)))
    assert max_err < 2e-2, f"max abs err vs reference: {max_err}"

    print("KERNEL_OK")
</pallas_src>

<mosaic_0001>
module attributes {stable_mosaic.version = 11 : i64} {
  func.func @_conv1x1_bn_silu_kernel(%arg0: i32, %arg1: memref<256x4xf32, #tpu.memory_space<vmem>>, %arg2: memref<4x8xf32, #tpu.memory_space<vmem>>, %arg3: memref<1x8xf32, #tpu.memory_space<vmem>>, %arg4: memref<1x8xf32, #tpu.memory_space<vmem>>, %arg5: memref<256x8xf32, #tpu.memory_space<vmem>>) attributes {dimension_semantics = [#tpu.dimension_semantics<parallel>], iteration_bounds = array<i64: 2>, scalar_prefetch = 0 : i64, scratch_operands = 0 : i64, tpu.core_type = #tpu.core_type<tc>, window_params = [{transform_indices = @transform_0, window_bounds = array<i64: 256, 4>}, {pipeline_mode = #tpu.pipeline_mode<synchronous>, transform_indices = @transform_1, window_bounds = array<i64: 4, 8>}, {pipeline_mode = #tpu.pipeline_mode<synchronous>, transform_indices = @transform_2, window_bounds = array<i64: 1, 8>}, {pipeline_mode = #tpu.pipeline_mode<synchronous>, transform_indices = @transform_3, window_bounds = array<i64: 1, 8>}, {transform_indices = @transform_4, window_bounds = array<i64: 256, 8>}]} {
    %c0 = arith.constant 0 : index
    %c0_0 = arith.constant 0 : index
    %0 = vector.load %arg1[%c0, %c0_0] : memref<256x4xf32, #tpu.memory_space<vmem>>, vector<256x4xf32>
    %c0_1 = arith.constant 0 : index
    %c0_2 = arith.constant 0 : index
    %1 = vector.load %arg2[%c0_1, %c0_2] : memref<4x8xf32, #tpu.memory_space<vmem>>, vector<4x8xf32>
    %cst = arith.constant dense<0.000000e+00> : vector<256x8xf32>
    %2 = tpu.matmul %0, %1, %cst {dimension_numbers = #tpu.dot_dimension_numbers<[1], [0], [0], [1], [0, 0, 1, 1], [], []>} : vector<256x4xf32>, vector<4x8xf32>, vector<256x8xf32> -> vector<256x8xf32>
    %c0_3 = arith.constant 0 : index
    %c0_4 = arith.constant 0 : index
    %3 = vector.load %arg3[%c0_3, %c0_4] : memref<1x8xf32, #tpu.memory_space<vmem>>, vector<1x8xf32>
    %4 = vector.broadcast %3 : vector<1x8xf32> to vector<256x8xf32>
    %5 = arith.mulf %2, %4 : vector<256x8xf32>
    %c0_5 = arith.constant 0 : index
    %c0_6 = arith.constant 0 : index
    %6 = vector.load %arg4[%c0_5, %c0_6] : memref<1x8xf32, #tpu.memory_space<vmem>>, vector<1x8xf32>
    %7 = vector.broadcast %6 : vector<1x8xf32> to vector<256x8xf32>
    %8 = arith.addf %5, %7 : vector<256x8xf32>
    %9 = arith.negf %8 : vector<256x8xf32>
    %10 = math.exp %9 : vector<256x8xf32>
    %cst_7 = arith.constant 1.000000e+00 : f32
    %11 = vector.broadcast %cst_7 : f32 to vector<256x8xf32>
    %12 = arith.addf %11, %10 : vector<256x8xf32>
    %13 = arith.divf %11, %12 : vector<256x8xf32>
    %14 = arith.mulf %8, %13 : vector<256x8xf32>
    %c0_8 = arith.constant 0 : index
    %c0_9 = arith.constant 0 : index
    %15 = vector.load %arg5[%c0_8, %c0_9] : memref<256x8xf32, #tpu.memory_space<vmem>>, vector<256x8xf32>
    tpu.vector_store %arg5[%c0_8, %c0_9], %14 {strides = array<i32>} : memref<256x8xf32, #tpu.memory_space<vmem>>, vector<256x8xf32>,
    return
  }
  func.func @transform_0(%arg0: i32) -> (i32, i32) {
    %c0_i32 = arith.constant 0 : i32
    %c0_i32_0 = arith.constant 0 : i32
    return %arg0, %c0_i32 : i32, i32
  }
  func.func @transform_1(%arg0: i32) -> (i32, i32) {
    %c0_i32 = arith.constant 0 : i32
    %c0_i32_0 = arith.constant 0 : i32
    %c0_i32_1 = arith.constant 0 : i32
    return %c0_i32, %c0_i32_0 : i32, i32
  }
  func.func @transform_2(%arg0: i32) -> (i32, i32) {
    %c0_i32 = arith.constant 0 : i32
    %c0_i32_0 = arith.constant 0 : i32
    %c0_i32_1 = arith.constant 0 : i32
    return %c0_i32, %c0_i32_0 : i32, i32
  }
  func.func @transform_3(%arg0: i32) -> (i32, i32) {
    %c0_i32 = arith.constant 0 : i32
    %c0_i32_0 = arith.constant 0 : i32
    %c0_i32_1 = arith.constant 0 : i32
    return %c0_i32, %c0_i32_0 : i32, i32
  }
  func.func @transform_4(%arg0: i32) -> (i32, i32) {
    %c0_i32 = arith.constant 0 : i32
    %c0_i32_0 = arith.constant 0 : i32
    return %arg0, %c0_i32 : i32, i32
  }
}

module attributes {stable_mosaic.version = 11 : i64} {
  func.func @kernel(%arg0: i32, %arg1: memref<1x256x8xf32, #tpu.memory_space<vmem>>, %arg2: memref<9x8x8xf32, #tpu.memory_space<vmem>>, %arg3: memref<1x8xf32, #tpu.memory_space<vmem>>, %arg4: memref<1x8xf32, #tpu.memory_space<vmem>>, %arg5: memref<1x256x8xf32, #tpu.memory_space<vmem>>, %arg6: memref<290x8xf32, #tpu.memory_space<vmem>>) attributes {dimension_semantics = [#tpu.dimension_semantics<parallel>], iteration_bounds = array<i64: 2>, scalar_prefetch = 0 : i64, scratch_operands = 1 : i64, tpu.core_type = #tpu.core_type<tc>, window_params = [{transform_indices = @transform_0, window_bounds = array<i64: 1, 256, 8>}, {pipeline_mode = #tpu.pipeline_mode<synchronous>, transform_indices = @transform_1, window_bounds = array<i64: 9, 8, 8>}, {pipeline_mode = #tpu.pipeline_mode<synchronous>, transform_indices = @transform_2, window_bounds = array<i64: 1, 8>}, {pipeline_mode = #tpu.pipeline_mode<synchronous>, transform_indices = @transform_3, window_bounds = array<i64: 1, 8>}, {transform_indices = @transform_4, window_bounds = array<i64: 1, 256, 8>}]} {
    %cst = arith.constant 0.000000e+00 : f32
    %0 = vector.broadcast %cst : f32 to vector<17x8xf32>
    %c0 = arith.constant 0 : index
    %c0_0 = arith.constant 0 : index
    %1 = vector.load %arg6[%c0, %c0_0] : memref<290x8xf32, #tpu.memory_space<vmem>>, vector<17x8xf32>
    tpu.vector_store %arg6[%c0, %c0_0], %0 {strides = array<i32>} : memref<290x8xf32, #tpu.memory_space<vmem>>, vector<17x8xf32>,
    %cst_1 = arith.constant 0.000000e+00 : f32
    %2 = vector.broadcast %cst_1 : f32 to vector<17x8xf32>
    %c273 = arith.constant 273 : index
    %c0_2 = arith.constant 0 : index
    %3 = vector.load %arg6[%c273, %c0_2] : memref<290x8xf32, #tpu.memory_space<vmem>>, vector<17x8xf32>
    tpu.vector_store %arg6[%c273, %c0_2], %2 {strides = array<i32>} : memref<290x8xf32, #tpu.memory_space<vmem>>, vector<17x8xf32>,
    %c0_3 = arith.constant 0 : index
    %c0_4 = arith.constant 0 : index
    %c0_5 = arith.constant 0 : index
    %4 = vector.load %arg1[%c0_3, %c0_4, %c0_5] : memref<1x256x8xf32, #tpu.memory_space<vmem>>, vector<1x256x8xf32>
    %5 = vector.shape_cast %4 : vector<1x256x8xf32> to vector<256x8xf32>
    %c17 = arith.constant 17 : index
    %c0_6 = arith.constant 0 : index
    %6 = vector.load %arg6[%c17, %c0_6] : memref<290x8xf32, #tpu.memory_space<vmem>>, vector<256x8xf32>
    tpu.vector_store %arg6[%c17, %c0_6], %5 {strides = array<i32>} : memref<290x8xf32, #tpu.memory_space<vmem>>, vector<256x8xf32>,
    %7 = tpu.iota {dimensions = array<i32: 0>} : vector<256x1xi32>
    %c16_i32 = arith.constant 16 : i32
    %c0_i32 = arith.constant 0 : i32
    %8 = arith.cmpi eq, %c16_i32, %c0_i32 : i32
    %c1_i32 = arith.constant 1 : i32
    %9 = arith.select %8, %c1_i32, %c16_i32 : i32
    %10 = vector.broadcast %9 : i32 to vector<256x1xi32>
    %11 = arith.remsi %7, %10 : vector<256x1xi32>
    %c0_i32_7 = arith.constant 0 : i32
    %12 = vector.broadcast %c0_i32_7 : i32 to vector<256x1xi32>
    %13 = arith.cmpi ne, %11, %12 : vector<256x1xi32>
    %c0_i32_8 = arith.constant 0 : i32
    %14 = vector.broadcast %c0_i32_8 : i32 to vector<256x1xi32>
    %15 = arith.cmpi slt, %11, %14 : vector<256x1xi32>
    %c0_i32_9 = arith.constant 0 : i32
    %16 = arith.cmpi slt, %9, %c0_i32_9 : i32
    %17 = vector.broadcast %16 : i1 to vector<256x1xi1>
    %18 = vector.broadcast %17 : vector<256x1xi1> to vector<256x1xi1>
    %19 = arith.xori %15, %18 : vector<256x1xi1>
    %20 = arith.andi %19, %13 : vector<256x1xi1>
    %21 = vector.broadcast %9 : i32 to vector<256x1xi32>
    %22 = arith.addi %11, %21 : vector<256x1xi32>
    %23 = arith.select %20, %22, %11 : vector<256x1xi1>, vector<256x1xi32>
    %cst_10 = arith.constant 0.000000e+00 : f32
    %24 = vector.broadcast %cst_10 : f32 to vector<256x8xf32>
    %c0_11 = arith.constant 0 : index
    %c0_12 = arith.constant 0 : index
    %25 = vector.load %arg6[%c0_11, %c0_12] : memref<290x8xf32, #tpu.memory_space<vmem>>, vector<256x8xf32>
    %c0_i32_13 = arith.constant 0 : i32
    %26 = vector.broadcast %c0_i32_13 : i32 to vector<256x1xi32>
    %27 = arith.cmpi ne, %23, %26 : vector<256x1xi32>
    %cst_14 = arith.constant 0.000000e+00 : f32
    %28 = vector.shape_cast %27 : vector<256x1xi1> to vector<256x1xi1>
    %29 = vector.broadcast %28 : vector<256x1xi1> to vector<256x8xi1>
    %30 = vector.broadcast %cst_14 : f32 to vector<256x8xf32>
    %31 = arith.select %29, %25, %30 : vector<256x8xi1>, vector<256x8xf32>
    %c0_15 = arith.constant 0 : index
    %c0_16 = arith.constant 0 : index
    %c0_17 = arith.constant 0 : index
    %32 = vector.load %arg2[%c0_15, %c0_16, %c0_17] : memref<9x8x8xf32, #tpu.memory_space<vmem>>, vector<1x8x8xf32>
    %33 = vector.shape_cast %32 : vector<1x8x8xf32> to vector<8x8xf32>
    %cst_18 = arith.constant dense<0.000000e+00> : vector<256x8xf32>
    %34 = tpu.matmul %31, %33, %cst_18 {dimension_numbers = #tpu.dot_dimension_numbers<[1], [0], [0], [1], [0, 0, 1, 1], [], []>} : vector<256x8xf32>, vector<8x8xf32>, vector<256x8xf32> -> vector<256x8xf32>
    %35 = arith.addf %24, %34 : vector<256x8xf32>
    %c1 = arith.constant 1 : index
    %c0_19 = arith.constant 0 : index
    %36 = vector.load %arg6[%c1, %c0_19] : memref<290x8xf32, #tpu.memory_space<vmem>>, vector<256x8xf32>
    %c1_20 = arith.constant 1 : index
    %c0_21 = arith.constant 0 : index
    %c0_22 = arith.constant 0 : index
    %37 = vector.load %arg2[%c1_20, %c0_21, %c0_22] : memref<9x8x8xf32, #tpu.memory_space<vmem>>, vector<1x8x8xf32>
    %38 = vector.shape_cast %37 : vector<1x8x8xf32> to vector<8x8xf32>
    %cst_23 = arith.constant dense<0.000000e+00> : vector<256x8xf32>
    %39 = tpu.matmul %36, %38, %cst_23 {dimension_numbers = #tpu.dot_dimension_numbers<[1], [0], [0], [1], [0, 0, 1, 1], [], []>} : vector<256x8xf32>, vector<8x8xf32>, vector<256x8xf32> -> vector<256x8xf32>
    %40 = arith.addf %35, %39 : vector<256x8xf32>
    %c2 = arith.constant 2 : index
    %c0_24 = arith.constant 0 : index
    %41 = vector.load %arg6[%c2, %c0_24] : memref<290x8xf32, #tpu.memory_space<vmem>>, vector<256x8xf32>
    %c15_i32 = arith.constant 15 : i32
    %42 = vector.broadcast %c15_i32 : i32 to vector<256x1xi32>
    %43 = arith.cmpi ne, %23, %42 : vector<256x1xi32>
    %cst_25 = arith.constant 0.000000e+00 : f32
    %44 = vector.shape_cast %43 : vector<256x1xi1> to vector<256x1xi1>
    %45 = vector.broadcast %44 : vector<256x1xi1> to vector<256x8xi1>
    %46 = vector.broadcast %cst_25 : f32 to vector<256x8xf32>
    %47 = arith.select %45, %41, %46 : vector<256x8xi1>, vector<256x8xf32>
    %c2_26 = arith.constant 2 : index
    %c0_27 = arith.constant 0 : index
    %c0_28 = arith.constant 0 : index
    %48 = vector.load %arg2[%c2_26, %c0_27, %c0_28] : memref<9x8x8xf32, #tpu.memory_space<vmem>>, vector<1x8x8xf32>
    %49 = vector.shape_cast %48 : vector<1x8x8xf32> to vector<8x8xf32>
    %cst_29 = arith.constant dense<0.000000e+00> : vector<256x8xf32>
    %50 = tpu.matmul %47, %49, %cst_29 {dimension_numbers = #tpu.dot_dimension_numbers<[1], [0], [0], [1], [0, 0, 1, 1], [], []>} : vector<256x8xf32>, vector<8x8xf32>, vector<256x8xf32> -> vector<256x8xf32>
    %51 = arith.addf %40, %50 : vector<256x8xf32>
    %c16 = arith.constant 16 : index
    %c0_30 = arith.constant 0 : index
    %52 = vector.load %arg6[%c16, %c0_30] : memref<290x8xf32, #tpu.memory_space<vmem>>, vector<256x8xf32>
    %c0_i32_31 = arith.constant 0 : i32
    %53 = vector.broadcast %c0_i32_31 : i32 to vector<256x1xi32>
    %54 = arith.cmpi ne, %23, %53 : vector<256x1xi32>
    %cst_32 = arith.constant 0.000000e+00 : f32
    %55 = vector.shape_cast %54 : vector<256x1xi1> to vector<256x1xi1>
    %56 = vector.broadcast %55 : vector<256x1xi1> to vector<256x8xi1>
    %57 = vector.broadcast %cst_32 : f32 to vector<256x8xf32>
    %58 = arith.select %56, %52, %57 : vector<256x8xi1>, vector<256x8xf32>
    %c3 = arith.constant 3 : index
    %c0_33 = arith.constant 0 : index
    %c0_34 = arith.constant 0 : index
    %59 = vector.load %arg2[%c3, %c0_33, %c0_34] : memref<9x8x8xf32, #tpu.memory_space<vmem>>, vector<1x8x8xf32>
    %60 = vector.shape_cast %59 : vector<1x8x8xf32> to vector<8x8xf32>
    %cst_35 = arith.constant dense<0.000000e+00> : vector<256x8xf32>
    %61 = tpu.matmul %58, %60, %cst_35 {dimension_numbers = #tpu.dot_dimension_numbers<[1], [0], [0], [1], [0, 0, 1, 1], [], []>} : vector<256x8xf32>, vector<8x8xf32>, vector<256x8xf32> -> vector<256x8xf32>
    %62 = arith.addf %51, %61 : vector<256x8xf32>
    %c17_36 = arith.constant 17 : index
    %c0_37 = arith.constant 0 : index
    %63 = vector.load %arg6[%c17_36, %c0_37] : memref<290x8xf32, #tpu.memory_space<vmem>>, vector<256x8xf32>
    %c4 = arith.constant 4 : index
    %c0_38 = arith.constant 0 : index
    %c0_39 = arith.constant 0 : index
    %64 = vector.load %arg2[%c4, %c0_38, %c0_39] : memref<9x8x8xf32, #tpu.memory_space<vmem>>, vector<1x8x8xf32>
    %65 = vector.shape_cast %64 : vector<1x8x8xf32> to vector<8x8xf32>
    %cst_40 = arith.constant dense<0.000000e+00> : vector<256x8xf32>
    %66 = tpu.matmul %63, %65, %cst_40 {dimension_numbers = #tpu.dot_dimension_numbers<[1], [0], [0], [1], [0, 0, 1, 1], [], []>} : vector<256x8xf32>, vector<8x8xf32>, vector<256x8xf32> -> vector<256x8xf32>
    %67 = arith.addf %62, %66 : vector<256x8xf32>
    %c18 = arith.constant 18 : index
    %c0_41 = arith.constant 0 : index
    %68 = vector.load %arg6[%c18, %c0_41] : memref<290x8xf32, #tpu.memory_space<vmem>>, vector<256x8xf32>
    %c15_i32_42 = arith.constant 15 : i32
    %69 = vector.broadcast %c15_i32_42 : i32 to vector<256x1xi32>
    %70 = arith.cmpi ne, %23, %69 : vector<256x1xi32>
    %cst_43 = arith.constant 0.000000e+00 : f32
    %71 = vector.shape_cast %70 : vector<256x1xi1> to vector<256x1xi1>
    %72 = vector.broadcast %71 : vector<256x1xi1> to vector<256x8xi1>
    %73 = vector.broadcast %cst_43 : f32 to vector<256x8xf32>
    %74 = arith.select %72, %68, %73 : vector<256x8xi1>, vector<256x8xf32>
    %c5 = arith.constant 5 : index
    %c0_44 = arith.constant 0 : index
    %c0_45 = arith.constant 0 : index
    %75 = vector.load %arg2[%c5, %c0_44, %c0_45] : memref<9x8x8xf32, #tpu.memory_space<vmem>>, vector<1x8x8xf32>
    %76 = vector.shape_cast %75 : vector<1x8x8xf32> to vector<8x8xf32>
    %cst_46 = arith.constant dense<0.000000e+00> : vector<256x8xf32>
    %77 = tpu.matmul %74, %76, %cst_46 {dimension_numbers = #tpu.dot_dimension_numbers<[1], [0], [0], [1], [0, 0, 1, 1], [], []>} : vector<256x8xf32>, vector<8x8xf32>, vector<256x8xf32> -> vector<256x8xf32>
    %78 = arith.addf %67, %77 : vector<256x8xf32>
    %c32 = arith.constant 32 : index
    %c0_47 = arith.constant 0 : index
    %79 = vector.load %arg6[%c32, %c0_47] : memref<290x8xf32, #tpu.memory_space<vmem>>, vector<256x8xf32>
    %c0_i32_48 = arith.constant 0 : i32
    %80 = vector.broadcast %c0_i32_48 : i32 to vector<256x1xi32>
    %81 = arith.cmpi ne, %23, %80 : vector<256x1xi32>
    %cst_49 = arith.constant 0.000000e+00 : f32
    %82 = vector.shape_cast %81 : vector<256x1xi1> to vector<256x1xi1>
    %83 = vector.broadcast %82 : vector<256x1xi1> to vector<256x8xi1>
    %84 = vector.broadcast %cst_49 : f32 to vector<256x8xf32>
    %85 = arith.select %83, %79, %84 : vector<256x8xi1>, vector<256x8xf32>
    %c6 = arith.constant 6 : index
    %c0_50 = arith.constant 0 : index
    %c0_51 = arith.constant 0 : index
    %86 = vector.load %arg2[%c6, %c0_50, %c0_51] : memref<9x8x8xf32, #tpu.memory_space<vmem>>, vector<1x8x8xf32>
    %87 = vector.shape_cast %86 : vector<1x8x8xf32> to vector<8x8xf32>
    %cst_52 = arith.constant dense<0.000000e+00> : vector<256x8xf32>
    %88 = tpu.matmul %85, %87, %cst_52 {dimension_numbers = #tpu.dot_dimension_numbers<[1], [0], [0], [1], [0, 0, 1, 1], [], []>} : vector<256x8xf32>, vector<8x8xf32>, vector<256x8xf32> -> vector<256x8xf32>
    %89 = arith.addf %78, %88 : vector<256x8xf32>
    %c33 = arith.constant 33 : index
    %c0_53 = arith.constant 0 : index
    %90 = vector.load %arg6[%c33, %c0_53] : memref<290x8xf32, #tpu.memory_space<vmem>>, vector<256x8xf32>
    %c7 = arith.constant 7 : index
    %c0_54 = arith.constant 0 : index
    %c0_55 = arith.constant 0 : index
    %91 = vector.load %arg2[%c7, %c0_54, %c0_55] : memref<9x8x8xf32, #tpu.memory_space<vmem>>, vector<1x8x8xf32>
    %92 = vector.shape_cast %91 : vector<1x8x8xf32> to vector<8x8xf32>
    %cst_56 = arith.constant dense<0.000000e+00> : vector<256x8xf32>
    %93 = tpu.matmul %90, %92, %cst_56 {dimension_numbers = #tpu.dot_dimension_numbers<[1], [0], [0], [1], [0, 0, 1, 1], [], []>} : vector<256x8xf32>, vector<8x8xf32>, vector<256x8xf32> -> vector<256x8xf32>
    %94 = arith.addf %89, %93 : vector<256x8xf32>
    %c34 = arith.constant 34 : index
    %c0_57 = arith.constant 0 : index
    %95 = vector.load %arg6[%c34, %c0_57] : memref<290x8xf32, #tpu.memory_space<vmem>>, vector<256x8xf32>
    %c15_i32_58 = arith.constant 15 : i32
    %96 = vector.broadcast %c15_i32_58 : i32 to vector<256x1xi32>
    %97 = arith.cmpi ne, %23, %96 : vector<256x1xi32>
    %cst_59 = arith.constant 0.000000e+00 : f32
    %98 = vector.shape_cast %97 : vector<256x1xi1> to vector<256x1xi1>
    %99 = vector.broadcast %98 : vector<256x1xi1> to vector<256x8xi1>
    %100 = vector.broadcast %cst_59 : f32 to vector<256x8xf32>
    %101 = arith.select %99, %95, %100 : vector<256x8xi1>, vector<256x8xf32>
    %c8 = arith.constant 8 : index
    %c0_60 = arith.constant 0 : index
    %c0_61 = arith.constant 0 : index
    %102 = vector.load %arg2[%c8, %c0_60, %c0_61] : memref<9x8x8xf32, #tpu.memory_space<vmem>>, vector<1x8x8xf32>
    %103 = vector.shape_cast %102 : vector<1x8x8xf32> to vector<8x8xf32>
    %cst_62 = arith.constant dense<0.000000e+00> : vector<256x8xf32>
    %104 = tpu.matmul %101, %103, %cst_62 {dimension_numbers = #tpu.dot_dimension_numbers<[1], [0], [0], [1], [0, 0, 1, 1], [], []>} : vector<256x8xf32>, vector<8x8xf32>, vector<256x8xf32> -> vector<256x8xf32>
    %105 = arith.addf %94, %104 : vector<256x8xf32>
    %c0_63 = arith.constant 0 : index
    %c0_64 = arith.constant 0 : index
    %106 = vector.load %arg3[%c0_63, %c0_64] : memref<1x8xf32, #tpu.memory_space<vmem>>, vector<1x8xf32>
    %107 = vector.broadcast %106 : vector<1x8xf32> to vector<256x8xf32>
    %108 = arith.mulf %105, %107 : vector<256x8xf32>
    %c0_65 = arith.constant 0 : index
    %c0_66 = arith.constant 0 : index
    %109 = vector.load %arg4[%c0_65, %c0_66] : memref<1x8xf32, #tpu.memory_space<vmem>>, vector<1x8xf32>
    %110 = vector.broadcast %109 : vector<1x8xf32> to vector<256x8xf32>
    %111 = arith.addf %108, %110 : vector<256x8xf32>
    %112 = arith.negf %111 : vector<256x8xf32>
    %113 = math.exp %112 : vector<256x8xf32>
    %cst_67 = arith.constant 1.000000e+00 : f32
    %114 = vector.broadcast %cst_67 : f32 to vector<256x8xf32>
    %115 = arith.addf %114, %113 : vector<256x8xf32>
    %116 = arith.divf %114, %115 : vector<256x8xf32>
    %117 = arith.mulf %111, %116 : vector<256x8xf32>
    %118 = arith.addf %117, %5 : vector<256x8xf32>
    %c0_68 = arith.constant 0 : index
    %c0_69 = arith.constant 0 : index
    %c0_70 = arith.constant 0 : index
    %119 = vector.load %arg5[%c0_68, %c0_69, %c0_70] : memref<1x256x8xf32, #tpu.memory_space<vmem>>, vector<1x256x8xf32>
    %120 = vector.shape_cast %119 : vector<1x256x8xf32> to vector<256x8xf32>
    %121 = vector.shape_cast %118 : vector<256x8xf32> to vector<1x256x8xf32>
    tpu.vector_store %arg5[%c0_68, %c0_69, %c0_70], %121 {strides = array<i32>} : memref<1x256x8xf32, #tpu.memory_space<vmem>>, vector<1x256x8xf32>,
    return
  }
  func.func @transform_0(%arg0: i32) -> (i32, i32, i32) {
    %c0_i32 = arith.constant 0 : i32
    %c0_i32_0 = arith.constant 0 : i32
    %c0_i32_1 = arith.constant 0 : i32
    return %arg0, %c0_i32, %c0_i32_0 : i32, i32, i32
  }
  func.func @transform_1(%arg0: i32) -> (i32, i32, i32) {
    %c0_i32 = arith.constant 0 : i32
    %c0_i32_0 = arith.constant 0 : i32
    %c0_i32_1 = arith.constant 0 : i32
    %c0_i32_2 = arith.constant 0 : i32
    return %c0_i32, %c0_i32_0, %c0_i32_1 : i32, i32, i32
  }
  func.func @transform_2(%arg0: i32) -> (i32, i32) {
    %c0_i32 = arith.constant 0 : i32
    %c0_i32_0 = arith.constant 0 : i32
    %c0_i32_1 = arith.constant 0 : i32
    return %c0_i32, %c0_i32_0 : i32, i32
  }
  func.func @transform_3(%arg0: i32) -> (i32, i32) {
    %c0_i32 = arith.constant 0 : i32
    %c0_i32_0 = arith.constant 0 : i32
    %c0_i32_1 = arith.constant 0 : i32
    return %c0_i32, %c0_i32_0 : i32, i32
  }
  func.func @transform_4(%arg0: i32) -> (i32, i32, i32) {
    %c0_i32 = arith.constant 0 : i32
    %c0_i32_0 = arith.constant 0 : i32
    %c0_i32_1 = arith.constant 0 : i32
    return %arg0, %c0_i32, %c0_i32_0 : i32, i32, i32
  }
}

</mosaic_0001>

<llo_original>
// kernel: c1_forward.2
$region0: #{c1_forward.2}
  #allocation0 [shape = 'u32[]', space=smem, size = 0x4, offset = 0x4, fixed_abs, tag = 'smem constant byte address 0x4 - core index']
  #allocation1 [shape = 'u32[144,128]{1,0:T(1,128)}', space=vmem, size = 0x12000, scoped, tag = 'internal scratch']
  %s0 = inlined_call_operand.vmem [shape: f32[512,4], index: 0, kind: input, shape index: {}]
  %s1 = inlined_call_operand.vmem [shape: f32[4,8], index: 1, kind: input, shape index: {}]
  %s2 = inlined_call_operand.vmem [shape: f32[1,8], index: 2, kind: input, shape index: {}]
  %s3 = inlined_call_operand.vmem [shape: f32[1,8], index: 3, kind: input, shape index: {}]
  %s4 = inlined_call_operand.vmem [shape: f32[512,8], index: 4, kind: output, shape index: {}]
  %s5 = sld [smem:[#allocation0]]
  $region49: #{c1_forward.2} parent=0
    _
  %s7 = ssub.s32 1, %s5
  %s8 = scalar_select 0, %s7, %s5
  loop: start=0, step=1, limit=4
  $region2: #{c1_forward.2} parent=0 // loop_pre_header
    _
  $region3: #{c1_forward.2} parent=0 // loop_header
    %s10 = sphi 0, %s14
    %p11 = scmp.ge.s32.totalorder %s10, 4
    %s20 = sphi 0, %s22
    %s23 = sphi 0, %s20
    %s24 = sphi 0, %s23
    %s40 = sphi 0, %s24
    %s44 = sphi 0, %s44
    %s46 = sphi 0, %s44
    %s47 = sphi 0, %s46
    %s61 = sphi 0, %s47
    %s65 = sphi 0, %s65
    %s67 = sphi 0, %s65
    %s68 = sphi 0, %s67
    %s82 = sphi 0, %s68
    %s86 = sphi 0, %s86
    %s88 = sphi 0, %s86
    %s89 = sphi 0, %s88
    %s103 = sphi 0, %s89
    %s109 = sphi 0, %s111
    %s112 = sphi 0, %s109
    %s113 = sphi 0, %s112
    %s129 = sphi 0, %s113
  $region4: #{c1_forward.2} parent=0 // loop_header_branch
    %13 = sbr.rel (%p11) target = $region8
  $region5: #{c1_forward.2} parent=0 // loop_body
    %s15 = ssub.s32 %s10, 1
    %s16 = ssub.s32 %s10, 2
    %s17 = sadd.s32 %s10, 1
    %s18 = ssub.s32 %s10, %s17
    %p19 = scmp.eq.s32.totalorder %s18, 0
    %s21 = sadd.s32 %s20, 1
    %s22 = scalar_select %p19, %s20, %s21
    %p25 = pneg %p19
    %p26 = scmp.eq.s32.totalorder %s10, 1
    %p27 = por %p25, %p26
    %p28 = scmp.ne.s32.totalorder %s20, %s23
    %p29 = scmp.eq.s32.totalorder %s10, 0
    %p30 = por %p28, %p29
    %p31 = scmp.ne.s32.totalorder %s20, %s23
    %p32 = scmp.eq.s32.totalorder %s15, 1
    %p33 = por %p31, %p32
    %p34 = scmp.ne.s32.totalorder %s23, %s24
    %p35 = scmp.eq.s32.totalorder %s15, 0
    %p36 = por %p34, %p35
    %p37 = scmp.ne.s32.totalorder %s23, %s24
    %p38 = scmp.eq.s32.totalorder %s16, 1
    %p39 = por %p37, %p38
    %p41 = scmp.ne.s32.totalorder %s24, %s40
    %p42 = scmp.eq.s32.totalorder %s16, 0
    %p43 = por %p41, %p42
    %s45 = sadd.s32 %s44, 1
    %p48 = scmp.eq.s32.totalorder %s10, 1
    %p49 = scmp.ne.s32.totalorder %s44, %s46
    %p50 = scmp.eq.s32.totalorder %s10, 0
    %p51 = por %p49, %p50
    %p52 = scmp.ne.s32.totalorder %s44, %s46
    %p53 = scmp.eq.s32.totalorder %s15, 1
    %p54 = por %p52, %p53
    %p55 = scmp.ne.s32.totalorder %s46, %s47
    %p56 = scmp.eq.s32.totalorder %s15, 0
    %p57 = por %p55, %p56
    %p58 = scmp.ne.s32.totalorder %s46, %s47
    %p59 = scmp.eq.s32.totalorder %s16, 1
    %p60 = por %p58, %p59
    %p62 = scmp.ne.s32.totalorder %s47, %s61
    %p63 = scmp.eq.s32.totalorder %s16, 0
    %p64 = por %p62, %p63
    %s66 = sadd.s32 %s65, 1
    %p69 = scmp.eq.s32.totalorder %s10, 1
    %p70 = scmp.ne.s32.totalorder %s65, %s67
    %p71 = scmp.eq.s32.totalorder %s10, 0
    %p72 = por %p70, %p71
    %p73 = scmp.ne.s32.totalorder %s65, %s67
    %p74 = scmp.eq.s32.totalorder %s15, 1
    %p75 = por %p73, %p74
    %p76 = scmp.ne.s32.totalorder %s67, %s68
    %p77 = scmp.eq.s32.totalorder %s15, 0
    %p78 = por %p76, %p77
    %p79 = scmp.ne.s32.totalorder %s67, %s68
    %p80 = scmp.eq.s32.totalorder %s16, 1
    %p81 = por %p79, %p80
    %p83 = scmp.ne.s32.totalorder %s68, %s82
    %p84 = scmp.eq.s32.totalorder %s16, 0
    %p85 = por %p83, %p84
    %s87 = sadd.s32 %s86, 1
    %p90 = scmp.eq.s32.totalorder %s10, 1
    %p91 = scmp.ne.s32.totalorder %s86, %s88
    %p92 = scmp.eq.s32.totalorder %s10, 0
    %p93 = por %p91, %p92
    %p94 = scmp.ne.s32.totalorder %s86, %s88
    %p95 = scmp.eq.s32.totalorder %s15, 1
    %p96 = por %p94, %p95
    %p97 = scmp.ne.s32.totalorder %s88, %s89
    %p98 = scmp.eq.s32.totalorder %s15, 0
    %p99 = por %p97, %p98
    %p100 = scmp.ne.s32.totalorder %s88, %s89
    %p101 = scmp.eq.s32.totalorder %s16, 1
    %p102 = por %p100, %p101
    %p104 = scmp.ne.s32.totalorder %s89, %s103
    %p105 = scmp.eq.s32.totalorder %s16, 0
    %p106 = por %p104, %p105
    %s107 = ssub.s32 %s10, %s17
    %p108 = scmp.eq.s32.totalorder %s107, 0
    %s110 = sadd.s32 %s109, 1
    %s111 = scalar_select %p108, %s109, %s110
    %p114 = pneg %p108
    %p115 = scmp.eq.s32.totalorder %s10, 1
    %p116 = por %p114, %p115
    %p117 = scmp.ne.s32.totalorder %s109, %s112
    %p118 = scmp.eq.s32.totalorder %s10, 0
    %p119 = por %p117, %p118
    %p120 = scmp.ne.s32.totalorder %s109, %s112
    %p121 = scmp.eq.s32.totalorder %s15, 1
    %p122 = por %p120, %p121
    %p123 = scmp.ne.s32.totalorder %s112, %s113
    %p124 = scmp.eq.s32.totalorder %s15, 0
    %p125 = por %p123, %p124
    %p126 = scmp.ne.s32.totalorder %s112, %s113
    %p127 = scmp.eq.s32.totalorder %s16, 1
    %p128 = por %p126, %p127
    %p130 = scmp.ne.s32.totalorder %s113, %s129
    %p131 = scmp.eq.s32.totalorder %s16, 0
    %p132 = por %p130, %p131
    %p133 = scmp.le.s32.totalorder 1, %s10
    %p134 = scmp.lt.s32.totalorder %s10, 3
    %p135 = pnand %p133, %p134
    %p136 = pneg %p135
    // Predicated region
    $region9: #{c1_forward.2} parent=5 // pred_check
      _
    $region10: #{c1_forward.2} parent=5 // pred_check_branch
      %138 = sbr.rel (%p135) target = $region12
    $region11: #{c1_forward.2} parent=5 // pred_region
      %s139 = ssub.s32 %s10, 1
      // Predicated region
      $region13: #{c1_forward.2} parent=11 // pred_check
        %p140 = pneg %p57
      $region14: #{c1_forward.2} parent=11 // pred_check_branch
        %142 = sbr.rel (%p140) target = $region16
      $region15: #{c1_forward.2} parent=11 // pred_region
        _
      $region16: #{c1_forward.2} parent=11 // pred_fallthru
        _
      // Predicated region
      $region17: #{c1_forward.2} parent=11 // pred_check
        %p143 = pneg %p78
      $region18: #{c1_forward.2} parent=11 // pred_check_branch
        %145 = sbr.rel (%p143) target = $region20
      $region19: #{c1_forward.2} parent=11 // pred_region
        _
      $region20: #{c1_forward.2} parent=11 // pred_fallthru
        _
      // Predicated region
      $region21: #{c1_forward.2} parent=11 // pred_check
        %p146 = pneg %p99
      $region22: #{c1_forward.2} parent=11 // pred_check_branch
        %148 = sbr.rel (%p146) target = $region24
      $region23: #{c1_forward.2} parent=11 // pred_region
        _
      $region24: #{c1_forward.2} parent=11 // pred_fallthru
        _
    $region12: #{c1_forward.2} parent=5 // pred_fallthru
      _
    %p149 = scmp.lt.s32.totalorder %s10, 2
    // Predicated region
    $region25: #{c1_forward.2} parent=5 // pred_check
      %p150 = pneg %p149
    $region26: #{c1_forward.2} parent=5 // pred_check_branch
      %152 = sbr.rel (%p150) target = $region28
    $region27: #{c1_forward.2} parent=5 // pred_region
      // Predicated region
      $region29: #{c1_forward.2} parent=27 // pred_check
        %p153 = pneg %p30
      $region30: #{c1_forward.2} parent=27 // pred_check_branch
        %155 = sbr.rel (%p153) target = $region32
      $region31: #{c1_forward.2} parent=27 // pred_region
        %s156 = smul.u32 32, %s10
        %p157 = scmp.lt.s32.totalorder %s156, 63
        %s158 = scalar_select %p157, %s156, 63
        %s159 = smul.addr %s158, 8
        %s160 = scalar_lea.vmem %s0, %s159
        %s161 = smul.u32 32, %s10
      $region32: #{c1_forward.2} parent=27 // pred_fallthru
        _
    $region28: #{c1_forward.2} parent=5 // pred_fallthru
      _
    %p162 = scmp.le.s32.totalorder 1, %s10
    %p163 = scmp.lt.s32.totalorder %s10, 3
    %p164 = pnand %p162, %p163
    %p165 = pneg %p164
    // Predicated region
    $region33: #{c1_forward.2} parent=5 // pred_check
      _
    $region34: #{c1_forward.2} parent=5 // pred_check_branch
      %167 = sbr.rel (%p164) target = $region36
    $region35: #{c1_forward.2} parent=5 // pred_region
      %s168 = ssub.s32 %s10, 1
      %s169 = smul.u32 32, %s15
      %p170 = scmp.lt.s32.totalorder %s169, 63
      %s171 = scalar_select %p170, %s169, 63
      %s172 = smul.addr %s171, 8
      %s173 = scalar_lea.vmem %s0, %s172
      %p174 = pneg %p36
      %p175 = pneg %p33
      %p176 = pneg %p57
      %p177 = pneg %p54
      %p178 = pneg %p78
      %p179 = pneg %p75
      %p180 = pneg %p99
      %p181 = pneg %p96
      %p182 = pneg %p125
      %p183 = pneg %p122
      %s184 = smul.u32 32, %s15
      %p185 = scmp.lt.s32.totalorder %s184, 63
      %s186 = scalar_select %p185, %s184, 63
      %s187 = smul.addr %s186, 8
      %s188 = scalar_lea.vmem %s4, %s187
      %s189 = smul.u32 32, %s15
      %p190 = scmp.lt.s32.totalorder %s189, 63
      %s191 = scalar_select %p190, %s189, 63
      %s192 = smul.addr %s191, 8
      %s193 = scalar_lea.vmem %s0, %s192
      %s194 = smul.u32 32, %s15
      %s195 = smul.u32 32, %s15
      %p196 = scmp.lt.s32.totalorder %s195, 63
      %s197 = scalar_select %p196, %s195, 63
      %s198 = smul.addr %s197, 8
      %s199 = scalar_lea.vmem %s4, %s198
      %s200 = smul.u32 32, %s15
      %v201 = vld [vmem:[%s193] sm:$0xff]
      %v202 = vld [vmem:[%s193 + $0x8] sm:$0xff]
      %v203 = vld [vmem:[%s193 + $0x10] sm:$0xff]
      %v204 = vld [vmem:[%s193 + $0x18] sm:$0xff]
      %v205 = vld [vmem:[%s193 + $0x20] sm:$0xff]
      %v206 = vld [vmem:[%s193 + $0x28] sm:$0xff]
      %v207 = vld [vmem:[%s193 + $0x30] sm:$0xff]
      %v208 = vld [vmem:[%s193 + $0x38] sm:$0xff]
      %v209 = vld [vmem:[%s193 + $0x40] sm:$0xff]
      %v210 = vld [vmem:[%s193 + $0x48] sm:$0xff]
      %v211 = vld [vmem:[%s193 + $0x50] sm:$0xff]
      %v212 = vld [vmem:[%s193 + $0x58] sm:$0xff]
      %v213 = vld [vmem:[%s193 + $0x60] sm:$0xff]
      %v214 = vld [vmem:[%s193 + $0x68] sm:$0xff]
      %v215 = vld [vmem:[%s193 + $0x70] sm:$0xff]
      %v216 = vld [vmem:[%s193 + $0x78] sm:$0xff]
      %v217 = vld [vmem:[%s193 + $0x80] sm:$0xff]
      %v218 = vld [vmem:[%s193 + $0x88] sm:$0xff]
      %v219 = vld [vmem:[%s193 + $0x90] sm:$0xff]
      %v220 = vld [vmem:[%s193 + $0x98] sm:$0xff]
      %v221 = vld [vmem:[%s193 + $0xa0] sm:$0xff]
      %v222 = vld [vmem:[%s193 + $0xa8] sm:$0xff]
      %v223 = vld [vmem:[%s193 + $0xb0] sm:$0xff]
      %v224 = vld [vmem:[%s193 + $0xb8] sm:$0xff]
      %v225 = vld [vmem:[%s193 + $0xc0] sm:$0xff]
      %v226 = vld [vmem:[%s193 + $0xc8] sm:$0xff]
      %v227 = vld [vmem:[%s193 + $0xd0] sm:$0xff]
      %v228 = vld [vmem:[%s193 + $0xd8] sm:$0xff]
      %v229 = vld [vmem:[%s193 + $0xe0] sm:$0xff]
      %v230 = vld [vmem:[%s193 + $0xe8] sm:$0xff]
      %v231 = vld [vmem:[%s193 + $0xf0] sm:$0xff]
      %v232 = vld [vmem:[%s193 + $0xf8] sm:$0xff]
      %v233 = vld [vmem:[%s1] sm:$0xf]
      %vm234 = vcmask 31744
      %v236 = vsel %vm234, %v201, 0
      %v239 = vsel %vm234, %v202, 0
      %v242 = vsel %vm234, %v203, 0
      %v245 = vsel %vm234, %v204, 0
      %v248 = vsel %vm234, %v205, 0
      %v251 = vsel %vm234, %v206, 0
      %v254 = vsel %vm234, %v207, 0
      %v257 = vsel %vm234, %v208, 0
      %v260 = vsel %vm234, %v209, 0
      %v263 = vsel %vm234, %v210, 0
      %v266 = vsel %vm234, %v211, 0
      %v269 = vsel %vm234, %v212, 0
      %v272 = vsel %vm234, %v213, 0
      %v275 = vsel %vm234, %v214, 0
      %v278 = vsel %vm234, %v215, 0
      %v281 = vsel %vm234, %v216, 0
      %v284 = vsel %vm234, %v217, 0
      %v287 = vsel %vm234, %v218, 0
      %v290 = vsel %vm234, %v219, 0
      %v293 = vsel %vm234, %v220, 0
      %v296 = vsel %vm234, %v221, 0
      %v299 = vsel %vm234, %v222, 0
      %v302 = vsel %vm234, %v223, 0
      %v305 = vsel %vm234, %v224, 0
      %v308 = vsel %vm234, %v225, 0
      %v311 = vsel %vm234, %v226, 0
      %v314 = vsel %vm234, %v227, 0
      %v317 = vsel %vm234, %v228, 0
      %v320 = vsel %vm234, %v229, 0
      %v323 = vsel %vm234, %v230, 0
      %v326 = vsel %vm234, %v231, 0
      %v329 = vsel %vm234, %v232, 0
      %vm331 = vcmask 1043456
      %v333 = vsel %vm331, %v233, 0
      %335 = vmatprep.subr.mxu0 0.0
      %336 = vmatpush1.msra.mxu0 0.0
      %337 = vmatprep.subr.mxu0 0.0
      %338 = vmatpush1.msra.mxu0 0.0
      %339 = vmatprep.subr.mxu0 0.0
      %340 = vmatpush1.msra.mxu0 0.0
      %341 = vmatprep.subr.mxu0 0.0
      %342 = vmatpush1.msra.mxu0 0.0
      %343 = vmatprep.subr.mxu0 0.0
      %344 = vmatpush1.msra.mxu0 0.0
      %345 = vmatprep.subr.mxu0 0.0
      %346 = vmatpush1.msra.mxu0 0.0
      %347 = vmatprep.subr.mxu0 0.0
      %348 = vmatpush1.msra.mxu0 0.0
      %349 = vmatprep.subr.mxu0 0.0
      %350 = vmatpush1.msra.mxu0 0.0
      %351 = vmatprep.subr.mxu0 0.0
      %352 = vmatpush1.msra.mxu0 0.0
      %353 = vmatprep.subr.mxu0 0.0
      %354 = vmatpush1.msra.mxu0 0.0
      %355 = vmatprep.subr.mxu0 0.0
      %356 = vmatpush1.msra.mxu0 0.0
      %357 = vmatprep.subr.mxu0 0.0
      %358 = vmatpush1.msra.mxu0 0.0
      %359 = vmatprep.subr.mxu0 0.0
      %360 = vmatpush1.msra.mxu0 0.0
      %361 = vmatprep.subr.mxu0 0.0
      %362 = vmatpush1.msra.mxu0 0.0
      %363 = vmatprep.subr.mxu0 0.0
      %364 = vmatpush1.msra.mxu0 0.0
      %365 = vmatprep.subr.mxu0 0.0
      %366 = vmatpush1.msra.mxu0 %v333
      %367 = vmatprep.subr.mxu0 0.0
      %368 = vmatpush2.msra.mxu0 0.0
      %369 = vmatprep.subr.mxu0 0.0
      %370 = vmatpush2.msra.mxu0 0.0
      %371 = vmatprep.subr.mxu0 0.0
      %372 = vmatpush2.msra.mxu0 0.0
      %373 = vmatprep.subr.mxu0 0.0
      %374 = vmatpush2.msra.mxu0 0.0
      %375 = vmatprep.subr.mxu0 0.0
      %376 = vmatpush2.msra.mxu0 0.0
      %377 = vmatprep.subr.mxu0 0.0
      %378 = vmatpush2.msra.mxu0 0.0
      %379 = vmatprep.subr.mxu0 0.0
      %380 = vmatpush2.msra.mxu0 0.0
      %381 = vmatprep.subr.mxu0 0.0
      %382 = vmatpush2.msra.mxu0 0.0
      %383 = vmatprep.subr.mxu0 0.0
      %384 = vmatpush2.msra.mxu0 0.0
      %385 = vmatprep.subr.mxu0 0.0
      %386 = vmatpush2.msra.mxu0 0.0
      %387 = vmatprep.subr.mxu0 0.0
      %388 = vmatpush2.msra.mxu0 0.0
      %389 = vmatprep.subr.mxu0 0.0
      %390 = vmatpush2.msra.mxu0 0.0
      %391 = vmatprep.subr.mxu0 0.0
      %392 = vmatpush2.msra.mxu0 0.0
      %393 = vmatprep.subr.mxu0 0.0
      %394 = vmatpush2.msra.mxu0 0.0
      %395 = vmatprep.subr.mxu0 0.0
      %396 = vmatpush2.msra.mxu0 0.0
      %397 = vmatprep.subr.mxu0 0.0
      %398 = vmatpush2.msra.mxu0 0.0
      %399 = vmatprep.mubr.f32.mxu0 0.0
      %400 = vmatmul.mubr.f32.gmra.mxu0 %v236
      %v401 = vpop.f32.mrf.mxu0
      %v402 = vadd.f32 0.0, %v401
      %v403 = vpop.f32.mrf.mxu0
      %404 = vmatprep.mubr.f32.mxu0 0.0
      %405 = vmatmul.mubr.f32.gmra.mxu0 %v239
      %v406 = vpop.f32.mrf.mxu0
      %v407 = vadd.f32 0.0, %v406
      %v408 = vpop.f32.mrf.mxu0
      %409 = vmatprep.mubr.f32.mxu0 0.0
      %410 = vmatmul.mubr.f32.gmra.mxu0 %v242
      %v411 = vpop.f32.mrf.mxu0
      %v412 = vadd.f32 0.0, %v411
      %v413 = vpop.f32.mrf.mxu0
      %414 = vmatprep.mubr.f32.mxu0 0.0
      %415 = vmatmul.mubr.f32.gmra.mxu0 %v245
      %v416 = vpop.f32.mrf.mxu0
      %v417 = vadd.f32 0.0, %v416
      %v418 = vpop.f32.mrf.mxu0
      %419 = vmatprep.mubr.f32.mxu0 0.0
      %420 = vmatmul.mubr.f32.gmra.mxu0 %v248
      %v421 = vpop.f32.mrf.mxu0
      %v422 = vadd.f32 0.0, %v421
      %v423 = vpop.f32.mrf.mxu0
      %424 = vmatprep.mubr.f32.mxu0 0.0
      %425 = vmatmul.mubr.f32.gmra.mxu0 %v251
      %v426 = vpop.f32.mrf.mxu0
      %v427 = vadd.f32 0.0, %v426
      %v428 = vpop.f32.mrf.mxu0
      %429 = vmatprep.mubr.f32.mxu0 0.0
      %430 = vmatmul.mubr.f32.gmra.mxu0 %v254
      %v431 = vpop.f32.mrf.mxu0
      %v432 = vadd.f32 0.0, %v431
      %v433 = vpop.f32.mrf.mxu0
      %434 = vmatprep.mubr.f32.mxu0 0.0
      %435 = vmatmul.mubr.f32.gmra.mxu0 %v257
      %v436 = vpop.f32.mrf.mxu0
      %v437 = vadd.f32 0.0, %v436
      %v438 = vpop.f32.mrf.mxu0
      %439 = vmatprep.mubr.f32.mxu0 0.0
      %440 = vmatmul.mubr.f32.gmra.mxu0 %v260
      %v441 = vpop.f32.mrf.mxu0
      %v442 = vadd.f32 0.0, %v441
      %v443 = vpop.f32.mrf.mxu0
      %444 = vmatprep.mubr.f32.mxu0 0.0
      %445 = vmatmul.mubr.f32.gmra.mxu0 %v263
      %v446 = vpop.f32.mrf.mxu0
      %v447 = vadd.f32 0.0, %v446
      %v448 = vpop.f32.mrf.mxu0
      %449 = vmatprep.mubr.f32.mxu0 0.0
      %450 = vmatmul.mubr.f32.gmra.mxu0 %v266
      %v451 = vpop.f32.mrf.mxu0
      %v452 = vadd.f32 0.0, %v451
      %v453 = vpop.f32.mrf.mxu0
      %454 = vmatprep.mubr.f32.mxu0 0.0
      %455 = vmatmul.mubr.f32.gmra.mxu0 %v269
      %v456 = vpop.f32.mrf.mxu0
      %v457 = vadd.f32 0.0, %v456
      %v458 = vpop.f32.mrf.mxu0
      %459 = vmatprep.mubr.f32.mxu0 0.0
      %460 = vmatmul.mubr.f32.gmra.mxu0 %v272
      %v461 = vpop.f32.mrf.mxu0
      %v462 = vadd.f32 0.0, %v461
      %v463 = vpop.f32.mrf.mxu0
      %464 = vmatprep.mubr.f32.mxu0 0.0
      %465 = vmatmul.mubr.f32.gmra.mxu0 %v275
      %v466 = vpop.f32.mrf.mxu0
      %v467 = vadd.f32 0.0, %v466
      %v468 = vpop.f32.mrf.mxu0
      %469 = vmatprep.mubr.f32.mxu0 0.0
      %470 = vmatmul.mubr.f32.gmra.mxu0 %v278
      %v471 = vpop.f32.mrf.mxu0
      %v472 = vadd.f32 0.0, %v471
      %v473 = vpop.f32.mrf.mxu0
      %474 = vmatprep.mubr.f32.mxu0 0.0
      %475 = vmatmul.mubr.f32.gmra.mxu0 %v281
      %v476 = vpop.f32.mrf.mxu0
      %v477 = vadd.f32 0.0, %v476
      %v478 = vpop.f32.mrf.mxu0
      %479 = vmatprep.mubr.f32.mxu0 0.0
      %480 = vmatmul.mubr.f32.gmra.mxu0 %v284
      %v481 = vpop.f32.mrf.mxu0
      %v482 = vadd.f32 0.0, %v481
      %v483 = vpop.f32.mrf.mxu0
      %484 = vmatprep.mubr.f32.mxu0 0.0
      %485 = vmatmul.mubr.f32.gmra.mxu0 %v287
      %v486 = vpop.f32.mrf.mxu0
      %v487 = vadd.f32 0.0, %v486
      %v488 = vpop.f32.mrf.mxu0
      %489 = vmatprep.mubr.f32.mxu0 0.0
      %490 = vmatmul.mubr.f32.gmra.mxu0 %v290
      %v491 = vpop.f32.mrf.mxu0
      %v492 = vadd.f32 0.0, %v491
      %v493 = vpop.f32.mrf.mxu0
      %494 = vmatprep.mubr.f32.mxu0 0.0
      %495 = vmatmul.mubr.f32.gmra.mxu0 %v293
      %v496 = vpop.f32.mrf.mxu0
      %v497 = vadd.f32 0.0, %v496
      %v498 = vpop.f32.mrf.mxu0
      %499 = vmatprep.mubr.f32.mxu0 0.0
      %500 = vmatmul.mubr.f32.gmra.mxu0 %v296
      %v501 = vpop.f32.mrf.mxu0
      %v502 = vadd.f32 0.0, %v501
      %v503 = vpop.f32.mrf.mxu0
      %504 = vmatprep.mubr.f32.mxu0 0.0
      %505 = vmatmul.mubr.f32.gmra.mxu0 %v299
      %v506 = vpop.f32.mrf.mxu0
      %v507 = vadd.f32 0.0, %v506
      %v508 = vpop.f32.mrf.mxu0
      %509 = vmatprep.mubr.f32.mxu0 0.0
      %510 = vmatmul.mubr.f32.gmra.mxu0 %v302
      %v511 = vpop.f32.mrf.mxu0
      %v512 = vadd.f32 0.0, %v511
      %v513 = vpop.f32.mrf.mxu0
      %514 = vmatprep.mubr.f32.mxu0 0.0
      %515 = vmatmul.mubr.f32.gmra.mxu0 %v305
      %v516 = vpop.f32.mrf.mxu0
      %v517 = vadd.f32 0.0, %v516
      %v518 = vpop.f32.mrf.mxu0
      %519 = vmatprep.mubr.f32.mxu0 0.0
      %520 = vmatmul.mubr.f32.gmra.mxu0 %v308
      %v521 = vpop.f32.mrf.mxu0
      %v522 = vadd.f32 0.0, %v521
      %v523 = vpop.f32.mrf.mxu0
      %524 = vmatprep.mubr.f32.mxu0 0.0
      %525 = vmatmul.mubr.f32.gmra.mxu0 %v311
      %v526 = vpop.f32.mrf.mxu0
      %v527 = vadd.f32 0.0, %v526
      %v528 = vpop.f32.mrf.mxu0
      %529 = vmatprep.mubr.f32.mxu0 0.0
      %530 = vmatmul.mubr.f32.gmra.mxu0 %v314
      %v531 = vpop.f32.mrf.mxu0
      %v532 = vadd.f32 0.0, %v531
      %v533 = vpop.f32.mrf.mxu0
      %534 = vmatprep.mubr.f32.mxu0 0.0
      %535 = vmatmul.mubr.f32.gmra.mxu0 %v317
      %v536 = vpop.f32.mrf.mxu0
      %v537 = vadd.f32 0.0, %v536
      %v538 = vpop.f32.mrf.mxu0
      %539 = vmatprep.mubr.f32.mxu0 0.0
      %540 = vmatmul.mubr.f32.gmra.mxu0 %v320
      %v541 = vpop.f32.mrf.mxu0
      %v542 = vadd.f32 0.0, %v541
      %v543 = vpop.f32.mrf.mxu0
      %544 = vmatprep.mubr.f32.mxu0 0.0
      %545 = vmatmul.mubr.f32.gmra.mxu0 %v323
      %v546 = vpop.f32.mrf.mxu0
      %v547 = vadd.f32 0.0, %v546
      %v548 = vpop.f32.mrf.mxu0
      %549 = vmatprep.mubr.f32.mxu0 0.0
      %550 = vmatmul.mubr.f32.gmra.mxu0 %v326
      %v551 = vpop.f32.mrf.mxu0
      %v552 = vadd.f32 0.0, %v551
      %v553 = vpop.f32.mrf.mxu0
      %554 = vmatprep.mubr.f32.mxu0 0.0
      %555 = vmatmul.mubr.f32.gmra.mxu0 %v329
      %v556 = vpop.f32.mrf.mxu0
      %v557 = vadd.f32 0.0, %v556
      %v558 = vpop.f32.mrf.mxu0
      %559 = vdwg.mxu0
      %v560 = vld [vmem:[%s2] sm:$0x1]
      %v562 = vlaneseq
      %v563 = vshrl.u32 %v562, 7
      %v564 = vsub.s32 0, %v563
      %v565 = vrot.slane %v560, %v564
      %v567 = vmul.f32 %v402, %v565
      %v568 = vmul.f32 %v407, %v565
      %v569 = vmul.f32 %v412, %v565
      %v570 = vmul.f32 %v417, %v565
      %v571 = vmul.f32 %v422, %v565
      %v572 = vmul.f32 %v427, %v565
      %v573 = vmul.f32 %v432, %v565
      %v574 = vmul.f32 %v437, %v565
      %v575 = vmul.f32 %v442, %v565
      %v576 = vmul.f32 %v447, %v565
      %v577 = vmul.f32 %v452, %v565
      %v578 = vmul.f32 %v457, %v565
      %v579 = vmul.f32 %v462, %v565
      %v580 = vmul.f32 %v467, %v565
      %v581 = vmul.f32 %v472, %v565
      %v582 = vmul.f32 %v477, %v565
      %v583 = vmul.f32 %v482, %v565
      %v584 = vmul.f32 %v487, %v565
      %v585 = vmul.f32 %v492, %v565
      %v586 = vmul.f32 %v497, %v565
      %v587 = vmul.f32 %v502, %v565
      %v588 = vmul.f32 %v507, %v565
      %v589 = vmul.f32 %v512, %v565
      %v590 = vmul.f32 %v517, %v565
      %v591 = vmul.f32 %v522, %v565
      %v592 = vmul.f32 %v527, %v565
      %v593 = vmul.f32 %v532, %v565
      %v594 = vmul.f32 %v537, %v565
      %v595 = vmul.f32 %v542, %v565
      %v596 = vmul.f32 %v547, %v565
      %v597 = vmul.f32 %v552, %v565
      %v598 = vmul.f32 %v557, %v565
      %v599 = vld [vmem:[%s3] sm:$0x1]
      %v601 = vlaneseq
      %v602 = vshrl.u32 %v601, 7
      %v603 = vsub.s32 0, %v602
      %v604 = vrot.slane %v599, %v603
      %v606 = vadd.f32 %v567, %v604
      %v607 = vadd.f32 %v568, %v604
      %v608 = vadd.f32 %v569, %v604
      %v609 = vadd.f32 %v570, %v604
      %v610 = vadd.f32 %v571, %v604
      %v611 = vadd.f32 %v572, %v604
      %v612 = vadd.f32 %v573, %v604
      %v613 = vadd.f32 %v574, %v604
      %v614 = vadd.f32 %v575, %v604
      %v615 = vadd.f32 %v576, %v604
      %v616 = vadd.f32 %v577, %v604
      %v617 = vadd.f32 %v578, %v604
      %v618 = vadd.f32 %v579, %v604
      %v619 = vadd.f32 %v580, %v604
      %v620 = vadd.f32 %v581, %v604
      %v621 = vadd.f32 %v582, %v604
      %v622 = vadd.f32 %v583, %v604
      %v623 = vadd.f32 %v584, %v604
      %v624 = vadd.f32 %v585, %v604
      %v625 = vadd.f32 %v586, %v604
      %v626 = vadd.f32 %v587, %v604
      %v627 = vadd.f32 %v588, %v604
      %v628 = vadd.f32 %v589, %v604
      %v629 = vadd.f32 %v590, %v604
      %v630 = vadd.f32 %v591, %v604
      %v631 = vadd.f32 %v592, %v604
      %v632 = vadd.f32 %v593, %v604
      %v633 = vadd.f32 %v594, %v604
      %v634 = vadd.f32 %v595, %v604
      %v635 = vadd.f32 %v596, %v604
      %v636 = vadd.f32 %v597, %v604
      %v637 = vadd.f32 %v598, %v604
      %v638 = vxor.u32 %v606, 2147483648
      %v639 = vxor.u32 %v607, 2147483648
      %v640 = vxor.u32 %v608, 2147483648
      %v641 = vxor.u32 %v609, 2147483648
      %v642 = vxor.u32 %v610, 2147483648
      %v643 = vxor.u32 %v611, 2147483648
      %v644 = vxor.u32 %v612, 2147483648
      %v645 = vxor.u32 %v613, 2147483648
      %v646 = vxor.u32 %v614, 2147483648
      %v647 = vxor.u32 %v615, 2147483648
      %v648 = vxor.u32 %v616, 2147483648
      %v649 = vxor.u32 %v617, 2147483648
      %v650 = vxor.u32 %v618, 2147483648
      %v651 = vxor.u32 %v619, 2147483648
      %v652 = vxor.u32 %v620, 2147483648
      %v653 = vxor.u32 %v621, 2147483648
      %v654 = vxor.u32 %v622, 2147483648
      %v655 = vxor.u32 %v623, 2147483648
      %v656 = vxor.u32 %v624, 2147483648
      %v657 = vxor.u32 %v625, 2147483648
      %v658 = vxor.u32 %v626, 2147483648
      %v659 = vxor.u32 %v627, 2147483648
      %v660 = vxor.u32 %v628, 2147483648
      %v661 = vxor.u32 %v629, 2147483648
      %v662 = vxor.u32 %v630, 2147483648
      %v663 = vxor.u32 %v631, 2147483648
      %v664 = vxor.u32 %v632, 2147483648
      %v665 = vxor.u32 %v633, 2147483648
      %v666 = vxor.u32 %v634, 2147483648
      %v667 = vxor.u32 %v635, 2147483648
      %v668 = vxor.u32 %v636, 2147483648
      %v669 = vxor.u32 %v637, 2147483648
      %v670 = vmul.f32 %v638, 1.442695
      %v671 = vpow.pop %v670
      %v672 = vmul.f32 %v639, 1.442695
      %v673 = vpow.pop %v672
      %v674 = vmul.f32 %v640, 1.442695
      %v675 = vpow.pop %v674
      %v676 = vmul.f32 %v641, 1.442695
      %v677 = vpow.pop %v676
      %v678 = vmul.f32 %v642, 1.442695
      %v679 = vpow.pop %v678
      %v680 = vmul.f32 %v643, 1.442695
      %v681 = vpow.pop %v680
      %v682 = vmul.f32 %v644, 1.442695
      %v683 = vpow.pop %v682
      %v684 = vmul.f32 %v645, 1.442695
      %v685 = vpow.pop %v684
      %v686 = vmul.f32 %v646, 1.442695
      %v687 = vpow.pop %v686
      %v688 = vmul.f32 %v647, 1.442695
      %v689 = vpow.pop %v688
      %v690 = vmul.f32 %v648, 1.442695
      %v691 = vpow.pop %v690
      %v692 = vmul.f32 %v649, 1.442695
      %v693 = vpow.pop %v692
      %v694 = vmul.f32 %v650, 1.442695
      %v695 = vpow.pop %v694
      %v696 = vmul.f32 %v651, 1.442695
      %v697 = vpow.pop %v696
      %v698 = vmul.f32 %v652, 1.442695
      %v699 = vpow.pop %v698
      %v700 = vmul.f32 %v653, 1.442695
      %v701 = vpow.pop %v700
      %v702 = vmul.f32 %v654, 1.442695
      %v703 = vpow.pop %v702
      %v704 = vmul.f32 %v655, 1.442695
      %v705 = vpow.pop %v704
      %v706 = vmul.f32 %v656, 1.442695
      %v707 = vpow.pop %v706
      %v708 = vmul.f32 %v657, 1.442695
      %v709 = vpow.pop %v708
      %v710 = vmul.f32 %v658, 1.442695
      %v711 = vpow.pop %v710
      %v712 = vmul.f32 %v659, 1.442695
      %v713 = vpow.pop %v712
      %v714 = vmul.f32 %v660, 1.442695
      %v715 = vpow.pop %v714
      %v716 = vmul.f32 %v661, 1.442695
      %v717 = vpow.pop %v716
      %v718 = vmul.f32 %v662, 1.442695
      %v719 = vpow.pop %v718
      %v720 = vmul.f32 %v663, 1.442695
      %v721 = vpow.pop %v720
      %v722 = vmul.f32 %v664, 1.442695
      %v723 = vpow.pop %v722
      %v724 = vmul.f32 %v665, 1.442695
      %v725 = vpow.pop %v724
      %v726 = vmul.f32 %v666, 1.442695
      %v727 = vpow.pop %v726
      %v728 = vmul.f32 %v667, 1.442695
      %v729 = vpow.pop %v728
      %v730 = vmul.f32 %v668, 1.442695
      %v731 = vpow.pop %v730
      %v732 = vmul.f32 %v669, 1.442695
      %v733 = vpow.pop %v732
      %v734 = vadd.f32 %v671, 1.0
      %v735 = vadd.f32 %v673, 1.0
      %v736 = vadd.f32 %v675, 1.0
      %v737 = vadd.f32 %v677, 1.0
      %v738 = vadd.f32 %v679, 1.0
      %v739 = vadd.f32 %v681, 1.0
      %v740 = vadd.f32 %v683, 1.0
      %v741 = vadd.f32 %v685, 1.0
      %v742 = vadd.f32 %v687, 1.0
      %v743 = vadd.f32 %v689, 1.0
      %v744 = vadd.f32 %v691, 1.0
      %v745 = vadd.f32 %v693, 1.0
      %v746 = vadd.f32 %v695, 1.0
      %v747 = vadd.f32 %v697, 1.0
      %v748 = vadd.f32 %v699, 1.0
      %v749 = vadd.f32 %v701, 1.0
      %v750 = vadd.f32 %v703, 1.0
      %v751 = vadd.f32 %v705, 1.0
      %v752 = vadd.f32 %v707, 1.0
      %v753 = vadd.f32 %v709, 1.0
      %v754 = vadd.f32 %v711, 1.0
      %v755 = vadd.f32 %v713, 1.0
      %v756 = vadd.f32 %v715, 1.0
      %v757 = vadd.f32 %v717, 1.0
      %v758 = vadd.f32 %v719, 1.0
      %v759 = vadd.f32 %v721, 1.0
      %v760 = vadd.f32 %v723, 1.0
      %v761 = vadd.f32 %v725, 1.0
      %v762 = vadd.f32 %v727, 1.0
      %v763 = vadd.f32 %v729, 1.0
      %v764 = vadd.f32 %v731, 1.0
      %v765 = vadd.f32 %v733, 1.0
      %v766 = vrcp.pop %v734
      %v767 = vmul.f32 1.0, %v766
      %v768 = vrcp.pop %v735
      %v769 = vmul.f32 1.0, %v768
      %v770 = vrcp.pop %v736
      %v771 = vmul.f32 1.0, %v770
      %v772 = vrcp.pop %v737
      %v773 = vmul.f32 1.0, %v772
      %v774 = vrcp.pop %v738
      %v775 = vmul.f32 1.0, %v774
      %v776 = vrcp.pop %v739
      %v777 = vmul.f32 1.0, %v776
      %v778 = vrcp.pop %v740
      %v779 = vmul.f32 1.0, %v778
      %v780 = vrcp.pop %v741
      %v781 = vmul.f32 1.0, %v780
      %v782 = vrcp.pop %v742
      %v783 = vmul.f32 1.0, %v782
      %v784 = vrcp.pop %v743
      %v785 = vmul.f32 1.0, %v784
      %v786 = vrcp.pop %v744
      %v787 = vmul.f32 1.0, %v786
      %v788 = vrcp.pop %v745
      %v789 = vmul.f32 1.0, %v788
      %v790 = vrcp.pop %v746
      %v791 = vmul.f32 1.0, %v790
      %v792 = vrcp.pop %v747
      %v793 = vmul.f32 1.0, %v792
      %v794 = vrcp.pop %v748
      %v795 = vmul.f32 1.0, %v794
      %v796 = vrcp.pop %v749
      %v797 = vmul.f32 1.0, %v796
      %v798 = vrcp.pop %v750
      %v799 = vmul.f32 1.0, %v798
      %v800 = vrcp.pop %v751
      %v801 = vmul.f32 1.0, %v800
      %v802 = vrcp.pop %v752
      %v803 = vmul.f32 1.0, %v802
      %v804 = vrcp.pop %v753
      %v805 = vmul.f32 1.0, %v804
      %v806 = vrcp.pop %v754
      %v807 = vmul.f32 1.0, %v806
      %v808 = vrcp.pop %v755
      %v809 = vmul.f32 1.0, %v808
      %v810 = vrcp.pop %v756
      %v811 = vmul.f32 1.0, %v810
      %v812 = vrcp.pop %v757
      %v813 = vmul.f32 1.0, %v812
      %v814 = vrcp.pop %v758
      %v815 = vmul.f32 1.0, %v814
      %v816 = vrcp.pop %v759
      %v817 = vmul.f32 1.0, %v816
      %v818 = vrcp.pop %v760
      %v819 = vmul.f32 1.0, %v818
      %v820 = vrcp.pop %v761
      %v821 = vmul.f32 1.0, %v820
      %v822 = vrcp.pop %v762
      %v823 = vmul.f32 1.0, %v822
      %v824 = vrcp.pop %v763
      %v825 = vmul.f32 1.0, %v824
      %v826 = vrcp.pop %v764
      %v827 = vmul.f32 1.0, %v826
      %v828 = vrcp.pop %v765
      %v829 = vmul.f32 1.0, %v828
      %v830 = vmul.f32 %v606, %v767
      %v831 = vmul.f32 %v607, %v769
      %v832 = vmul.f32 %v608, %v771
      %v833 = vmul.f32 %v609, %v773
      %v834 = vmul.f32 %v610, %v775
      %v835 = vmul.f32 %v611, %v777
      %v836 = vmul.f32 %v612, %v779
      %v837 = vmul.f32 %v613, %v781
      %v838 = vmul.f32 %v614, %v783
      %v839 = vmul.f32 %v615, %v785
      %v840 = vmul.f32 %v616, %v787
      %v841 = vmul.f32 %v617, %v789
      %v842 = vmul.f32 %v618, %v791
      %v843 = vmul.f32 %v619, %v793
      %v844 = vmul.f32 %v620, %v795
      %v845 = vmul.f32 %v621, %v797
      %v846 = vmul.f32 %v622, %v799
      %v847 = vmul.f32 %v623, %v801
      %v848 = vmul.f32 %v624, %v803
      %v849 = vmul.f32 %v625, %v805
      %v850 = vmul.f32 %v626, %v807
      %v851 = vmul.f32 %v627, %v809
      %v852 = vmul.f32 %v628, %v811
      %v853 = vmul.f32 %v629, %v813
      %v854 = vmul.f32 %v630, %v815
      %v855 = vmul.f32 %v631, %v817
      %v856 = vmul.f32 %v632, %v819
      %v857 = vmul.f32 %v633, %v821
      %v858 = vmul.f32 %v634, %v823
      %v859 = vmul.f32 %v635, %v825
      %v860 = vmul.f32 %v636, %v827
      %v861 = vmul.f32 %v637, %v829
      %vm862 = vcmask 64512
      %863 = vst.msk [vmem:[%s199] sm:$0xff] %vm862, %v830
      %864 = vst.msk [vmem:[%s199 + $0x8] sm:$0xff] %vm862, %v831
      %865 = vst.msk [vmem:[%s199 + $0x10] sm:$0xff] %vm862, %v832
      %866 = vst.msk [vmem:[%s199 + $0x18] sm:$0xff] %vm862, %v833
      %867 = vst.msk [vmem:[%s199 + $0x20] sm:$0xff] %vm862, %v834
      %868 = vst.msk [vmem:[%s199 + $0x28] sm:$0xff] %vm862, %v835
      %869 = vst.msk [vmem:[%s199 + $0x30] sm:$0xff] %vm862, %v836
      %870 = vst.msk [vmem:[%s199 + $0x38] sm:$0xff] %vm862, %v837
      %871 = vst.msk [vmem:[%s199 + $0x40] sm:$0xff] %vm862, %v838
      %872 = vst.msk [vmem:[%s199 + $0x48] sm:$0xff] %vm862, %v839
      %873 = vst.msk [vmem:[%s199 + $0x50] sm:$0xff] %vm862, %v840
      %874 = vst.msk [vmem:[%s199 + $0x58] sm:$0xff] %vm862, %v841
      %875 = vst.msk [vmem:[%s199 + $0x60] sm:$0xff] %vm862, %v842
      %876 = vst.msk [vmem:[%s199 + $0x68] sm:$0xff] %vm862, %v843
      %877 = vst.msk [vmem:[%s199 + $0x70] sm:$0xff] %vm862, %v844
      %878 = vst.msk [vmem:[%s199 + $0x78] sm:$0xff] %vm862, %v845
      %879 = vst.msk [vmem:[%s199 + $0x80] sm:$0xff] %vm862, %v846
      %880 = vst.msk [vmem:[%s199 + $0x88] sm:$0xff] %vm862, %v847
      %881 = vst.msk [vmem:[%s199 + $0x90] sm:$0xff] %vm862, %v848
      %882 = vst.msk [vmem:[%s199 + $0x98] sm:$0xff] %vm862, %v849
      %883 = vst.msk [vmem:[%s199 + $0xa0] sm:$0xff] %vm862, %v850
      %884 = vst.msk [vmem:[%s199 + $0xa8] sm:$0xff] %vm862, %v851
      %885 = vst.msk [vmem:[%s199 + $0xb0] sm:$0xff] %vm862, %v852
      %886 = vst.msk [vmem:[%s199 + $0xb8] sm:$0xff] %vm862, %v853
      %887 = vst.msk [vmem:[%s199 + $0xc0] sm:$0xff] %vm862, %v854
      %888 = vst.msk [vmem:[%s199 + $0xc8] sm:$0xff] %vm862, %v855
      %889 = vst.msk [vmem:[%s199 + $0xd0] sm:$0xff] %vm862, %v856
      %890 = vst.msk [vmem:[%s199 + $0xd8] sm:$0xff] %vm862, %v857
      %891 = vst.msk [vmem:[%s199 + $0xe0] sm:$0xff] %vm862, %v858
      %892 = vst.msk [vmem:[%s199 + $0xe8] sm:$0xff] %vm862, %v859
      %893 = vst.msk [vmem:[%s199 + $0xf0] sm:$0xff] %vm862, %v860
      %894 = vst.msk [vmem:[%s199 + $0xf8] sm:$0xff] %vm862, %v861
      %s895 = smul.u32 32, %s15
      %p896 = scmp.lt.s32.totalorder %s895, 63
      %s897 = scalar_select %p896, %s895, 63
      %s898 = smul.addr %s897, 8
      %s899 = scalar_lea.vmem %s4, %s898
      // Predicated region
      $region37: #{c1_forward.2} parent=35 // pred_check
        %p900 = pneg %p122
      $region38: #{c1_forward.2} parent=35 // pred_check_branch
        %902 = sbr.rel (%p900) target = $region40
      $region39: #{c1_forward.2} parent=35 // pred_region
        %s903 = smul.u32 32, %s15
      $region40: #{c1_forward.2} parent=35 // pred_fallthru
        _
    $region36: #{c1_forward.2} parent=5 // pred_fallthru
      _
    %p904 = scmp.le.s32.totalorder 2, %s10
    // Predicated region
    $region41: #{c1_forward.2} parent=5 // pred_check
      %p905 = pneg %p904
    $region42: #{c1_forward.2} parent=5 // pred_check_branch
      %907 = sbr.rel (%p905) target = $region44
    $region43: #{c1_forward.2} parent=5 // pred_region
      %s908 = ssub.s32 %s10, 2
      // Predicated region
      $region45: #{c1_forward.2} parent=43 // pred_check
        %p909 = pneg %p128
      $region46: #{c1_forward.2} parent=43 // pred_check_branch
        %911 = sbr.rel (%p909) target = $region48
      $region47: #{c1_forward.2} parent=43 // pred_region
        %s912 = smul.u32 32, %s16
        %p913 = scmp.lt.s32.totalorder %s912, 63
        %s914 = scalar_select %p913, %s912, 63
        %s915 = smul.addr %s914, 8
        %s916 = scalar_lea.vmem %s4, %s915
      $region48: #{c1_forward.2} parent=43 // pred_fallthru
        _
    $region44: #{c1_forward.2} parent=5 // pred_fallthru
      _
  $region6: #{c1_forward.2} parent=0 // loop_footer
    %s14 = sadd.s32 1, %s10
  $region7: #{c1_forward.2} parent=0 // loop_footer_branch
    %9 = sbr.rel target = $region3
  $region8: #{c1_forward.2} parent=0 // loop_exit
    _

// kernel: c1_forward.3
$region0: #{c1_forward.3}
  #allocation0 [shape = 'u32[]', space=smem, size = 0x4, offset = 0x4, fixed_abs, tag = 'smem constant byte address 0x4 - core index']
  #allocation1 [shape = 'u32[144,128]{1,0:T(1,128)}', space=vmem, size = 0x12000, scoped, tag = 'internal scratch']
  #allocation2 [shape = 'f32[290,8]{1,0:T(8,128)}', space=vmem, size = 0x25000, scoped, tag = 'scratch operand']
  %s0 = inlined_call_operand.vmem [shape: f32[2,256,8], index: 0, kind: input, shape index: {}]
  %s1 = inlined_call_operand.vmem [shape: f32[9,8,8], index: 1, kind: input, shape index: {}]
  %s2 = inlined_call_operand.vmem [shape: f32[1,8], index: 2, kind: input, shape index: {}]
  %s3 = inlined_call_operand.vmem [shape: f32[1,8], index: 3, kind: input, shape index: {}]
  %s4 = inlined_call_operand.vmem [shape: f32[2,256,8], index: 4, kind: output, shape index: {}]
  %s5 = sld [smem:[#allocation0]]
  $region49: #{c1_forward.3} parent=0
    _
  %s7 = ssub.s32 1, %s5
  %s8 = scalar_select 0, %s7, %s5
  loop: start=0, step=1, limit=4
  $region2: #{c1_forward.3} parent=0 // loop_pre_header
    _
  $region3: #{c1_forward.3} parent=0 // loop_header
    %s10 = sphi 0, %s14
    %p11 = scmp.ge.s32.totalorder %s10, 4
    %s20 = sphi 0, %s22
    %s23 = sphi 0, %s20
    %s24 = sphi 0, %s23
    %s40 = sphi 0, %s24
    %s44 = sphi 0, %s44
    %s46 = sphi 0, %s44
    %s47 = sphi 0, %s46
    %s61 = sphi 0, %s47
    %s65 = sphi 0, %s65
    %s67 = sphi 0, %s65
    %s68 = sphi 0, %s67
    %s82 = sphi 0, %s68
    %s86 = sphi 0, %s86
    %s88 = sphi 0, %s86
    %s89 = sphi 0, %s88
    %s103 = sphi 0, %s89
    %s109 = sphi 0, %s111
    %s112 = sphi 0, %s109
    %s113 = sphi 0, %s112
    %s129 = sphi 0, %s113
  $region4: #{c1_forward.3} parent=0 // loop_header_branch
    %13 = sbr.rel (%p11) target = $region8
  $region5: #{c1_forward.3} parent=0 // loop_body
    %s15 = ssub.s32 %s10, 1
    %s16 = ssub.s32 %s10, 2
    %s17 = sadd.s32 %s10, 1
    %s18 = ssub.s32 %s10, %s17
    %p19 = scmp.eq.s32.totalorder %s18, 0
    %s21 = sadd.s32 %s20, 1
    %s22 = scalar_select %p19, %s20, %s21
    %p25 = pneg %p19
    %p26 = scmp.eq.s32.totalorder %s10, 1
    %p27 = por %p25, %p26
    %p28 = scmp.ne.s32.totalorder %s20, %s23
    %p29 = scmp.eq.s32.totalorder %s10, 0
    %p30 = por %p28, %p29
    %p31 = scmp.ne.s32.totalorder %s20, %s23
    %p32 = scmp.eq.s32.totalorder %s15, 1
    %p33 = por %p31, %p32
    %p34 = scmp.ne.s32.totalorder %s23, %s24
    %p35 = scmp.eq.s32.totalorder %s15, 0
    %p36 = por %p34, %p35
    %p37 = scmp.ne.s32.totalorder %s23, %s24
    %p38 = scmp.eq.s32.totalorder %s16, 1
    %p39 = por %p37, %p38
    %p41 = scmp.ne.s32.totalorder %s24, %s40
    %p42 = scmp.eq.s32.totalorder %s16, 0
    %p43 = por %p41, %p42
    %s45 = sadd.s32 %s44, 1
    %p48 = scmp.eq.s32.totalorder %s10, 1
    %p49 = scmp.ne.s32.totalorder %s44, %s46
    %p50 = scmp.eq.s32.totalorder %s10, 0
    %p51 = por %p49, %p50
    %p52 = scmp.ne.s32.totalorder %s44, %s46
    %p53 = scmp.eq.s32.totalorder %s15, 1
    %p54 = por %p52, %p53
    %p55 = scmp.ne.s32.totalorder %s46, %s47
    %p56 = scmp.eq.s32.totalorder %s15, 0
    %p57 = por %p55, %p56
    %p58 = scmp.ne.s32.totalorder %s46, %s47
    %p59 = scmp.eq.s32.totalorder %s16, 1
    %p60 = por %p58, %p59
    %p62 = scmp.ne.s32.totalorder %s47, %s61
    %p63 = scmp.eq.s32.totalorder %s16, 0
    %p64 = por %p62, %p63
    %s66 = sadd.s32 %s65, 1
    %p69 = scmp.eq.s32.totalorder %s10, 1
    %p70 = scmp.ne.s32.totalorder %s65, %s67
    %p71 = scmp.eq.s32.totalorder %s10, 0
    %p72 = por %p70, %p71
    %p73 = scmp.ne.s32.totalorder %s65, %s67
    %p74 = scmp.eq.s32.totalorder %s15, 1
    %p75 = por %p73, %p74
    %p76 = scmp.ne.s32.totalorder %s67, %s68
    %p77 = scmp.eq.s32.totalorder %s15, 0
    %p78 = por %p76, %p77
    %p79 = scmp.ne.s32.totalorder %s67, %s68
    %p80 = scmp.eq.s32.totalorder %s16, 1
    %p81 = por %p79, %p80
    %p83 = scmp.ne.s32.totalorder %s68, %s82
    %p84 = scmp.eq.s32.totalorder %s16, 0
    %p85 = por %p83, %p84
    %s87 = sadd.s32 %s86, 1
    %p90 = scmp.eq.s32.totalorder %s10, 1
    %p91 = scmp.ne.s32.totalorder %s86, %s88
    %p92 = scmp.eq.s32.totalorder %s10, 0
    %p93 = por %p91, %p92
    %p94 = scmp.ne.s32.totalorder %s86, %s88
    %p95 = scmp.eq.s32.totalorder %s15, 1
    %p96 = por %p94, %p95
    %p97 = scmp.ne.s32.totalorder %s88, %s89
    %p98 = scmp.eq.s32.totalorder %s15, 0
    %p99 = por %p97, %p98
    %p100 = scmp.ne.s32.totalorder %s88, %s89
    %p101 = scmp.eq.s32.totalorder %s16, 1
    %p102 = por %p100, %p101
    %p104 = scmp.ne.s32.totalorder %s89, %s103
    %p105 = scmp.eq.s32.totalorder %s16, 0
    %p106 = por %p104, %p105
    %s107 = ssub.s32 %s10, %s17
    %p108 = scmp.eq.s32.totalorder %s107, 0
    %s110 = sadd.s32 %s109, 1
    %s111 = scalar_select %p108, %s109, %s110
    %p114 = pneg %p108
    %p115 = scmp.eq.s32.totalorder %s10, 1
    %p116 = por %p114, %p115
    %p117 = scmp.ne.s32.totalorder %s109, %s112
    %p118 = scmp.eq.s32.totalorder %s10, 0
    %p119 = por %p117, %p118
    %p120 = scmp.ne.s32.totalorder %s109, %s112
    %p121 = scmp.eq.s32.totalorder %s15, 1
    %p122 = por %p120, %p121
    %p123 = scmp.ne.s32.totalorder %s112, %s113
    %p124 = scmp.eq.s32.totalorder %s15, 0
    %p125 = por %p123, %p124
    %p126 = scmp.ne.s32.totalorder %s112, %s113
    %p127 = scmp.eq.s32.totalorder %s16, 1
    %p128 = por %p126, %p127
    %p130 = scmp.ne.s32.totalorder %s113, %s129
    %p131 = scmp.eq.s32.totalorder %s16, 0
    %p132 = por %p130, %p131
    %p133 = scmp.le.s32.totalorder 1, %s10
    %p134 = scmp.lt.s32.totalorder %s10, 3
    %p135 = pnand %p133, %p134
    %p136 = pneg %p135
    // Predicated region
    $region9: #{c1_forward.3} parent=5 // pred_check
      _
    $region10: #{c1_forward.3} parent=5 // pred_check_branch
      %138 = sbr.rel (%p135) target = $region12
    $region11: #{c1_forward.3} parent=5 // pred_region
      %s139 = ssub.s32 %s10, 1
      // Predicated region
      $region13: #{c1_forward.3} parent=11 // pred_check
        %p140 = pneg %p57
      $region14: #{c1_forward.3} parent=11 // pred_check_branch
        %142 = sbr.rel (%p140) target = $region16
      $region15: #{c1_forward.3} parent=11 // pred_region
        _
      $region16: #{c1_forward.3} parent=11 // pred_fallthru
        _
      // Predicated region
      $region17: #{c1_forward.3} parent=11 // pred_check
        %p143 = pneg %p78
      $region18: #{c1_forward.3} parent=11 // pred_check_branch
        %145 = sbr.rel (%p143) target = $region20
      $region19: #{c1_forward.3} parent=11 // pred_region
        _
      $region20: #{c1_forward.3} parent=11 // pred_fallthru
        _
      // Predicated region
      $region21: #{c1_forward.3} parent=11 // pred_check
        %p146 = pneg %p99
      $region22: #{c1_forward.3} parent=11 // pred_check_branch
        %148 = sbr.rel (%p146) target = $region24
      $region23: #{c1_forward.3} parent=11 // pred_region
        _
      $region24: #{c1_forward.3} parent=11 // pred_fallthru
        _
    $region12: #{c1_forward.3} parent=5 // pred_fallthru
      _
    %p149 = scmp.lt.s32.totalorder %s10, 2
    // Predicated region
    $region25: #{c1_forward.3} parent=5 // pred_check
      %p150 = pneg %p149
    $region26: #{c1_forward.3} parent=5 // pred_check_branch
      %152 = sbr.rel (%p150) target = $region28
    $region27: #{c1_forward.3} parent=5 // pred_region
      // Predicated region
      $region29: #{c1_forward.3} parent=27 // pred_check
        %p153 = pneg %p30
      $region30: #{c1_forward.3} parent=27 // pred_check_branch
        %155 = sbr.rel (%p153) target = $region32
      $region31: #{c1_forward.3} parent=27 // pred_region
        %p156 = scmp.lt.s32.totalorder %s10, 1
        %s157 = scalar_select %p156, %s10, 1
        %s158 = smul.addr %s157, 32
        %s159 = smul.addr %s158, 8
        %s160 = scalar_lea.vmem %s0, %s159
      $region32: #{c1_forward.3} parent=27 // pred_fallthru
        _
    $region28: #{c1_forward.3} parent=5 // pred_fallthru
      _
    %p161 = scmp.le.s32.totalorder 1, %s10
    %p162 = scmp.lt.s32.totalorder %s10, 3
    %p163 = pnand %p161, %p162
    %p164 = pneg %p163
    // Predicated region
    $region33: #{c1_forward.3} parent=5 // pred_check
      _
    $region34: #{c1_forward.3} parent=5 // pred_check_branch
      %166 = sbr.rel (%p163) target = $region36
    $region35: #{c1_forward.3} parent=5 // pred_region
      %s167 = ssub.s32 %s10, 1
      %p168 = scmp.lt.s32.totalorder %s15, 1
      %s169 = scalar_select %p168, %s15, 1
      %s170 = smul.addr %s169, 32
      %s171 = smul.addr %s170, 8
      %s172 = scalar_lea.vmem %s0, %s171
      %p173 = pneg %p36
      %p174 = pneg %p33
      %p175 = pneg %p57
      %p176 = pneg %p54
      %p177 = pneg %p78
      %p178 = pneg %p75
      %p179 = pneg %p99
      %p180 = pneg %p96
      %p181 = pneg %p125
      %p182 = pneg %p122
      %p183 = scmp.lt.s32.totalorder %s15, 1
      %s184 = scalar_select %p183, %s15, 1
      %s185 = smul.addr %s184, 32
      %s186 = smul.addr %s185, 8
      %s187 = scalar_lea.vmem %s4, %s186
      %p188 = scmp.lt.s32.totalorder %s15, 1
      %s189 = scalar_select %p188, %s15, 1
      %s190 = smul.addr %s189, 32
      %s191 = smul.addr %s190, 8
      %s192 = scalar_lea.vmem %s0, %s191
      %p193 = scmp.lt.s32.totalorder %s15, 1
      %s194 = scalar_select %p193, %s15, 1
      %s195 = smul.addr %s194, 32
      %s196 = smul.addr %s195, 8
      %s197 = scalar_lea.vmem %s4, %s196
      %vm198 = vcmask 64512
      %199 = vst.msk [vmem:[#allocation2] sm:$0xff] %vm198, 0.0
      %200 = vst.msk [vmem:[#allocation2 + $0x8] sm:$0xff] %vm198, 0.0
      %vm201 = vcmask 57344
      %202 = vst.msk [vmem:[#allocation2 + $0x10] sm:$0x1] %vm201, 0.0
      %203 = vst.msk [vmem:[#allocation2 + $0x111] sm:$0xff] %vm198, 0.0
      %204 = vst.msk [vmem:[#allocation2 + $0x119] sm:$0xff] %vm198, 0.0
      %205 = vst.msk [vmem:[#allocation2 + $0x121] sm:$0x1] %vm201, 0.0
      %v206 = vld [vmem:[%s192] sm:$0xff]
      %v207 = vld [vmem:[%s192 + $0x8] sm:$0xff]
      %v208 = vld [vmem:[%s192 + $0x10] sm:$0xff]
      %v209 = vld [vmem:[%s192 + $0x18] sm:$0xff]
      %v210 = vld [vmem:[%s192 + $0x20] sm:$0xff]
      %v211 = vld [vmem:[%s192 + $0x28] sm:$0xff]
      %v212 = vld [vmem:[%s192 + $0x30] sm:$0xff]
      %v213 = vld [vmem:[%s192 + $0x38] sm:$0xff]
      %v214 = vld [vmem:[%s192 + $0x40] sm:$0xff]
      %v215 = vld [vmem:[%s192 + $0x48] sm:$0xff]
      %v216 = vld [vmem:[%s192 + $0x50] sm:$0xff]
      %v217 = vld [vmem:[%s192 + $0x58] sm:$0xff]
      %v218 = vld [vmem:[%s192 + $0x60] sm:$0xff]
      %v219 = vld [vmem:[%s192 + $0x68] sm:$0xff]
      %v220 = vld [vmem:[%s192 + $0x70] sm:$0xff]
      %v221 = vld [vmem:[%s192 + $0x78] sm:$0xff]
      %v222 = vld [vmem:[%s192 + $0x80] sm:$0xff]
      %v223 = vld [vmem:[%s192 + $0x88] sm:$0xff]
      %v224 = vld [vmem:[%s192 + $0x90] sm:$0xff]
      %v225 = vld [vmem:[%s192 + $0x98] sm:$0xff]
      %v226 = vld [vmem:[%s192 + $0xa0] sm:$0xff]
      %v227 = vld [vmem:[%s192 + $0xa8] sm:$0xff]
      %v228 = vld [vmem:[%s192 + $0xb0] sm:$0xff]
      %v229 = vld [vmem:[%s192 + $0xb8] sm:$0xff]
      %v230 = vld [vmem:[%s192 + $0xc0] sm:$0xff]
      %v231 = vld [vmem:[%s192 + $0xc8] sm:$0xff]
      %v232 = vld [vmem:[%s192 + $0xd0] sm:$0xff]
      %v233 = vld [vmem:[%s192 + $0xd8] sm:$0xff]
      %v234 = vld [vmem:[%s192 + $0xe0] sm:$0xff]
      %v235 = vld [vmem:[%s192 + $0xe8] sm:$0xff]
      %v236 = vld [vmem:[%s192 + $0xf0] sm:$0xff]
      %v237 = vld [vmem:[%s192 + $0xf8] sm:$0xff]
      %238 = vst.msk [vmem:[#allocation2 + $0x11] sm:$0xff] %vm198, %v206
      %239 = vst.msk [vmem:[#allocation2 + $0x19] sm:$0xff] %vm198, %v207
      %240 = vst.msk [vmem:[#allocation2 + $0x21] sm:$0xff] %vm198, %v208
      %241 = vst.msk [vmem:[#allocation2 + $0x29] sm:$0xff] %vm198, %v209
      %242 = vst.msk [vmem:[#allocation2 + $0x31] sm:$0xff] %vm198, %v210
      %243 = vst.msk [vmem:[#allocation2 + $0x39] sm:$0xff] %vm198, %v211
      %244 = vst.msk [vmem:[#allocation2 + $0x41] sm:$0xff] %vm198, %v212
      %245 = vst.msk [vmem:[#allocation2 + $0x49] sm:$0xff] %vm198, %v213
      %246 = vst.msk [vmem:[#allocation2 + $0x51] sm:$0xff] %vm198, %v214
      %247 = vst.msk [vmem:[#allocation2 + $0x59] sm:$0xff] %vm198, %v215
      %248 = vst.msk [vmem:[#allocation2 + $0x61] sm:$0xff] %vm198, %v216
      %249 = vst.msk [vmem:[#allocation2 + $0x69] sm:$0xff] %vm198, %v217
      %250 = vst.msk [vmem:[#allocation2 + $0x71] sm:$0xff] %vm198, %v218
      %251 = vst.msk [vmem:[#allocation2 + $0x79] sm:$0xff] %vm198, %v219
      %252 = vst.msk [vmem:[#allocation2 + $0x81] sm:$0xff] %vm198, %v220
      %253 = vst.msk [vmem:[#allocation2 + $0x89] sm:$0xff] %vm198, %v221
      %254 = vst.msk [vmem:[#allocation2 + $0x91] sm:$0xff] %vm198, %v222
      %255 = vst.msk [vmem:[#allocation2 + $0x99] sm:$0xff] %vm198, %v223
      %256 = vst.msk [vmem:[#allocation2 + $0xa1] sm:$0xff] %vm198, %v224
      %257 = vst.msk [vmem:[#allocation2 + $0xa9] sm:$0xff] %vm198, %v225
      %258 = vst.msk [vmem:[#allocation2 + $0xb1] sm:$0xff] %vm198, %v226
      %259 = vst.msk [vmem:[#allocation2 + $0xb9] sm:$0xff] %vm198, %v227
      %260 = vst.msk [vmem:[#allocation2 + $0xc1] sm:$0xff] %vm198, %v228
      %261 = vst.msk [vmem:[#allocation2 + $0xc9] sm:$0xff] %vm198, %v229
      %262 = vst.msk [vmem:[#allocation2 + $0xd1] sm:$0xff] %vm198, %v230
      %263 = vst.msk [vmem:[#allocation2 + $0xd9] sm:$0xff] %vm198, %v231
      %264 = vst.msk [vmem:[#allocation2 + $0xe1] sm:$0xff] %vm198, %v232
      %265 = vst.msk [vmem:[#allocation2 + $0xe9] sm:$0xff] %vm198, %v233
      %266 = vst.msk [vmem:[#allocation2 + $0xf1] sm:$0xff] %vm198, %v234
      %267 = vst.msk [vmem:[#allocation2 + $0xf9] sm:$0xff] %vm198, %v235
      %268 = vst.msk [vmem:[#allocation2 + $0x101] sm:$0xff] %vm198, %v236
      %269 = vst.msk [vmem:[#allocation2 + $0x109] sm:$0xff] %vm198, %v237
      %v270 = vlaneseq
      %v271 = vshrl.u32 %v270, 7
      %v272 = vadd.s32 %v271, 8
      %v273 = vadd.s32 %v271, 16
      %v274 = vadd.s32 %v271, 24
      %v275 = vadd.s32 %v271, 32
      %v276 = vadd.s32 %v271, 40
      %v277 = vadd.s32 %v271, 48
      %v278 = vadd.s32 %v271, 56
      %v279 = vadd.s32 %v271, 64
      %v280 = vadd.s32 %v271, 72
      %v281 = vadd.s32 %v271, 80
      %v282 = vadd.s32 %v271, 88
      %v283 = vadd.s32 %v271, 96
      %v284 = vadd.s32 %v271, 104
      %v285 = vadd.s32 %v271, 112
      %v286 = vadd.s32 %v271, 120
      %v287 = vadd.s32 %v271, 128
      %v288 = vadd.s32 %v271, 136
      %v289 = vadd.s32 %v271, 144
      %v290 = vadd.s32 %v271, 152
      %v291 = vadd.s32 %v271, 160
      %v292 = vadd.s32 %v271, 168
      %v293 = vadd.s32 %v271, 176
      %v294 = vadd.s32 %v271, 184
      %v295 = vadd.s32 %v271, 192
      %v296 = vadd.s32 %v271, 200
      %v297 = vadd.s32 %v271, 208
      %v298 = vadd.s32 %v271, 216
      %v299 = vadd.s32 %v271, 224
      %v300 = vadd.s32 %v271, 232
      %v301 = vadd.s32 %v271, 240
      %v302 = vadd.s32 %v271, 248
      %vm303 = vcmp.lt.s32.totalorder %v271, 0
      %v304 = vsub.s32 0, %v271
      %v305 = vsel %vm303, %v304, %v271
      %v306 = vshrl.u32 %v305, 4
      %v307 = vand.u32 %v305, 15
      %v308 = vsub.s32 0, %v307
      %v309 = vsel %vm303, %v308, %v307
      %vm310 = vcmp.lt.s32.totalorder %v272, 0
      %v311 = vsub.s32 0, %v272
      %v312 = vsel %vm310, %v311, %v272
      %v313 = vshrl.u32 %v312, 4
      %v314 = vand.u32 %v312, 15
      %v315 = vsub.s32 0, %v314
      %v316 = vsel %vm310, %v315, %v314
      %vm317 = vcmp.lt.s32.totalorder %v273, 0
      %v318 = vsub.s32 0, %v273
      %v319 = vsel %vm317, %v318, %v273
      %v320 = vshrl.u32 %v319, 4
      %v321 = vand.u32 %v319, 15
      %v322 = vsub.s32 0, %v321
      %v323 = vsel %vm317, %v322, %v321
      %vm324 = vcmp.lt.s32.totalorder %v274, 0
      %v325 = vsub.s32 0, %v274
      %v326 = vsel %vm324, %v325, %v274
      %v327 = vshrl.u32 %v326, 4
      %v328 = vand.u32 %v326, 15
      %v329 = vsub.s32 0, %v328
      %v330 = vsel %vm324, %v329, %v328
      %vm331 = vcmp.lt.s32.totalorder %v275, 0
      %v332 = vsub.s32 0, %v275
      %v333 = vsel %vm331, %v332, %v275
      %v334 = vshrl.u32 %v333, 4
      %v335 = vand.u32 %v333, 15
      %v336 = vsub.s32 0, %v335
      %v337 = vsel %vm331, %v336, %v335
      %vm338 = vcmp.lt.s32.totalorder %v276, 0
      %v339 = vsub.s32 0, %v276
      %v340 = vsel %vm338, %v339, %v276
      %v341 = vshrl.u32 %v340, 4
      %v342 = vand.u32 %v340, 15
      %v343 = vsub.s32 0, %v342
      %v344 = vsel %vm338, %v343, %v342
      %vm345 = vcmp.lt.s32.totalorder %v277, 0
      %v346 = vsub.s32 0, %v277
      %v347 = vsel %vm345, %v346, %v277
      %v348 = vshrl.u32 %v347, 4
      %v349 = vand.u32 %v347, 15
      %v350 = vsub.s32 0, %v349
      %v351 = vsel %vm345, %v350, %v349
      %vm352 = vcmp.lt.s32.totalorder %v278, 0
      %v353 = vsub.s32 0, %v278
      %v354 = vsel %vm352, %v353, %v278
      %v355 = vshrl.u32 %v354, 4
      %v356 = vand.u32 %v354, 15
      %v357 = vsub.s32 0, %v356
      %v358 = vsel %vm352, %v357, %v356
      %vm359 = vcmp.lt.s32.totalorder %v279, 0
      %v360 = vsub.s32 0, %v279
      %v361 = vsel %vm359, %v360, %v279
      %v362 = vshrl.u32 %v361, 4
      %v363 = vand.u32 %v361, 15
      %v364 = vsub.s32 0, %v363
      %v365 = vsel %vm359, %v364, %v363
      %vm366 = vcmp.lt.s32.totalorder %v280, 0
      %v367 = vsub.s32 0, %v280
      %v368 = vsel %vm366, %v367, %v280
      %v369 = vshrl.u32 %v368, 4
      %v370 = vand.u32 %v368, 15
      %v371 = vsub.s32 0, %v370
      %v372 = vsel %vm366, %v371, %v370
      %vm373 = vcmp.lt.s32.totalorder %v281, 0
      %v374 = vsub.s32 0, %v281
      %v375 = vsel %vm373, %v374, %v281
      %v376 = vshrl.u32 %v375, 4
      %v377 = vand.u32 %v375, 15
      %v378 = vsub.s32 0, %v377
      %v379 = vsel %vm373, %v378, %v377
      %vm380 = vcmp.lt.s32.totalorder %v282, 0
      %v381 = vsub.s32 0, %v282
      %v382 = vsel %vm380, %v381, %v282
      %v383 = vshrl.u32 %v382, 4
      %v384 = vand.u32 %v382, 15
      %v385 = vsub.s32 0, %v384
      %v386 = vsel %vm380, %v385, %v384
      %vm387 = vcmp.lt.s32.totalorder %v283, 0
      %v388 = vsub.s32 0, %v283
      %v389 = vsel %vm387, %v388, %v283
      %v390 = vshrl.u32 %v389, 4
      %v391 = vand.u32 %v389, 15
      %v392 = vsub.s32 0, %v391
      %v393 = vsel %vm387, %v392, %v391
      %vm394 = vcmp.lt.s32.totalorder %v284, 0
      %v395 = vsub.s32 0, %v284
      %v396 = vsel %vm394, %v395, %v284
      %v397 = vshrl.u32 %v396, 4
      %v398 = vand.u32 %v396, 15
      %v399 = vsub.s32 0, %v398
      %v400 = vsel %vm394, %v399, %v398
      %vm401 = vcmp.lt.s32.totalorder %v285, 0
      %v402 = vsub.s32 0, %v285
      %v403 = vsel %vm401, %v402, %v285
      %v404 = vshrl.u32 %v403, 4
      %v405 = vand.u32 %v403, 15
      %v406 = vsub.s32 0, %v405
      %v407 = vsel %vm401, %v406, %v405
      %vm408 = vcmp.lt.s32.totalorder %v286, 0
      %v409 = vsub.s32 0, %v286
      %v410 = vsel %vm408, %v409, %v286
      %v411 = vshrl.u32 %v410, 4
      %v412 = vand.u32 %v410, 15
      %v413 = vsub.s32 0, %v412
      %v414 = vsel %vm408, %v413, %v412
      %vm415 = vcmp.lt.s32.totalorder %v287, 0
      %v416 = vsub.s32 0, %v287
      %v417 = vsel %vm415, %v416, %v287
      %v418 = vshrl.u32 %v417, 4
      %v419 = vand.u32 %v417, 15
      %v420 = vsub.s32 0, %v419
      %v421 = vsel %vm415, %v420, %v419
      %vm422 = vcmp.lt.s32.totalorder %v288, 0
      %v423 = vsub.s32 0, %v288
      %v424 = vsel %vm422, %v423, %v288
      %v425 = vshrl.u32 %v424, 4
      %v426 = vand.u32 %v424, 15
      %v427 = vsub.s32 0, %v426
      %v428 = vsel %vm422, %v427, %v426
      %vm429 = vcmp.lt.s32.totalorder %v289, 0
      %v430 = vsub.s32 0, %v289
      %v431 = vsel %vm429, %v430, %v289
      %v432 = vshrl.u32 %v431, 4
      %v433 = vand.u32 %v431, 15
      %v434 = vsub.s32 0, %v433
      %v435 = vsel %vm429, %v434, %v433
      %vm436 = vcmp.lt.s32.totalorder %v290, 0
      %v437 = vsub.s32 0, %v290
      %v438 = vsel %vm436, %v437, %v290
      %v439 = vshrl.u32 %v438, 4
      %v440 = vand.u32 %v438, 15
      %v441 = vsub.s32 0, %v440
      %v442 = vsel %vm436, %v441, %v440
      %vm443 = vcmp.lt.s32.totalorder %v291, 0
      %v444 = vsub.s32 0, %v291
      %v445 = vsel %vm443, %v444, %v291
      %v446 = vshrl.u32 %v445, 4
      %v447 = vand.u32 %v445, 15
      %v448 = vsub.s32 0, %v447
      %v449 = vsel %vm443, %v448, %v447
      %vm450 = vcmp.lt.s32.totalorder %v292, 0
      %v451 = vsub.s32 0, %v292
      %v452 = vsel %vm450, %v451, %v292
      %v453 = vshrl.u32 %v452, 4
      %v454 = vand.u32 %v452, 15
      %v455 = vsub.s32 0, %v454
      %v456 = vsel %vm450, %v455, %v454
      %vm457 = vcmp.lt.s32.totalorder %v293, 0
      %v458 = vsub.s32 0, %v293
      %v459 = vsel %vm457, %v458, %v293
      %v460 = vshrl.u32 %v459, 4
      %v461 = vand.u32 %v459, 15
      %v462 = vsub.s32 0, %v461
      %v463 = vsel %vm457, %v462, %v461
      %vm464 = vcmp.lt.s32.totalorder %v294, 0
      %v465 = vsub.s32 0, %v294
      %v466 = vsel %vm464, %v465, %v294
      %v467 = vshrl.u32 %v466, 4
      %v468 = vand.u32 %v466, 15
      %v469 = vsub.s32 0, %v468
      %v470 = vsel %vm464, %v469, %v468
      %vm471 = vcmp.lt.s32.totalorder %v295, 0
      %v472 = vsub.s32 0, %v295
      %v473 = vsel %vm471, %v472, %v295
      %v474 = vshrl.u32 %v473, 4
      %v475 = vand.u32 %v473, 15
      %v476 = vsub.s32 0, %v475
      %v477 = vsel %vm471, %v476, %v475
      %vm478 = vcmp.lt.s32.totalorder %v296, 0
      %v479 = vsub.s32 0, %v296
      %v480 = vsel %vm478, %v479, %v296
      %v481 = vshrl.u32 %v480, 4
      %v482 = vand.u32 %v480, 15
      %v483 = vsub.s32 0, %v482
      %v484 = vsel %vm478, %v483, %v482
      %vm485 = vcmp.lt.s32.totalorder %v297, 0
      %v486 = vsub.s32 0, %v297
      %v487 = vsel %vm485, %v486, %v297
      %v488 = vshrl.u32 %v487, 4
      %v489 = vand.u32 %v487, 15
      %v490 = vsub.s32 0, %v489
      %v491 = vsel %vm485, %v490, %v489
      %vm492 = vcmp.lt.s32.totalorder %v298, 0
      %v493 = vsub.s32 0, %v298
      %v494 = vsel %vm492, %v493, %v298
      %v495 = vshrl.u32 %v494, 4
      %v496 = vand.u32 %v494, 15
      %v497 = vsub.s32 0, %v496
      %v498 = vsel %vm492, %v497, %v496
      %vm499 = vcmp.lt.s32.totalorder %v299, 0
      %v500 = vsub.s32 0, %v299
      %v501 = vsel %vm499, %v500, %v299
      %v502 = vshrl.u32 %v501, 4
      %v503 = vand.u32 %v501, 15
      %v504 = vsub.s32 0, %v503
      %v505 = vsel %vm499, %v504, %v503
      %vm506 = vcmp.lt.s32.totalorder %v300, 0
      %v507 = vsub.s32 0, %v300
      %v508 = vsel %vm506, %v507, %v300
      %v509 = vshrl.u32 %v508, 4
      %v510 = vand.u32 %v508, 15
      %v511 = vsub.s32 0, %v510
      %v512 = vsel %vm506, %v511, %v510
      %vm513 = vcmp.lt.s32.totalorder %v301, 0
      %v514 = vsub.s32 0, %v301
      %v515 = vsel %vm513, %v514, %v301
      %v516 = vshrl.u32 %v515, 4
      %v517 = vand.u32 %v515, 15
      %v518 = vsub.s32 0, %v517
      %v519 = vsel %vm513, %v518, %v517
      %vm520 = vcmp.lt.s32.totalorder %v302, 0
      %v521 = vsub.s32 0, %v302
      %v522 = vsel %vm520, %v521, %v302
      %v523 = vshrl.u32 %v522, 4
      %v524 = vand.u32 %v522, 15
      %v525 = vsub.s32 0, %v524
      %v526 = vsel %vm520, %v525, %v524
      %vm527 = vcmp.ne.s32.totalorder %v309, 0
      %vm528 = vcmp.ne.s32.totalorder %v316, 0
      %vm529 = vcmp.ne.s32.totalorder %v323, 0
      %vm530 = vcmp.ne.s32.totalorder %v330, 0
      %vm531 = vcmp.ne.s32.totalorder %v337, 0
      %vm532 = vcmp.ne.s32.totalorder %v344, 0
      %vm533 = vcmp.ne.s32.totalorder %v351, 0
      %vm534 = vcmp.ne.s32.totalorder %v358, 0
      %vm535 = vcmp.ne.s32.totalorder %v365, 0
      %vm536 = vcmp.ne.s32.totalorder %v372, 0
      %vm537 = vcmp.ne.s32.totalorder %v379, 0
      %vm538 = vcmp.ne.s32.totalorder %v386, 0
      %vm539 = vcmp.ne.s32.totalorder %v393, 0
      %vm540 = vcmp.ne.s32.totalorder %v400, 0
      %vm541 = vcmp.ne.s32.totalorder %v407, 0
      %vm542 = vcmp.ne.s32.totalorder %v414, 0
      %vm543 = vcmp.ne.s32.totalorder %v421, 0
      %vm544 = vcmp.ne.s32.totalorder %v428, 0
      %vm545 = vcmp.ne.s32.totalorder %v435, 0
      %vm546 = vcmp.ne.s32.totalorder %v442, 0
      %vm547 = vcmp.ne.s32.totalorder %v449, 0
      %vm548 = vcmp.ne.s32.totalorder %v456, 0
      %vm549 = vcmp.ne.s32.totalorder %v463, 0
      %vm550 = vcmp.ne.s32.totalorder %v470, 0
      %vm551 = vcmp.ne.s32.totalorder %v477, 0
      %vm552 = vcmp.ne.s32.totalorder %v484, 0
      %vm553 = vcmp.ne.s32.totalorder %v491, 0
      %vm554 = vcmp.ne.s32.totalorder %v498, 0
      %vm555 = vcmp.ne.s32.totalorder %v505, 0
      %vm556 = vcmp.ne.s32.totalorder %v512, 0
      %vm557 = vcmp.ne.s32.totalorder %v519, 0
      %vm558 = vcmp.ne.s32.totalorder %v526, 0
      %vm559 = vcmp.lt.s32.totalorder %v309, 0
      %vm560 = vcmp.lt.s32.totalorder %v316, 0
      %vm561 = vcmp.lt.s32.totalorder %v323, 0
      %vm562 = vcmp.lt.s32.totalorder %v330, 0
      %vm563 = vcmp.lt.s32.totalorder %v337, 0
      %vm564 = vcmp.lt.s32.totalorder %v344, 0
      %vm565 = vcmp.lt.s32.totalorder %v351, 0
      %vm566 = vcmp.lt.s32.totalorder %v358, 0
      %vm567 = vcmp.lt.s32.totalorder %v365, 0
      %vm568 = vcmp.lt.s32.totalorder %v372, 0
      %vm569 = vcmp.lt.s32.totalorder %v379, 0
      %vm570 = vcmp.lt.s32.totalorder %v386, 0
      %vm571 = vcmp.lt.s32.totalorder %v393, 0
      %vm572 = vcmp.lt.s32.totalorder %v400, 0
      %vm573 = vcmp.lt.s32.totalorder %v407, 0
      %vm574 = vcmp.lt.s32.totalorder %v414, 0
      %vm575 = vcmp.lt.s32.totalorder %v421, 0
      %vm576 = vcmp.lt.s32.totalorder %v428, 0
      %vm577 = vcmp.lt.s32.totalorder %v435, 0
      %vm578 = vcmp.lt.s32.totalorder %v442, 0
      %vm579 = vcmp.lt.s32.totalorder %v449, 0
      %vm580 = vcmp.lt.s32.totalorder %v456, 0
      %vm581 = vcmp.lt.s32.totalorder %v463, 0
      %vm582 = vcmp.lt.s32.totalorder %v470, 0
      %vm583 = vcmp.lt.s32.totalorder %v477, 0
      %vm584 = vcmp.lt.s32.totalorder %v484, 0
      %vm585 = vcmp.lt.s32.totalorder %v491, 0
      %vm586 = vcmp.lt.s32.totalorder %v498, 0
      %vm587 = vcmp.lt.s32.totalorder %v505, 0
      %vm588 = vcmp.lt.s32.totalorder %v512, 0
      %vm589 = vcmp.lt.s32.totalorder %v519, 0
      %vm590 = vcmp.lt.s32.totalorder %v526, 0
      %vm591 = vmand %vm559, %vm527
      %vm592 = vmand %vm560, %vm528
      %vm593 = vmand %vm561, %vm529
      %vm594 = vmand %vm562, %vm530
      %vm595 = vmand %vm563, %vm531
      %vm596 = vmand %vm564, %vm532
      %vm597 = vmand %vm565, %vm533
      %vm598 = vmand %vm566, %vm534
      %vm599 = vmand %vm567, %vm535
      %vm600 = vmand %vm568, %vm536
      %vm601 = vmand %vm569, %vm537
      %vm602 = vmand %vm570, %vm538
      %vm603 = vmand %vm571, %vm539
      %vm604 = vmand %vm572, %vm540
      %vm605 = vmand %vm573, %vm541
      %vm606 = vmand %vm574, %vm542
      %vm607 = vmand %vm575, %vm543
      %vm608 = vmand %vm576, %vm544
      %vm609 = vmand %vm577, %vm545
      %vm610 = vmand %vm578, %vm546
      %vm611 = vmand %vm579, %vm547
      %vm612 = vmand %vm580, %vm548
      %vm613 = vmand %vm581, %vm549
      %vm614 = vmand %vm582, %vm550
      %vm615 = vmand %vm583, %vm551
      %vm616 = vmand %vm584, %vm552
      %vm617 = vmand %vm585, %vm553
      %vm618 = vmand %vm586, %vm554
      %vm619 = vmand %vm587, %vm555
      %vm620 = vmand %vm588, %vm556
      %vm621 = vmand %vm589, %vm557
      %vm622 = vmand %vm590, %vm558
      %v623 = vadd.s32 %v309, 16
      %v624 = vadd.s32 %v316, 16
      %v625 = vadd.s32 %v323, 16
      %v626 = vadd.s32 %v330, 16
      %v627 = vadd.s32 %v337, 16
      %v628 = vadd.s32 %v344, 16
      %v629 = vadd.s32 %v351, 16
      %v630 = vadd.s32 %v358, 16
      %v631 = vadd.s32 %v365, 16
      %v632 = vadd.s32 %v372, 16
      %v633 = vadd.s32 %v379, 16
      %v634 = vadd.s32 %v386, 16
      %v635 = vadd.s32 %v393, 16
      %v636 = vadd.s32 %v400, 16
      %v637 = vadd.s32 %v407, 16
      %v638 = vadd.s32 %v414, 16
      %v639 = vadd.s32 %v421, 16
      %v640 = vadd.s32 %v428, 16
      %v641 = vadd.s32 %v435, 16
      %v642 = vadd.s32 %v442, 16
      %v643 = vadd.s32 %v449, 16
      %v644 = vadd.s32 %v456, 16
      %v645 = vadd.s32 %v463, 16
      %v646 = vadd.s32 %v470, 16
      %v647 = vadd.s32 %v477, 16
      %v648 = vadd.s32 %v484, 16
      %v649 = vadd.s32 %v491, 16
      %v650 = vadd.s32 %v498, 16
      %v651 = vadd.s32 %v505, 16
      %v652 = vadd.s32 %v512, 16
      %v653 = vadd.s32 %v519, 16
      %v654 = vadd.s32 %v526, 16
      %v655 = vsel %vm591, %v623, %v309
      %v656 = vsel %vm592, %v624, %v316
      %v657 = vsel %vm593, %v625, %v323
      %v658 = vsel %vm594, %v626, %v330
      %v659 = vsel %vm595, %v627, %v337
      %v660 = vsel %vm596, %v628, %v344
      %v661 = vsel %vm597, %v629, %v351
      %v662 = vsel %vm598, %v630, %v358
      %v663 = vsel %vm599, %v631, %v365
      %v664 = vsel %vm600, %v632, %v372
      %v665 = vsel %vm601, %v633, %v379
      %v666 = vsel %vm602, %v634, %v386
      %v667 = vsel %vm603, %v635, %v393
      %v668 = vsel %vm604, %v636, %v400
      %v669 = vsel %vm605, %v637, %v407
      %v670 = vsel %vm606, %v638, %v414
      %v671 = vsel %vm607, %v639, %v421
      %v672 = vsel %vm608, %v640, %v428
      %v673 = vsel %vm609, %v641, %v435
      %v674 = vsel %vm610, %v642, %v442
      %v675 = vsel %vm611, %v643, %v449
      %v676 = vsel %vm612, %v644, %v456
      %v677 = vsel %vm613, %v645, %v463
      %v678 = vsel %vm614, %v646, %v470
      %v679 = vsel %vm615, %v647, %v477
      %v680 = vsel %vm616, %v648, %v484
      %v681 = vsel %vm617, %v649, %v491
      %v682 = vsel %vm618, %v650, %v498
      %v683 = vsel %vm619, %v651, %v505
      %v684 = vsel %vm620, %v652, %v512
      %v685 = vsel %vm621, %v653, %v519
      %v686 = vsel %vm622, %v654, %v526
      %v687 = vld [vmem:[#allocation2] sm:$0xff]
      %v688 = vld [vmem:[#allocation2 + $0x8] sm:$0xff]
      %v689 = vld [vmem:[#allocation2 + $0x10] sm:$0xff]
      %v690 = vld [vmem:[#allocation2 + $0x18] sm:$0xff]
      %v691 = vld [vmem:[#allocation2 + $0x20] sm:$0xff]
      %v692 = vld [vmem:[#allocation2 + $0x28] sm:$0xff]
      %v693 = vld [vmem:[#allocation2 + $0x30] sm:$0xff]
      %v694 = vld [vmem:[#allocation2 + $0x38] sm:$0xff]
      %v695 = vld [vmem:[#allocation2 + $0x40] sm:$0xff]
      %v696 = vld [vmem:[#allocation2 + $0x48] sm:$0xff]
      %v697 = vld [vmem:[#allocation2 + $0x50] sm:$0xff]
      %v698 = vld [vmem:[#allocation2 + $0x58] sm:$0xff]
      %v699 = vld [vmem:[#allocation2 + $0x60] sm:$0xff]
      %v700 = vld [vmem:[#allocation2 + $0x68] sm:$0xff]
      %v701 = vld [vmem:[#allocation2 + $0x70] sm:$0xff]
      %v702 = vld [vmem:[#allocation2 + $0x78] sm:$0xff]
      %v703 = vld [vmem:[#allocation2 + $0x80] sm:$0xff]
      %v704 = vld [vmem:[#allocation2 + $0x88] sm:$0xff]
      %v705 = vld [vmem:[#allocation2 + $0x90] sm:$0xff]
      %v706 = vld [vmem:[#allocation2 + $0x98] sm:$0xff]
      %v707 = vld [vmem:[#allocation2 + $0xa0] sm:$0xff]
      %v708 = vld [vmem:[#allocation2 + $0xa8] sm:$0xff]
      %v709 = vld [vmem:[#allocation2 + $0xb0] sm:$0xff]
      %v710 = vld [vmem:[#allocation2 + $0xb8] sm:$0xff]
      %v711 = vld [vmem:[#allocation2 + $0xc0] sm:$0xff]
      %v712 = vld [vmem:[#allocation2 + $0xc8] sm:$0xff]
      %v713 = vld [vmem:[#allocation2 + $0xd0] sm:$0xff]
      %v714 = vld [vmem:[#allocation2 + $0xd8] sm:$0xff]
      %v715 = vld [vmem:[#allocation2 + $0xe0] sm:$0xff]
      %v716 = vld [vmem:[#allocation2 + $0xe8] sm:$0xff]
      %v717 = vld [vmem:[#allocation2 + $0xf0] sm:$0xff]
      %v718 = vld [vmem:[#allocation2 + $0xf8] sm:$0xff]
      %vm719 = vcmp.ne.s32.totalorder %v655, 0
      %vm720 = vcmp.ne.s32.totalorder %v656, 0
      %vm721 = vcmp.ne.s32.totalorder %v657, 0
      %vm722 = vcmp.ne.s32.totalorder %v658, 0
      %vm723 = vcmp.ne.s32.totalorder %v659, 0
      %vm724 = vcmp.ne.s32.totalorder %v660, 0
      %vm725 = vcmp.ne.s32.totalorder %v661, 0
      %vm726 = vcmp.ne.s32.totalorder %v662, 0
      %vm727 = vcmp.ne.s32.totalorder %v663, 0
      %vm728 = vcmp.ne.s32.totalorder %v664, 0
      %vm729 = vcmp.ne.s32.totalorder %v665, 0
      %vm730 = vcmp.ne.s32.totalorder %v666, 0
      %vm731 = vcmp.ne.s32.totalorder %v667, 0
      %vm732 = vcmp.ne.s32.totalorder %v668, 0
      %vm733 = vcmp.ne.s32.totalorder %v669, 0
      %vm734 = vcmp.ne.s32.totalorder %v670, 0
      %vm735 = vcmp.ne.s32.totalorder %v671, 0
      %vm736 = vcmp.ne.s32.totalorder %v672, 0
      %vm737 = vcmp.ne.s32.totalorder %v673, 0
      %vm738 = vcmp.ne.s32.totalorder %v674, 0
      %vm739 = vcmp.ne.s32.totalorder %v675, 0
      %vm740 = vcmp.ne.s32.totalorder %v676, 0
      %vm741 = vcmp.ne.s32.totalorder %v677, 0
      %vm742 = vcmp.ne.s32.totalorder %v678, 0
      %vm743 = vcmp.ne.s32.totalorder %v679, 0
      %vm744 = vcmp.ne.s32.totalorder %v680, 0
      %vm745 = vcmp.ne.s32.totalorder %v681, 0
      %vm746 = vcmp.ne.s32.totalorder %v682, 0
      %vm747 = vcmp.ne.s32.totalorder %v683, 0
      %vm748 = vcmp.ne.s32.totalorder %v684, 0
      %vm749 = vcmp.ne.s32.totalorder %v685, 0
      %vm750 = vcmp.ne.s32.totalorder %v686, 0
      %v751 = vsel %vm719, 1, 0
      %v752 = vsel %vm720, 1, 0
      %v753 = vsel %vm721, 1, 0
      %v754 = vsel %vm722, 1, 0
      %v755 = vsel %vm723, 1, 0
      %v756 = vsel %vm724, 1, 0
      %v757 = vsel %vm725, 1, 0
      %v758 = vsel %vm726, 1, 0
      %v759 = vsel %vm727, 1, 0
      %v760 = vsel %vm728, 1, 0
      %v761 = vsel %vm729, 1, 0
      %v762 = vsel %vm730, 1, 0
      %v763 = vsel %vm731, 1, 0
      %v764 = vsel %vm732, 1, 0
      %v765 = vsel %vm733, 1, 0
      %v766 = vsel %vm734, 1, 0
      %v767 = vsel %vm735, 1, 0
      %v768 = vsel %vm736, 1, 0
      %v769 = vsel %vm737, 1, 0
      %v770 = vsel %vm738, 1, 0
      %v771 = vsel %vm739, 1, 0
      %v772 = vsel %vm740, 1, 0
      %v773 = vsel %vm741, 1, 0
      %v774 = vsel %vm742, 1, 0
      %v775 = vsel %vm743, 1, 0
      %v776 = vsel %vm744, 1, 0
      %v777 = vsel %vm745, 1, 0
      %v778 = vsel %vm746, 1, 0
      %v779 = vsel %vm747, 1, 0
      %v780 = vsel %vm748, 1, 0
      %v781 = vsel %vm749, 1, 0
      %v782 = vsel %vm750, 1, 0
      %vm783 = vcmp.eq.s32.totalorder %v751, 1
      %vm784 = vcmp.eq.s32.totalorder %v752, 1
      %vm785 = vcmp.eq.s32.totalorder %v753, 1
      %vm786 = vcmp.eq.s32.totalorder %v754, 1
      %vm787 = vcmp.eq.s32.totalorder %v755, 1
      %vm788 = vcmp.eq.s32.totalorder %v756, 1
      %vm789 = vcmp.eq.s32.totalorder %v757, 1
      %vm790 = vcmp.eq.s32.totalorder %v758, 1
      %vm791 = vcmp.eq.s32.totalorder %v759, 1
      %vm792 = vcmp.eq.s32.totalorder %v760, 1
      %vm793 = vcmp.eq.s32.totalorder %v761, 1
      %vm794 = vcmp.eq.s32.totalorder %v762, 1
      %vm795 = vcmp.eq.s32.totalorder %v763, 1
      %vm796 = vcmp.eq.s32.totalorder %v764, 1
      %vm797 = vcmp.eq.s32.totalorder %v765, 1
      %vm798 = vcmp.eq.s32.totalorder %v766, 1
      %vm799 = vcmp.eq.s32.totalorder %v767, 1
      %vm800 = vcmp.eq.s32.totalorder %v768, 1
      %vm801 = vcmp.eq.s32.totalorder %v769, 1
      %vm802 = vcmp.eq.s32.totalorder %v770, 1
      %vm803 = vcmp.eq.s32.totalorder %v771, 1
      %vm804 = vcmp.eq.s32.totalorder %v772, 1
      %vm805 = vcmp.eq.s32.totalorder %v773, 1
      %vm806 = vcmp.eq.s32.totalorder %v774, 1
      %vm807 = vcmp.eq.s32.totalorder %v775, 1
      %vm808 = vcmp.eq.s32.totalorder %v776, 1
      %vm809 = vcmp.eq.s32.totalorder %v777, 1
      %vm810 = vcmp.eq.s32.totalorder %v778, 1
      %vm811 = vcmp.eq.s32.totalorder %v779, 1
      %vm812 = vcmp.eq.s32.totalorder %v780, 1
      %vm813 = vcmp.eq.s32.totalorder %v781, 1
      %vm814 = vcmp.eq.s32.totalorder %v782, 1
      %v815 = vsel %vm783, %v687, 0.0
      %v816 = vsel %vm784, %v688, 0.0
      %v817 = vsel %vm785, %v689, 0.0
      %v818 = vsel %vm786, %v690, 0.0
      %v819 = vsel %vm787, %v691, 0.0
      %v820 = vsel %vm788, %v692, 0.0
      %v821 = vsel %vm789, %v693, 0.0
      %v822 = vsel %vm790, %v694, 0.0
      %v823 = vsel %vm791, %v695, 0.0
      %v824 = vsel %vm792, %v696, 0.0
      %v825 = vsel %vm793, %v697, 0.0
      %v826 = vsel %vm794, %v698, 0.0
      %v827 = vsel %vm795, %v699, 0.0
      %v828 = vsel %vm796, %v700, 0.0
      %v829 = vsel %vm797, %v701, 0.0
      %v830 = vsel %vm798, %v702, 0.0
      %v831 = vsel %vm799, %v703, 0.0
      %v832 = vsel %vm800, %v704, 0.0
      %v833 = vsel %vm801, %v705, 0.0
      %v834 = vsel %vm802, %v706, 0.0
      %v835 = vsel %vm803, %v707, 0.0
      %v836 = vsel %vm804, %v708, 0.0
      %v837 = vsel %vm805, %v709, 0.0
      %v838 = vsel %vm806, %v710, 0.0
      %v839 = vsel %vm807, %v711, 0.0
      %v840 = vsel %vm808, %v712, 0.0
      %v841 = vsel %vm809, %v713, 0.0
      %v842 = vsel %vm810, %v714, 0.0
      %v843 = vsel %vm811, %v715, 0.0
      %v844 = vsel %vm812, %v716, 0.0
      %v845 = vsel %vm813, %v717, 0.0
      %v846 = vsel %vm814, %v718, 0.0
      %v847 = vld [vmem:[%s1] sm:$0xff]
      %v848 = vld [vmem:[#allocation2 + $0x1] sm:$0xff]
      %v849 = vld [vmem:[#allocation2 + $0x9] sm:$0xff]
      %v850 = vld [vmem:[#allocation2 + $0x11] sm:$0xff]
      %v851 = vld [vmem:[#allocation2 + $0x19] sm:$0xff]
      %v852 = vld [vmem:[#allocation2 + $0x21] sm:$0xff]
      %v853 = vld [vmem:[#allocation2 + $0x29] sm:$0xff]
      %v854 = vld [vmem:[#allocation2 + $0x31] sm:$0xff]
      %v855 = vld [vmem:[#allocation2 + $0x39] sm:$0xff]
      %v856 = vld [vmem:[#allocation2 + $0x41] sm:$0xff]
      %v857 = vld [vmem:[#allocation2 + $0x49] sm:$0xff]
      %v858 = vld [vmem:[#allocation2 + $0x51] sm:$0xff]
      %v859 = vld [vmem:[#allocation2 + $0x59] sm:$0xff]
      %v860 = vld [vmem:[#allocation2 + $0x61] sm:$0xff]
      %v861 = vld [vmem:[#allocation2 + $0x69] sm:$0xff]
      %v862 = vld [vmem:[#allocation2 + $0x71] sm:$0xff]
      %v863 = vld [vmem:[#allocation2 + $0x79] sm:$0xff]
      %v864 = vld [vmem:[#allocation2 + $0x81] sm:$0xff]
      %v865 = vld [vmem:[#allocation2 + $0x89] sm:$0xff]
      %v866 = vld [vmem:[#allocation2 + $0x91] sm:$0xff]
      %v867 = vld [vmem:[#allocation2 + $0x99] sm:$0xff]
      %v868 = vld [vmem:[#allocation2 + $0xa1] sm:$0xff]
      %v869 = vld [vmem:[#allocation2 + $0xa9] sm:$0xff]
      %v870 = vld [vmem:[#allocation2 + $0xb1] sm:$0xff]
      %v871 = vld [vmem:[#allocation2 + $0xb9] sm:$0xff]
      %v872 = vld [vmem:[#allocation2 + $0xc1] sm:$0xff]
      %v873 = vld [vmem:[#allocation2 + $0xc9] sm:$0xff]
      %v874 = vld [vmem:[#allocation2 + $0xd1] sm:$0xff]
      %v875 = vld [vmem:[#allocation2 + $0xd9] sm:$0xff]
      %v876 = vld [vmem:[#allocation2 + $0xe1] sm:$0xff]
      %v877 = vld [vmem:[#allocation2 + $0xe9] sm:$0xff]
      %v878 = vld [vmem:[#allocation2 + $0xf1] sm:$0xff]
      %v879 = vld [vmem:[#allocation2 + $0xf9] sm:$0xff]
      %s880 = scalar_lea.vmem %s1, 8
      %v881 = vld [vmem:[%s880] sm:$0xff]
      %v883 = vsel %vm198, %v848, 0
      %v886 = vsel %vm198, %v849, 0
      %v889 = vsel %vm198, %v850, 0
      %v892 = vsel %vm198, %v851, 0
      %v895 = vsel %vm198, %v852, 0
      %v898 = vsel %vm198, %v853, 0
      %v901 = vsel %vm198, %v854, 0
      %v904 = vsel %vm198, %v855, 0
      %v907 = vsel %vm198, %v856, 0
      %v910 = vsel %vm198, %v857, 0
      %v913 = vsel %vm198, %v858, 0
      %v916 = vsel %vm198, %v859, 0
      %v919 = vsel %vm198, %v860, 0
      %v922 = vsel %vm198, %v861, 0
      %v925 = vsel %vm198, %v862, 0
      %v928 = vsel %vm198, %v863, 0
      %v931 = vsel %vm198, %v864, 0
      %v934 = vsel %vm198, %v865, 0
      %v937 = vsel %vm198, %v866, 0
      %v940 = vsel %vm198, %v867, 0
      %v943 = vsel %vm198, %v868, 0
      %v946 = vsel %vm198, %v869, 0
      %v949 = vsel %vm198, %v870, 0
      %v952 = vsel %vm198, %v871, 0
      %v955 = vsel %vm198, %v872, 0
      %v958 = vsel %vm198, %v873, 0
      %v961 = vsel %vm198, %v874, 0
      %v964 = vsel %vm198, %v875, 0
      %v967 = vsel %vm198, %v876, 0
      %v970 = vsel %vm198, %v877, 0
      %v973 = vsel %vm198, %v878, 0
      %v976 = vsel %vm198, %v879, 0
      %978 = vmatprep.subr.mxu0 0.0
      %979 = vmatpush1.msra.mxu0 0.0
      %980 = vmatprep.subr.mxu0 0.0
      %981 = vmatpush1.msra.mxu0 0.0
      %982 = vmatprep.subr.mxu0 0.0
      %983 = vmatpush1.msra.mxu0 0.0
      %984 = vmatprep.subr.mxu0 0.0
      %985 = vmatpush1.msra.mxu0 0.0
      %986 = vmatprep.subr.mxu0 0.0
      %987 = vmatpush1.msra.mxu0 0.0
      %988 = vmatprep.subr.mxu0 0.0
      %989 = vmatpush1.msra.mxu0 0.0
      %990 = vmatprep.subr.mxu0 0.0
      %991 = vmatpush1.msra.mxu0 0.0
      %992 = vmatprep.subr.mxu0 0.0
      %993 = vmatpush1.msra.mxu0 0.0
      %994 = vmatprep.subr.mxu0 0.0
      %995 = vmatpush1.msra.mxu0 0.0
      %996 = vmatprep.subr.mxu0 0.0
      %997 = vmatpush1.msra.mxu0 0.0
      %998 = vmatprep.subr.mxu0 0.0
      %999 = vmatpush1.msra.mxu0 0.0
      %1000 = vmatprep.subr.mxu0 0.0
      %1001 = vmatpush1.msra.mxu0 0.0
      %1002 = vmatprep.subr.mxu0 0.0
      %1003 = vmatpush1.msra.mxu0 0.0
      %1004 = vmatprep.subr.mxu0 0.0
      %1005 = vmatpush1.msra.mxu0 0.0
      %1006 = vmatprep.subr.mxu0 0.0
      %1007 = vmatpush1.msra.mxu0 0.0
      %1008 = vmatprep.subr.mxu0 0.0
      %1009 = vmatpush1.msra.mxu0 %v881
      %1010 = vmatprep.subr.mxu0 0.0
      %1011 = vmatpush2.msra.mxu0 0.0
      %1012 = vmatprep.subr.mxu0 0.0
      %1013 = vmatpush2.msra.mxu0 0.0
      %1014 = vmatprep.subr.mxu0 0.0
      %1015 = vmatpush2.msra.mxu0 0.0
      %1016 = vmatprep.subr.mxu0 0.0
      %1017 = vmatpush2.msra.mxu0 0.0
      %1018 = vmatprep.subr.mxu0 0.0
      %1019 = vmatpush2.msra.mxu0 0.0
      %1020 = vmatprep.subr.mxu0 0.0
      %1021 = vmatpush2.msra.mxu0 0.0
      %1022 = vmatprep.subr.mxu0 0.0
      %1023 = vmatpush2.msra.mxu0 0.0
      %1024 = vmatprep.subr.mxu0 0.0
      %1025 = vmatpush2.msra.mxu0 0.0
      %1026 = vmatprep.subr.mxu0 0.0
      %1027 = vmatpush2.msra.mxu0 0.0
      %1028 = vmatprep.subr.mxu0 0.0
      %1029 = vmatpush2.msra.mxu0 0.0
      %1030 = vmatprep.subr.mxu0 0.0
      %1031 = vmatpush2.msra.mxu0 0.0
      %1032 = vmatprep.subr.mxu0 0.0
      %1033 = vmatpush2.msra.mxu0 0.0
      %1034 = vmatprep.subr.mxu0 0.0
      %1035 = vmatpush2.msra.mxu0 0.0
      %1036 = vmatprep.subr.mxu0 0.0
      %1037 = vmatpush2.msra.mxu0 0.0
      %1038 = vmatprep.subr.mxu0 0.0
      %1039 = vmatpush2.msra.mxu0 0.0
      %1040 = vmatprep.subr.mxu0 0.0
      %1041 = vmatpush2.msra.mxu0 0.0
      %1042 = vmatprep.mubr.f32.mxu0 0.0
      %1043 = vmatmul.mubr.f32.gmra.mxu0 %v883
      %v1044 = vpop.f32.mrf.mxu0
      %v1045 = vadd.f32 0.0, %v1044
      %v1046 = vpop.f32.mrf.mxu0
      %1047 = vmatprep.mubr.f32.mxu0 0.0
      %1048 = vmatmul.mubr.f32.gmra.mxu0 %v886
      %v1049 = vpop.f32.mrf.mxu0
      %v1050 = vadd.f32 0.0, %v1049
      %v1051 = vpop.f32.mrf.mxu0
      %1052 = vmatprep.mubr.f32.mxu0 0.0
      %1053 = vmatmul.mubr.f32.gmra.mxu0 %v889
      %v1054 = vpop.f32.mrf.mxu0
      %v1055 = vadd.f32 0.0, %v1054
      %v1056 = vpop.f32.mrf.mxu0
      %1057 = vmatprep.mubr.f32.mxu0 0.0
      %1058 = vmatmul.mubr.f32.gmra.mxu0 %v892
      %v1059 = vpop.f32.mrf.mxu0
      %v1060 = vadd.f32 0.0, %v1059
      %v1061 = vpop.f32.mrf.mxu0
      %1062 = vmatprep.mubr.f32.mxu0 0.0
      %1063 = vmatmul.mubr.f32.gmra.mxu0 %v895
      %v1064 = vpop.f32.mrf.mxu0
      %v1065 = vadd.f32 0.0, %v1064
      %v1066 = vpop.f32.mrf.mxu0
      %1067 = vmatprep.mubr.f32.mxu0 0.0
      %1068 = vmatmul.mubr.f32.gmra.mxu0 %v898
      %v1069 = vpop.f32.mrf.mxu0
      %v1070 = vadd.f32 0.0, %v1069
      %v1071 = vpop.f32.mrf.mxu0
      %1072 = vmatprep.mubr.f32.mxu0 0.0
      %1073 = vmatmul.mubr.f32.gmra.mxu0 %v901
      %v1074 = vpop.f32.mrf.mxu0
      %v1075 = vadd.f32 0.0, %v1074
      %v1076 = vpop.f32.mrf.mxu0
      %1077 = vmatprep.mubr.f32.mxu0 0.0
      %1078 = vmatmul.mubr.f32.gmra.mxu0 %v904
      %v1079 = vpop.f32.mrf.mxu0
      %v1080 = vadd.f32 0.0, %v1079
      %v1081 = vpop.f32.mrf.mxu0
      %1082 = vmatprep.mubr.f32.mxu0 0.0
      %1083 = vmatmul.mubr.f32.gmra.mxu0 %v907
      %v1084 = vpop.f32.mrf.mxu0
      %v1085 = vadd.f32 0.0, %v1084
      %v1086 = vpop.f32.mrf.mxu0
      %1087 = vmatprep.mubr.f32.mxu0 0.0
      %1088 = vmatmul.mubr.f32.gmra.mxu0 %v910
      %v1089 = vpop.f32.mrf.mxu0
      %v1090 = vadd.f32 0.0, %v1089
      %v1091 = vpop.f32.mrf.mxu0
      %1092 = vmatprep.mubr.f32.mxu0 0.0
      %1093 = vmatmul.mubr.f32.gmra.mxu0 %v913
      %v1094 = vpop.f32.mrf.mxu0
      %v1095 = vadd.f32 0.0, %v1094
      %v1096 = vpop.f32.mrf.mxu0
      %1097 = vmatprep.mubr.f32.mxu0 0.0
      %1098 = vmatmul.mubr.f32.gmra.mxu0 %v916
      %v1099 = vpop.f32.mrf.mxu0
      %v1100 = vadd.f32 0.0, %v1099
      %v1101 = vpop.f32.mrf.mxu0
      %1102 = vmatprep.mubr.f32.mxu0 0.0
      %1103 = vmatmul.mubr.f32.gmra.mxu0 %v919
      %v1104 = vpop.f32.mrf.mxu0
      %v1105 = vadd.f32 0.0, %v1104
      %v1106 = vpop.f32.mrf.mxu0
      %1107 = vmatprep.mubr.f32.mxu0 0.0
      %1108 = vmatmul.mubr.f32.gmra.mxu0 %v922
      %v1109 = vpop.f32.mrf.mxu0
      %v1110 = vadd.f32 0.0, %v1109
      %v1111 = vpop.f32.mrf.mxu0
      %1112 = vmatprep.mubr.f32.mxu0 0.0
      %1113 = vmatmul.mubr.f32.gmra.mxu0 %v925
      %v1114 = vpop.f32.mrf.mxu0
      %v1115 = vadd.f32 0.0, %v1114
      %v1116 = vpop.f32.mrf.mxu0
      %1117 = vmatprep.mubr.f32.mxu0 0.0
      %1118 = vmatmul.mubr.f32.gmra.mxu0 %v928
      %v1119 = vpop.f32.mrf.mxu0
      %v1120 = vadd.f32 0.0, %v1119
      %v1121 = vpop.f32.mrf.mxu0
      %1122 = vmatprep.mubr.f32.mxu0 0.0
      %1123 = vmatmul.mubr.f32.gmra.mxu0 %v931
      %v1124 = vpop.f32.mrf.mxu0
      %v1125 = vadd.f32 0.0, %v1124
      %v1126 = vpop.f32.mrf.mxu0
      %1127 = vmatprep.mubr.f32.mxu0 0.0
      %1128 = vmatmul.mubr.f32.gmra.mxu0 %v934
      %v1129 = vpop.f32.mrf.mxu0
      %v1130 = vadd.f32 0.0, %v1129
      %v1131 = vpop.f32.mrf.mxu0
      %1132 = vmatprep.mubr.f32.mxu0 0.0
      %1133 = vmatmul.mubr.f32.gmra.mxu0 %v937
      %v1134 = vpop.f32.mrf.mxu0
      %v1135 = vadd.f32 0.0, %v1134
      %v1136 = vpop.f32.mrf.mxu0
      %1137 = vmatprep.mubr.f32.mxu0 0.0
      %1138 = vmatmul.mubr.f32.gmra.mxu0 %v940
      %v1139 = vpop.f32.mrf.mxu0
      %v1140 = vadd.f32 0.0, %v1139
      %v1141 = vpop.f32.mrf.mxu0
      %1142 = vmatprep.mubr.f32.mxu0 0.0
      %1143 = vmatmul.mubr.f32.gmra.mxu0 %v943
      %v1144 = vpop.f32.mrf.mxu0
      %v1145 = vadd.f32 0.0, %v1144
      %v1146 = vpop.f32.mrf.mxu0
      %1147 = vmatprep.mubr.f32.mxu0 0.0
      %1148 = vmatmul.mubr.f32.gmra.mxu0 %v946
      %v1149 = vpop.f32.mrf.mxu0
      %v1150 = vadd.f32 0.0, %v1149
      %v1151 = vpop.f32.mrf.mxu0
      %1152 = vmatprep.mubr.f32.mxu0 0.0
      %1153 = vmatmul.mubr.f32.gmra.mxu0 %v949
      %v1154 = vpop.f32.mrf.mxu0
      %v1155 = vadd.f32 0.0, %v1154
      %v1156 = vpop.f32.mrf.mxu0
      %1157 = vmatprep.mubr.f32.mxu0 0.0
      %1158 = vmatmul.mubr.f32.gmra.mxu0 %v952
      %v1159 = vpop.f32.mrf.mxu0
      %v1160 = vadd.f32 0.0, %v1159
      %v1161 = vpop.f32.mrf.mxu0
      %1162 = vmatprep.mubr.f32.mxu0 0.0
      %1163 = vmatmul.mubr.f32.gmra.mxu0 %v955
      %v1164 = vpop.f32.mrf.mxu0
      %v1165 = vadd.f32 0.0, %v1164
      %v1166 = vpop.f32.mrf.mxu0
      %1167 = vmatprep.mubr.f32.mxu0 0.0
      %1168 = vmatmul.mubr.f32.gmra.mxu0 %v958
      %v1169 = vpop.f32.mrf.mxu0
      %v1170 = vadd.f32 0.0, %v1169
      %v1171 = vpop.f32.mrf.mxu0
      %1172 = vmatprep.mubr.f32.mxu0 0.0
      %1173 = vmatmul.mubr.f32.gmra.mxu0 %v961
      %v1174 = vpop.f32.mrf.mxu0
      %v1175 = vadd.f32 0.0, %v1174
      %v1176 = vpop.f32.mrf.mxu0
      %1177 = vmatprep.mubr.f32.mxu0 0.0
      %1178 = vmatmul.mubr.f32.gmra.mxu0 %v964
      %v1179 = vpop.f32.mrf.mxu0
      %v1180 = vadd.f32 0.0, %v1179
      %v1181 = vpop.f32.mrf.mxu0
      %1182 = vmatprep.mubr.f32.mxu0 0.0
      %1183 = vmatmul.mubr.f32.gmra.mxu0 %v967
      %v1184 = vpop.f32.mrf.mxu0
      %v1185 = vadd.f32 0.0, %v1184
      %v1186 = vpop.f32.mrf.mxu0
      %1187 = vmatprep.mubr.f32.mxu0 0.0
      %1188 = vmatmul.mubr.f32.gmra.mxu0 %v970
      %v1189 = vpop.f32.mrf.mxu0
      %v1190 = vadd.f32 0.0, %v1189
      %v1191 = vpop.f32.mrf.mxu0
      %1192 = vmatprep.mubr.f32.mxu0 0.0
      %1193 = vmatmul.mubr.f32.gmra.mxu0 %v973
      %v1194 = vpop.f32.mrf.mxu0
      %v1195 = vadd.f32 0.0, %v1194
      %v1196 = vpop.f32.mrf.mxu0
      %1197 = vmatprep.mubr.f32.mxu0 0.0
      %1198 = vmatmul.mubr.f32.gmra.mxu0 %v976
      %v1199 = vpop.f32.mrf.mxu0
      %v1200 = vadd.f32 0.0, %v1199
      %v1201 = vpop.f32.mrf.mxu0
      %1202 = vdwg.mxu0
      %v1204 = vsel %vm198, %v815, 0
      %v1207 = vsel %vm198, %v816, 0
      %v1210 = vsel %vm198, %v817, 0
      %v1213 = vsel %vm198, %v818, 0
      %v1216 = vsel %vm198, %v819, 0
      %v1219 = vsel %vm198, %v820, 0
      %v1222 = vsel %vm198, %v821, 0
      %v1225 = vsel %vm198, %v822, 0
      %v1228 = vsel %vm198, %v823, 0
      %v1231 = vsel %vm198, %v824, 0
      %v1234 = vsel %vm198, %v825, 0
      %v1237 = vsel %vm198, %v826, 0
      %v1240 = vsel %vm198, %v827, 0
      %v1243 = vsel %vm198, %v828, 0
      %v1246 = vsel %vm198, %v829, 0
      %v1249 = vsel %vm198, %v830, 0
      %v1252 = vsel %vm198, %v831, 0
      %v1255 = vsel %vm198, %v832, 0
      %v1258 = vsel %vm198, %v833, 0
      %v1261 = vsel %vm198, %v834, 0
      %v1264 = vsel %vm198, %v835, 0
      %v1267 = vsel %vm198, %v836, 0
      %v1270 = vsel %vm198, %v837, 0
      %v1273 = vsel %vm198, %v838, 0
      %v1276 = vsel %vm198, %v839, 0
      %v1279 = vsel %vm198, %v840, 0
      %v1282 = vsel %vm198, %v841, 0
      %v1285 = vsel %vm198, %v842, 0
      %v1288 = vsel %vm198, %v843, 0
      %v1291 = vsel %vm198, %v844, 0
      %v1294 = vsel %vm198, %v845, 0
      %v1297 = vsel %vm198, %v846, 0
      %1299 = vmatprep.subr.mxu0 0.0
      %1300 = vmatpush1.msra.mxu0 0.0
      %1301 = vmatprep.subr.mxu0 0.0
      %1302 = vmatpush1.msra.mxu0 0.0
      %1303 = vmatprep.subr.mxu0 0.0
      %1304 = vmatpush1.msra.mxu0 0.0
      %1305 = vmatprep.subr.mxu0 0.0
      %1306 = vmatpush1.msra.mxu0 0.0
      %1307 = vmatprep.subr.mxu0 0.0
      %1308 = vmatpush1.msra.mxu0 0.0
      %1309 = vmatprep.subr.mxu0 0.0
      %1310 = vmatpush1.msra.mxu0 0.0
      %1311 = vmatprep.subr.mxu0 0.0
      %1312 = vmatpush1.msra.mxu0 0.0
      %1313 = vmatprep.subr.mxu0 0.0
      %1314 = vmatpush1.msra.mxu0 0.0
      %1315 = vmatprep.subr.mxu0 0.0
      %1316 = vmatpush1.msra.mxu0 0.0
      %1317 = vmatprep.subr.mxu0 0.0
      %1318 = vmatpush1.msra.mxu0 0.0
      %1319 = vmatprep.subr.mxu0 0.0
      %1320 = vmatpush1.msra.mxu0 0.0
      %1321 = vmatprep.subr.mxu0 0.0
      %1322 = vmatpush1.msra.mxu0 0.0
      %1323 = vmatprep.subr.mxu0 0.0
      %1324 = vmatpush1.msra.mxu0 0.0
      %1325 = vmatprep.subr.mxu0 0.0
      %1326 = vmatpush1.msra.mxu0 0.0
      %1327 = vmatprep.subr.mxu0 0.0
      %1328 = vmatpush1.msra.mxu0 0.0
      %1329 = vmatprep.subr.mxu0 0.0
      %1330 = vmatpush1.msra.mxu0 %v847
      %1331 = vmatprep.subr.mxu0 0.0
      %1332 = vmatpush2.msra.mxu0 0.0
      %1333 = vmatprep.subr.mxu0 0.0
      %1334 = vmatpush2.msra.mxu0 0.0
      %1335 = vmatprep.subr.mxu0 0.0
      %1336 = vmatpush2.msra.mxu0 0.0
      %1337 = vmatprep.subr.mxu0 0.0
      %1338 = vmatpush2.msra.mxu0 0.0
      %1339 = vmatprep.subr.mxu0 0.0
      %1340 = vmatpush2.msra.mxu0 0.0
      %1341 = vmatprep.subr.mxu0 0.0
      %1342 = vmatpush2.msra.mxu0 0.0
      %1343 = vmatprep.subr.mxu0 0.0
      %1344 = vmatpush2.msra.mxu0 0.0
      %1345 = vmatprep.subr.mxu0 0.0
      %1346 = vmatpush2.msra.mxu0 0.0
      %1347 = vmatprep.subr.mxu0 0.0
      %1348 = vmatpush2.msra.mxu0 0.0
      %1349 = vmatprep.subr.mxu0 0.0
      %1350 = vmatpush2.msra.mxu0 0.0
      %1351 = vmatprep.subr.mxu0 0.0
      %1352 = vmatpush2.msra.mxu0 0.0
      %1353 = vmatprep.subr.mxu0 0.0
      %1354 = vmatpush2.msra.mxu0 0.0
      %1355 = vmatprep.subr.mxu0 0.0
      %1356 = vmatpush2.msra.mxu0 0.0
      %1357 = vmatprep.subr.mxu0 0.0
      %1358 = vmatpush2.msra.mxu0 0.0
      %1359 = vmatprep.subr.mxu0 0.0
      %1360 = vmatpush2.msra.mxu0 0.0
      %1361 = vmatprep.subr.mxu0 0.0
      %1362 = vmatpush2.msra.mxu0 0.0
      %1363 = vmatprep.mubr.f32.mxu0 0.0
      %1364 = vmatmul.mubr.f32.gmra.mxu0 %v1204
      %v1365 = vpop.f32.mrf.mxu0
      %v1366 = vadd.f32 %v1045, %v1365
      %v1367 = vpop.f32.mrf.mxu0
      %1368 = vmatprep.mubr.f32.mxu0 0.0
      %1369 = vmatmul.mubr.f32.gmra.mxu0 %v1207
      %v1370 = vpop.f32.mrf.mxu0
      %v1371 = vadd.f32 %v1050, %v1370
      %v1372 = vpop.f32.mrf.mxu0
      %1373 = vmatprep.mubr.f32.mxu0 0.0
      %1374 = vmatmul.mubr.f32.gmra.mxu0 %v1210
      %v1375 = vpop.f32.mrf.mxu0
      %v1376 = vadd.f32 %v1055, %v1375
      %v1377 = vpop.f32.mrf.mxu0
      %1378 = vmatprep.mubr.f32.mxu0 0.0
      %1379 = vmatmul.mubr.f32.gmra.mxu0 %v1213
      %v1380 = vpop.f32.mrf.mxu0
      %v1381 = vadd.f32 %v1060, %v1380
      %v1382 = vpop.f32.mrf.mxu0
      %1383 = vmatprep.mubr.f32.mxu0 0.0
      %1384 = vmatmul.mubr.f32.gmra.mxu0 %v1216
      %v1385 = vpop.f32.mrf.mxu0
      %v1386 = vadd.f32 %v1065, %v1385
      %v1387 = vpop.f32.mrf.mxu0
      %1388 = vmatprep.mubr.f32.mxu0 0.0
      %1389 = vmatmul.mubr.f32.gmra.mxu0 %v1219
      %v1390 = vpop.f32.mrf.mxu0
      %v1391 = vadd.f32 %v1070, %v1390
      %v1392 = vpop.f32.mrf.mxu0
      %1393 = vmatprep.mubr.f32.mxu0 0.0
      %1394 = vmatmul.mubr.f32.gmra.mxu0 %v1222
      %v1395 = vpop.f32.mrf.mxu0
      %v1396 = vadd.f32 %v1075, %v1395
      %v1397 = vpop.f32.mrf.mxu0
      %1398 = vmatprep.mubr.f32.mxu0 0.0
      %1399 = vmatmul.mubr.f32.gmra.mxu0 %v1225
      %v1400 = vpop.f32.mrf.mxu0
      %v1401 = vadd.f32 %v1080, %v1400
      %v1402 = vpop.f32.mrf.mxu0
      %1403 = vmatprep.mubr.f32.mxu0 0.0
      %1404 = vmatmul.mubr.f32.gmra.mxu0 %v1228
      %v1405 = vpop.f32.mrf.mxu0
      %v1406 = vadd.f32 %v1085, %v1405
      %v1407 = vpop.f32.mrf.mxu0
      %1408 = vmatprep.mubr.f32.mxu0 0.0
      %1409 = vmatmul.mubr.f32.gmra.mxu0 %v1231
      %v1410 = vpop.f32.mrf.mxu0
      %v1411 = vadd.f32 %v1090, %v1410
      %v1412 = vpop.f32.mrf.mxu0
      %1413 = vmatprep.mubr.f32.mxu0 0.0
      %1414 = vmatmul.mubr.f32.gmra.mxu0 %v1234
      %v1415 = vpop.f32.mrf.mxu0
      %v1416 = vadd.f32 %v1095, %v1415
      %v1417 = vpop.f32.mrf.mxu0
      %1418 = vmatprep.mubr.f32.mxu0 0.0
      %1419 = vmatmul.mubr.f32.gmra.mxu0 %v1237
      %v1420 = vpop.f32.mrf.mxu0
      %v1421 = vadd.f32 %v1100, %v1420
      %v1422 = vpop.f32.mrf.mxu0
      %1423 = vmatprep.mubr.f32.mxu0 0.0
      %1424 = vmatmul.mubr.f32.gmra.mxu0 %v1240
      %v1425 = vpop.f32.mrf.mxu0
      %v1426 = vadd.f32 %v1105, %v1425
      %v1427 = vpop.f32.mrf.mxu0
      %1428 = vmatprep.mubr.f32.mxu0 0.0
      %1429 = vmatmul.mubr.f32.gmra.mxu0 %v1243
      %v1430 = vpop.f32.mrf.mxu0
      %v1431 = vadd.f32 %v1110, %v1430
      %v1432 = vpop.f32.mrf.mxu0
      %1433 = vmatprep.mubr.f32.mxu0 0.0
      %1434 = vmatmul.mubr.f32.gmra.mxu0 %v1246
      %v1435 = vpop.f32.mrf.mxu0
      %v1436 = vadd.f32 %v1115, %v1435
      %v1437 = vpop.f32.mrf.mxu0
      %1438 = vmatprep.mubr.f32.mxu0 0.0
      %1439 = vmatmul.mubr.f32.gmra.mxu0 %v1249
      %v1440 = vpop.f32.mrf.mxu0
      %v1441 = vadd.f32 %v1120, %v1440
      %v1442 = vpop.f32.mrf.mxu0
      %1443 = vmatprep.mubr.f32.mxu0 0.0
      %1444 = vmatmul.mubr.f32.gmra.mxu0 %v1252
      %v1445 = vpop.f32.mrf.mxu0
      %v1446 = vadd.f32 %v1125, %v1445
      %v1447 = vpop.f32.mrf.mxu0
      %1448 = vmatprep.mubr.f32.mxu0 0.0
      %1449 = vmatmul.mubr.f32.gmra.mxu0 %v1255
      %v1450 = vpop.f32.mrf.mxu0
      %v1451 = vadd.f32 %v1130, %v1450
      %v1452 = vpop.f32.mrf.mxu0
      %1453 = vmatprep.mubr.f32.mxu0 0.0
      %1454 = vmatmul.mubr.f32.gmra.mxu0 %v1258
      %v1455 = vpop.f32.mrf.mxu0
      %v1456 = vadd.f32 %v1135, %v1455
      %v1457 = vpop.f32.mrf.mxu0
      %1458 = vmatprep.mubr.f32.mxu0 0.0
      %1459 = vmatmul.mubr.f32.gmra.mxu0 %v1261
      %v1460 = vpop.f32.mrf.mxu0
      %v1461 = vadd.f32 %v1140, %v1460
      %v1462 = vpop.f32.mrf.mxu0
      %1463 = vmatprep.mubr.f32.mxu0 0.0
      %1464 = vmatmul.mubr.f32.gmra.mxu0 %v1264
      %v1465 = vpop.f32.mrf.mxu0
      %v1466 = vadd.f32 %v1145, %v1465
      %v1467 = vpop.f32.mrf.mxu0
      %1468 = vmatprep.mubr.f32.mxu0 0.0
      %1469 = vmatmul.mubr.f32.gmra.mxu0 %v1267
      %v1470 = vpop.f32.mrf.mxu0
      %v1471 = vadd.f32 %v1150, %v1470
      %v1472 = vpop.f32.mrf.mxu0
      %1473 = vmatprep.mubr.f32.mxu0 0.0
      %1474 = vmatmul.mubr.f32.gmra.mxu0 %v1270
      %v1475 = vpop.f32.mrf.mxu0
      %v1476 = vadd.f32 %v1155, %v1475
      %v1477 = vpop.f32.mrf.mxu0
      %1478 = vmatprep.mubr.f32.mxu0 0.0
      %1479 = vmatmul.mubr.f32.gmra.mxu0 %v1273
      %v1480 = vpop.f32.mrf.mxu0
      %v1481 = vadd.f32 %v1160, %v1480
      %v1482 = vpop.f32.mrf.mxu0
      %1483 = vmatprep.mubr.f32.mxu0 0.0
      %1484 = vmatmul.mubr.f32.gmra.mxu0 %v1276
      %v1485 = vpop.f32.mrf.mxu0
      %v1486 = vadd.f32 %v1165, %v1485
      %v1487 = vpop.f32.mrf.mxu0
      %1488 = vmatprep.mubr.f32.mxu0 0.0
      %1489 = vmatmul.mubr.f32.gmra.mxu0 %v1279
      %v1490 = vpop.f32.mrf.mxu0
      %v1491 = vadd.f32 %v1170, %v1490
      %v1492 = vpop.f32.mrf.mxu0
      %1493 = vmatprep.mubr.f32.mxu0 0.0
      %1494 = vmatmul.mubr.f32.gmra.mxu0 %v1282
      %v1495 = vpop.f32.mrf.mxu0
      %v1496 = vadd.f32 %v1175, %v1495
      %v1497 = vpop.f32.mrf.mxu0
      %1498 = vmatprep.mubr.f32.mxu0 0.0
      %1499 = vmatmul.mubr.f32.gmra.mxu0 %v1285
      %v1500 = vpop.f32.mrf.mxu0
      %v1501 = vadd.f32 %v1180, %v1500
      %v1502 = vpop.f32.mrf.mxu0
      %1503 = vmatprep.mubr.f32.mxu0 0.0
      %1504 = vmatmul.mubr.f32.gmra.mxu0 %v1288
      %v1505 = vpop.f32.mrf.mxu0
      %v1506 = vadd.f32 %v1185, %v1505
      %v1507 = vpop.f32.mrf.mxu0
      %1508 = vmatprep.mubr.f32.mxu0 0.0
      %1509 = vmatmul.mubr.f32.gmra.mxu0 %v1291
      %v1510 = vpop.f32.mrf.mxu0
      %v1511 = vadd.f32 %v1190, %v1510
      %v1512 = vpop.f32.mrf.mxu0
      %1513 = vmatprep.mubr.f32.mxu0 0.0
      %1514 = vmatmul.mubr.f32.gmra.mxu0 %v1294
      %v1515 = vpop.f32.mrf.mxu0
      %v1516 = vadd.f32 %v1195, %v1515
      %v1517 = vpop.f32.mrf.mxu0
      %1518 = vmatprep.mubr.f32.mxu0 0.0
      %1519 = vmatmul.mubr.f32.gmra.mxu0 %v1297
      %v1520 = vpop.f32.mrf.mxu0
      %v1521 = vadd.f32 %v1200, %v1520
      %v1522 = vpop.f32.mrf.mxu0
      %1523 = vdwg.mxu0
      %v1524 = vld [vmem:[#allocation2 + $0x2] sm:$0xff]
      %v1525 = vld [vmem:[#allocation2 + $0xa] sm:$0xff]
      %v1526 = vld [vmem:[#allocation2 + $0x12] sm:$0xff]
      %v1527 = vld [vmem:[#allocation2 + $0x1a] sm:$0xff]
      %v1528 = vld [vmem:[#allocation2 + $0x22] sm:$0xff]
      %v1529 = vld [vmem:[#allocation2 + $0x2a] sm:$0xff]
      %v1530 = vld [vmem:[#allocation2 + $0x32] sm:$0xff]
      %v1531 = vld [vmem:[#allocation2 + $0x3a] sm:$0xff]
      %v1532 = vld [vmem:[#allocation2 + $0x42] sm:$0xff]
      %v1533 = vld [vmem:[#allocation2 + $0x4a] sm:$0xff]
      %v1534 = vld [vmem:[#allocation2 + $0x52] sm:$0xff]
      %v1535 = vld [vmem:[#allocation2 + $0x5a] sm:$0xff]
      %v1536 = vld [vmem:[#allocation2 + $0x62] sm:$0xff]
      %v1537 = vld [vmem:[#allocation2 + $0x6a] sm:$0xff]
      %v1538 = vld [vmem:[#allocation2 + $0x72] sm:$0xff]
      %v1539 = vld [vmem:[#allocation2 + $0x7a] sm:$0xff]
      %v1540 = vld [vmem:[#allocation2 + $0x82] sm:$0xff]
      %v1541 = vld [vmem:[#allocation2 + $0x8a] sm:$0xff]
      %v1542 = vld [vmem:[#allocation2 + $0x92] sm:$0xff]
      %v1543 = vld [vmem:[#allocation2 + $0x9a] sm:$0xff]
      %v1544 = vld [vmem:[#allocation2 + $0xa2] sm:$0xff]
      %v1545 = vld [vmem:[#allocation2 + $0xaa] sm:$0xff]
      %v1546 = vld [vmem:[#allocation2 + $0xb2] sm:$0xff]
      %v1547 = vld [vmem:[#allocation2 + $0xba] sm:$0xff]
      %v1548 = vld [vmem:[#allocation2 + $0xc2] sm:$0xff]
      %v1549 = vld [vmem:[#allocation2 + $0xca] sm:$0xff]
      %v1550 = vld [vmem:[#allocation2 + $0xd2] sm:$0xff]
      %v1551 = vld [vmem:[#allocation2 + $0xda] sm:$0xff]
      %v1552 = vld [vmem:[#allocation2 + $0xe2] sm:$0xff]
      %v1553 = vld [vmem:[#allocation2 + $0xea] sm:$0xff]
      %v1554 = vld [vmem:[#allocation2 + $0xf2] sm:$0xff]
      %v1555 = vld [vmem:[#allocation2 + $0xfa] sm:$0xff]
      %vm1556 = vcmp.ne.s32.totalorder %v655, 15
      %vm1557 = vcmp.ne.s32.totalorder %v656, 15
      %vm1558 = vcmp.ne.s32.totalorder %v657, 15
      %vm1559 = vcmp.ne.s32.totalorder %v658, 15
      %vm1560 = vcmp.ne.s32.totalorder %v659, 15
      %vm1561 = vcmp.ne.s32.totalorder %v660, 15
      %vm1562 = vcmp.ne.s32.totalorder %v661, 15
      %vm1563 = vcmp.ne.s32.totalorder %v662, 15
      %vm1564 = vcmp.ne.s32.totalorder %v663, 15
      %vm1565 = vcmp.ne.s32.totalorder %v664, 15
      %vm1566 = vcmp.ne.s32.totalorder %v665, 15
      %vm1567 = vcmp.ne.s32.totalorder %v666, 15
      %vm1568 = vcmp.ne.s32.totalorder %v667, 15
      %vm1569 = vcmp.ne.s32.totalorder %v668, 15
      %vm1570 = vcmp.ne.s32.totalorder %v669, 15
      %vm1571 = vcmp.ne.s32.totalorder %v670, 15
      %vm1572 = vcmp.ne.s32.totalorder %v671, 15
      %vm1573 = vcmp.ne.s32.totalorder %v672, 15
      %vm1574 = vcmp.ne.s32.totalorder %v673, 15
      %vm1575 = vcmp.ne.s32.totalorder %v674, 15
      %vm1576 = vcmp.ne.s32.totalorder %v675, 15
      %vm1577 = vcmp.ne.s32.totalorder %v676, 15
      %vm1578 = vcmp.ne.s32.totalorder %v677, 15
      %vm1579 = vcmp.ne.s32.totalorder %v678, 15
      %vm1580 = vcmp.ne.s32.totalorder %v679, 15
      %vm1581 = vcmp.ne.s32.totalorder %v680, 15
      %vm1582 = vcmp.ne.s32.totalorder %v681, 15
      %vm1583 = vcmp.ne.s32.totalorder %v682, 15
      %vm1584 = vcmp.ne.s32.totalorder %v683, 15
      %vm1585 = vcmp.ne.s32.totalorder %v684, 15
      %vm1586 = vcmp.ne.s32.totalorder %v685, 15
      %vm1587 = vcmp.ne.s32.totalorder %v686, 15
      %v1588 = vsel %vm1556, 1, 0
      %v1589 = vsel %vm1557, 1, 0
      %v1590 = vsel %vm1558, 1, 0
      %v1591 = vsel %vm1559, 1, 0
      %v1592 = vsel %vm1560, 1, 0
      %v1593 = vsel %vm1561, 1, 0
      %v1594 = vsel %vm1562, 1, 0
      %v1595 = vsel %vm1563, 1, 0
      %v1596 = vsel %vm1564, 1, 0
      %v1597 = vsel %vm1565, 1, 0
      %v1598 = vsel %vm1566, 1, 0
      %v1599 = vsel %vm1567, 1, 0
      %v1600 = vsel %vm1568, 1, 0
      %v1601 = vsel %vm1569, 1, 0
      %v1602 = vsel %vm1570, 1, 0
      %v1603 = vsel %vm1571, 1, 0
      %v1604 = vsel %vm1572, 1, 0
      %v1605 = vsel %vm1573, 1, 0
      %v1606 = vsel %vm1574, 1, 0
      %v1607 = vsel %vm1575, 1, 0
      %v1608 = vsel %vm1576, 1, 0
      %v1609 = vsel %vm1577, 1, 0
      %v1610 = vsel %vm1578, 1, 0
      %v1611 = vsel %vm1579, 1, 0
      %v1612 = vsel %vm1580, 1, 0
      %v1613 = vsel %vm1581, 1, 0
      %v1614 = vsel %vm1582, 1, 0
      %v1615 = vsel %vm1583, 1, 0
      %v1616 = vsel %vm1584, 1, 0
      %v1617 = vsel %vm1585, 1, 0
      %v1618 = vsel %vm1586, 1, 0
      %v1619 = vsel %vm1587, 1, 0
      %vm1620 = vcmp.eq.s32.totalorder %v1588, 1
      %vm1621 = vcmp.eq.s32.totalorder %v1589, 1
      %vm1622 = vcmp.eq.s32.totalorder %v1590, 1
      %vm1623 = vcmp.eq.s32.totalorder %v1591, 1
      %vm1624 = vcmp.eq.s32.totalorder %v1592, 1
      %vm1625 = vcmp.eq.s32.totalorder %v1593, 1
      %vm1626 = vcmp.eq.s32.totalorder %v1594, 1
      %vm1627 = vcmp.eq.s32.totalorder %v1595, 1
      %vm1628 = vcmp.eq.s32.totalorder %v1596, 1
      %vm1629 = vcmp.eq.s32.totalorder %v1597, 1
      %vm1630 = vcmp.eq.s32.totalorder %v1598, 1
      %vm1631 = vcmp.eq.s32.totalorder %v1599, 1
      %vm1632 = vcmp.eq.s32.totalorder %v1600, 1
      %vm1633 = vcmp.eq.s32.totalorder %v1601, 1
      %vm1634 = vcmp.eq.s32.totalorder %v1602, 1
      %vm1635 = vcmp.eq.s32.totalorder %v1603, 1
      %vm1636 = vcmp.eq.s32.totalorder %v1604, 1
      %vm1637 = vcmp.eq.s32.totalorder %v1605, 1
      %vm1638 = vcmp.eq.s32.totalorder %v1606, 1
      %vm1639 = vcmp.eq.s32.totalorder %v1607, 1
      %vm1640 = vcmp.eq.s32.totalorder %v1608, 1
      %vm1641 = vcmp.eq.s32.totalorder %v1609, 1
      %vm1642 = vcmp.eq.s32.totalorder %v1610, 1
      %vm1643 = vcmp.eq.s32.totalorder %v1611, 1
      %vm1644 = vcmp.eq.s32.totalorder %v1612, 1
      %vm1645 = vcmp.eq.s32.totalorder %v1613, 1
      %vm1646 = vcmp.eq.s32.totalorder %v1614, 1
      %vm1647 = vcmp.eq.s32.totalorder %v1615, 1
      %vm1648 = vcmp.eq.s32.totalorder %v1616, 1
      %vm1649 = vcmp.eq.s32.totalorder %v1617, 1
      %vm1650 = vcmp.eq.s32.totalorder %v1618, 1
      %vm1651 = vcmp.eq.s32.totalorder %v1619, 1
      %v1652 = vsel %vm1620, %v1524, 0.0
      %v1653 = vsel %vm1621, %v1525, 0.0
      %v1654 = vsel %vm1622, %v1526, 0.0
      %v1655 = vsel %vm1623, %v1527, 0.0
      %v1656 = vsel %vm1624, %v1528, 0.0
      %v1657 = vsel %vm1625, %v1529, 0.0
      %v1658 = vsel %vm1626, %v1530, 0.0
      %v1659 = vsel %vm1627, %v1531, 0.0
      %v1660 = vsel %vm1628, %v1532, 0.0
      %v1661 = vsel %vm1629, %v1533, 0.0
      %v1662 = vsel %vm1630, %v1534, 0.0
      %v1663 = vsel %vm1631, %v1535, 0.0
      %v1664 = vsel %vm1632, %v1536, 0.0
      %v1665 = vsel %vm1633, %v1537, 0.0
      %v1666 = vsel %vm1634, %v1538, 0.0
      %v1667 = vsel %vm1635, %v1539, 0.0
      %v1668 = vsel %vm1636, %v1540, 0.0
      %v1669 = vsel %vm1637, %v1541, 0.0
      %v1670 = vsel %vm1638, %v1542, 0.0
      %v1671 = vsel %vm1639, %v1543, 0.0
      %v1672 = vsel %vm1640, %v1544, 0.0
      %v1673 = vsel %vm1641, %v1545, 0.0
      %v1674 = vsel %vm1642, %v1546, 0.0
      %v1675 = vsel %vm1643, %v1547, 0.0
      %v1676 = vsel %vm1644, %v1548, 0.0
      %v1677 = vsel %vm1645, %v1549, 0.0
      %v1678 = vsel %vm1646, %v1550, 0.0
      %v1679 = vsel %vm1647, %v1551, 0.0
      %v1680 = vsel %vm1648, %v1552, 0.0
      %v1681 = vsel %vm1649, %v1553, 0.0
      %v1682 = vsel %vm1650, %v1554, 0.0
      %v1683 = vsel %vm1651, %v1555, 0.0
      %s1684 = scalar_lea.vmem %s1, 16
      %v1685 = vld [vmem:[%s1684] sm:$0xff]
      %v1687 = vsel %vm198, %v1652, 0
      %v1690 = vsel %vm198, %v1653, 0
      %v1693 = vsel %vm198, %v1654, 0
      %v1696 = vsel %vm198, %v1655, 0
      %v1699 = vsel %vm198, %v1656, 0
      %v1702 = vsel %vm198, %v1657, 0
      %v1705 = vsel %vm198, %v1658, 0
      %v1708 = vsel %vm198, %v1659, 0
      %v1711 = vsel %vm198, %v1660, 0
      %v1714 = vsel %vm198, %v1661, 0
      %v1717 = vsel %vm198, %v1662, 0
      %v1720 = vsel %vm198, %v1663, 0
      %v1723 = vsel %vm198, %v1664, 0
      %v1726 = vsel %vm198, %v1665, 0
      %v1729 = vsel %vm198, %v1666, 0
      %v1732 = vsel %vm198, %v1667, 0
      %v1735 = vsel %vm198, %v1668, 0
      %v1738 = vsel %vm198, %v1669, 0
      %v1741 = vsel %vm198, %v1670, 0
      %v1744 = vsel %vm198, %v1671, 0
      %v1747 = vsel %vm198, %v1672, 0
      %v1750 = vsel %vm198, %v1673, 0
      %v1753 = vsel %vm198, %v1674, 0
      %v1756 = vsel %vm198, %v1675, 0
      %v1759 = vsel %vm198, %v1676, 0
      %v1762 = vsel %vm198, %v1677, 0
      %v1765 = vsel %vm198, %v1678, 0
      %v1768 = vsel %vm198, %v1679, 0
      %v1771 = vsel %vm198, %v1680, 0
      %v1774 = vsel %vm198, %v1681, 0
      %v1777 = vsel %vm198, %v1682, 0
      %v1780 = vsel %vm198, %v1683, 0
      %1782 = vmatprep.subr.mxu0 0.0
      %1783 = vmatpush1.msra.mxu0 0.0
      %1784 = vmatprep.subr.mxu0 0.0
      %1785 = vmatpush1.msra.mxu0 0.0
      %1786 = vmatprep.subr.mxu0 0.0
      %1787 = vmatpush1.msra.mxu0 0.0
      %1788 = vmatprep.subr.mxu0 0.0
      %1789 = vmatpush1.msra.mxu0 0.0
      %1790 = vmatprep.subr.mxu0 0.0
      %1791 = vmatpush1.msra.mxu0 0.0
      %1792 = vmatprep.subr.mxu0 0.0
      %1793 = vmatpush1.msra.mxu0 0.0
      %1794 = vmatprep.subr.mxu0 0.0
      %1795 = vmatpush1.msra.mxu0 0.0
      %1796 = vmatprep.subr.mxu0 0.0
      %1797 = vmatpush1.msra.mxu0 0.0
      %1798 = vmatprep.subr.mxu0 0.0
      %1799 = vmatpush1.msra.mxu0 0.0
      %1800 = vmatprep.subr.mxu0 0.0
      %1801 = vmatpush1.msra.mxu0 0.0
      %1802 = vmatprep.subr.mxu0 0.0
      %1803 = vmatpush1.msra.mxu0 0.0
      %1804 = vmatprep.subr.mxu0 0.0
      %1805 = vmatpush1.msra.mxu0 0.0
      %1806 = vmatprep.subr.mxu0 0.0
      %1807 = vmatpush1.msra.mxu0 0.0
      %1808 = vmatprep.subr.mxu0 0.0
      %1809 = vmatpush1.msra.mxu0 0.0
      %1810 = vmatprep.subr.mxu0 0.0
      %1811 = vmatpush1.msra.mxu0 0.0
      %1812 = vmatprep.subr.mxu0 0.0
      %1813 = vmatpush1.msra.mxu0 %v1685
      %1814 = vmatprep.subr.mxu0 0.0
      %1815 = vmatpush2.msra.mxu0 0.0
      %1816 = vmatprep.subr.mxu0 0.0
      %1817 = vmatpush2.msra.mxu0 0.0
      %1818 = vmatprep.subr.mxu0 0.0
      %1819 = vmatpush2.msra.mxu0 0.0
      %1820 = vmatprep.subr.mxu0 0.0
      %1821 = vmatpush2.msra.mxu0 0.0
      %1822 = vmatprep.subr.mxu0 0.0
      %1823 = vmatpush2.msra.mxu0 0.0
      %1824 = vmatprep.subr.mxu0 0.0
      %1825 = vmatpush2.msra.mxu0 0.0
      %1826 = vmatprep.subr.mxu0 0.0
      %1827 = vmatpush2.msra.mxu0 0.0
      %1828 = vmatprep.subr.mxu0 0.0
      %1829 = vmatpush2.msra.mxu0 0.0
      %1830 = vmatprep.subr.mxu0 0.0
      %1831 = vmatpush2.msra.mxu0 0.0
      %1832 = vmatprep.subr.mxu0 0.0
      %1833 = vmatpush2.msra.mxu0 0.0
      %1834 = vmatprep.subr.mxu0 0.0
      %1835 = vmatpush2.msra.mxu0 0.0
      %1836 = vmatprep.subr.mxu0 0.0
      %1837 = vmatpush2.msra.mxu0 0.0
      %1838 = vmatprep.subr.mxu0 0.0
      %1839 = vmatpush2.msra.mxu0 0.0
      %1840 = vmatprep.subr.mxu0 0.0
      %1841 = vmatpush2.msra.mxu0 0.0
      %1842 = vmatprep.subr.mxu0 0.0
      %1843 = vmatpush2.msra.mxu0 0.0
      %1844 = vmatprep.subr.mxu0 0.0
      %1845 = vmatpush2.msra.mxu0 0.0
      %1846 = vmatprep.mubr.f32.mxu0 0.0
      %1847 = vmatmul.mubr.f32.gmra.mxu0 %v1687
      %v1848 = vpop.f32.mrf.mxu0
      %v1849 = vadd.f32 0.0, %v1848
      %v1850 = vpop.f32.mrf.mxu0
      %1851 = vmatprep.mubr.f32.mxu0 0.0
      %1852 = vmatmul.mubr.f32.gmra.mxu0 %v1690
      %v1853 = vpop.f32.mrf.mxu0
      %v1854 = vadd.f32 0.0, %v1853
      %v1855 = vpop.f32.mrf.mxu0
      %1856 = vmatprep.mubr.f32.mxu0 0.0
      %1857 = vmatmul.mubr.f32.gmra.mxu0 %v1693
      %v1858 = vpop.f32.mrf.mxu0
      %v1859 = vadd.f32 0.0, %v1858
      %v1860 = vpop.f32.mrf.mxu0
      %1861 = vmatprep.mubr.f32.mxu0 0.0
      %1862 = vmatmul.mubr.f32.gmra.mxu0 %v1696
      %v1863 = vpop.f32.mrf.mxu0
      %v1864 = vadd.f32 0.0, %v1863
      %v1865 = vpop.f32.mrf.mxu0
      %1866 = vmatprep.mubr.f32.mxu0 0.0
      %1867 = vmatmul.mubr.f32.gmra.mxu0 %v1699
      %v1868 = vpop.f32.mrf.mxu0
      %v1869 = vadd.f32 0.0, %v1868
      %v1870 = vpop.f32.mrf.mxu0
      %1871 = vmatprep.mubr.f32.mxu0 0.0
      %1872 = vmatmul.mubr.f32.gmra.mxu0 %v1702
      %v1873 = vpop.f32.mrf.mxu0
      %v1874 = vadd.f32 0.0, %v1873
      %v1875 = vpop.f32.mrf.mxu0
      %1876 = vmatprep.mubr.f32.mxu0 0.0
      %1877 = vmatmul.mubr.f32.gmra.mxu0 %v1705
      %v1878 = vpop.f32.mrf.mxu0
      %v1879 = vadd.f32 0.0, %v1878
      %v1880 = vpop.f32.mrf.mxu0
      %1881 = vmatprep.mubr.f32.mxu0 0.0
      %1882 = vmatmul.mubr.f32.gmra.mxu0 %v1708
      %v1883 = vpop.f32.mrf.mxu0
      %v1884 = vadd.f32 0.0, %v1883
      %v1885 = vpop.f32.mrf.mxu0
      %1886 = vmatprep.mubr.f32.mxu0 0.0
      %1887 = vmatmul.mubr.f32.gmra.mxu0 %v1711
      %v1888 = vpop.f32.mrf.mxu0
      %v1889 = vadd.f32 0.0, %v1888
      %v1890 = vpop.f32.mrf.mxu0
      %1891 = vmatprep.mubr.f32.mxu0 0.0
      %1892 = vmatmul.mubr.f32.gmra.mxu0 %v1714
      %v1893 = vpop.f32.mrf.mxu0
      %v1894 = vadd.f32 0.0, %v1893
      %v1895 = vpop.f32.mrf.mxu0
      %1896 = vmatprep.mubr.f32.mxu0 0.0
      %1897 = vmatmul.mubr.f32.gmra.mxu0 %v1717
      %v1898 = vpop.f32.mrf.mxu0
      %v1899 = vadd.f32 0.0, %v1898
      %v1900 = vpop.f32.mrf.mxu0
      %1901 = vmatprep.mubr.f32.mxu0 0.0
      %1902 = vmatmul.mubr.f32.gmra.mxu0 %v1720
      %v1903 = vpop.f32.mrf.mxu0
      %v1904 = vadd.f32 0.0, %v1903
      %v1905 = vpop.f32.mrf.mxu0
      %1906 = vmatprep.mubr.f32.mxu0 0.0
      %1907 = vmatmul.mubr.f32.gmra.mxu0 %v1723
      %v1908 = vpop.f32.mrf.mxu0
      %v1909 = vadd.f32 0.0, %v1908
      %v1910 = vpop.f32.mrf.mxu0
      %1911 = vmatprep.mubr.f32.mxu0 0.0
      %1912 = vmatmul.mubr.f32.gmra.mxu0 %v1726
      %v1913 = vpop.f32.mrf.mxu0
      %v1914 = vadd.f32 0.0, %v1913
      %v1915 = vpop.f32.mrf.mxu0
      %1916 = vmatprep.mubr.f32.mxu0 0.0
      %1917 = vmatmul.mubr.f32.gmra.mxu0 %v1729
      %v1918 = vpop.f32.mrf.mxu0
      %v1919 = vadd.f32 0.0, %v1918
      %v1920 = vpop.f32.mrf.mxu0
      %1921 = vmatprep.mubr.f32.mxu0 0.0
      %1922 = vmatmul.mubr.f32.gmra.mxu0 %v1732
      %v1923 = vpop.f32.mrf.mxu0
      %v1924 = vadd.f32 0.0, %v1923
      %v1925 = vpop.f32.mrf.mxu0
      %1926 = vmatprep.mubr.f32.mxu0 0.0
      %1927 = vmatmul.mubr.f32.gmra.mxu0 %v1735
      %v1928 = vpop.f32.mrf.mxu0
      %v1929 = vadd.f32 0.0, %v1928
      %v1930 = vpop.f32.mrf.mxu0
      %1931 = vmatprep.mubr.f32.mxu0 0.0
      %1932 = vmatmul.mubr.f32.gmra.mxu0 %v1738
      %v1933 = vpop.f32.mrf.mxu0
      %v1934 = vadd.f32 0.0, %v1933
      %v1935 = vpop.f32.mrf.mxu0
      %1936 = vmatprep.mubr.f32.mxu0 0.0
      %1937 = vmatmul.mubr.f32.gmra.mxu0 %v1741
      %v1938 = vpop.f32.mrf.mxu0
      %v1939 = vadd.f32 0.0, %v1938
      %v1940 = vpop.f32.mrf.mxu0
      %1941 = vmatprep.mubr.f32.mxu0 0.0
      %1942 = vmatmul.mubr.f32.gmra.mxu0 %v1744
      %v1943 = vpop.f32.mrf.mxu0
      %v1944 = vadd.f32 0.0, %v1943
      %v1945 = vpop.f32.mrf.mxu0
      %1946 = vmatprep.mubr.f32.mxu0 0.0
      %1947 = vmatmul.mubr.f32.gmra.mxu0 %v1747
      %v1948 = vpop.f32.mrf.mxu0
      %v1949 = vadd.f32 0.0, %v1948
      %v1950 = vpop.f32.mrf.mxu0
      %1951 = vmatprep.mubr.f32.mxu0 0.0
      %1952 = vmatmul.mubr.f32.gmra.mxu0 %v1750
      %v1953 = vpop.f32.mrf.mxu0
      %v1954 = vadd.f32 0.0, %v1953
      %v1955 = vpop.f32.mrf.mxu0
      %1956 = vmatprep.mubr.f32.mxu0 0.0
      %1957 = vmatmul.mubr.f32.gmra.mxu0 %v1753
      %v1958 = vpop.f32.mrf.mxu0
      %v1959 = vadd.f32 0.0, %v1958
      %v1960 = vpop.f32.mrf.mxu0
      %1961 = vmatprep.mubr.f32.mxu0 0.0
      %1962 = vmatmul.mubr.f32.gmra.mxu0 %v1756
      %v1963 = vpop.f32.mrf.mxu0
      %v1964 = vadd.f32 0.0, %v1963
      %v1965 = vpop.f32.mrf.mxu0
      %1966 = vmatprep.mubr.f32.mxu0 0.0
      %1967 = vmatmul.mubr.f32.gmra.mxu0 %v1759
      %v1968 = vpop.f32.mrf.mxu0
      %v1969 = vadd.f32 0.0, %v1968
      %v1970 = vpop.f32.mrf.mxu0
      %1971 = vmatprep.mubr.f32.mxu0 0.0
      %1972 = vmatmul.mubr.f32.gmra.mxu0 %v1762
      %v1973 = vpop.f32.mrf.mxu0
      %v1974 = vadd.f32 0.0, %v1973
      %v1975 = vpop.f32.mrf.mxu0
      %1976 = vmatprep.mubr.f32.mxu0 0.0
      %1977 = vmatmul.mubr.f32.gmra.mxu0 %v1765
      %v1978 = vpop.f32.mrf.mxu0
      %v1979 = vadd.f32 0.0, %v1978
      %v1980 = vpop.f32.mrf.mxu0
      %1981 = vmatprep.mubr.f32.mxu0 0.0
      %1982 = vmatmul.mubr.f32.gmra.mxu0 %v1768
      %v1983 = vpop.f32.mrf.mxu0
      %v1984 = vadd.f32 0.0, %v1983
      %v1985 = vpop.f32.mrf.mxu0
      %1986 = vmatprep.mubr.f32.mxu0 0.0
      %1987 = vmatmul.mubr.f32.gmra.mxu0 %v1771
      %v1988 = vpop.f32.mrf.mxu0
      %v1989 = vadd.f32 0.0, %v1988
      %v1990 = vpop.f32.mrf.mxu0
      %1991 = vmatprep.mubr.f32.mxu0 0.0
      %1992 = vmatmul.mubr.f32.gmra.mxu0 %v1774
      %v1993 = vpop.f32.mrf.mxu0
      %v1994 = vadd.f32 0.0, %v1993
      %v1995 = vpop.f32.mrf.mxu0
      %1996 = vmatprep.mubr.f32.mxu0 0.0
      %1997 = vmatmul.mubr.f32.gmra.mxu0 %v1777
      %v1998 = vpop.f32.mrf.mxu0
      %v1999 = vadd.f32 0.0, %v1998
      %v2000 = vpop.f32.mrf.mxu0
      %2001 = vmatprep.mubr.f32.mxu0 0.0
      %2002 = vmatmul.mubr.f32.gmra.mxu0 %v1780
      %v2003 = vpop.f32.mrf.mxu0
      %v2004 = vadd.f32 0.0, %v2003
      %v2005 = vpop.f32.mrf.mxu0
      %2006 = vdwg.mxu0
      %v2007 = vadd.f32 %v1366, %v1849
      %v2008 = vadd.f32 %v1371, %v1854
      %v2009 = vadd.f32 %v1376, %v1859
      %v2010 = vadd.f32 %v1381, %v1864
      %v2011 = vadd.f32 %v1386, %v1869
      %v2012 = vadd.f32 %v1391, %v1874
      %v2013 = vadd.f32 %v1396, %v1879
      %v2014 = vadd.f32 %v1401, %v1884
      %v2015 = vadd.f32 %v1406, %v1889
      %v2016 = vadd.f32 %v1411, %v1894
      %v2017 = vadd.f32 %v1416, %v1899
      %v2018 = vadd.f32 %v1421, %v1904
      %v2019 = vadd.f32 %v1426, %v1909
      %v2020 = vadd.f32 %v1431, %v1914
      %v2021 = vadd.f32 %v1436, %v1919
      %v2022 = vadd.f32 %v1441, %v1924
      %v2023 = vadd.f32 %v1446, %v1929
      %v2024 = vadd.f32 %v1451, %v1934
      %v2025 = vadd.f32 %v1456, %v1939
      %v2026 = vadd.f32 %v1461, %v1944
      %v2027 = vadd.f32 %v1466, %v1949
      %v2028 = vadd.f32 %v1471, %v1954
      %v2029 = vadd.f32 %v1476, %v1959
      %v2030 = vadd.f32 %v1481, %v1964
      %v2031 = vadd.f32 %v1486, %v1969
      %v2032 = vadd.f32 %v1491, %v1974
      %v2033 = vadd.f32 %v1496, %v1979
      %v2034 = vadd.f32 %v1501, %v1984
      %v2035 = vadd.f32 %v1506, %v1989
      %v2036 = vadd.f32 %v1511, %v1994
      %v2037 = vadd.f32 %v1516, %v1999
      %v2038 = vadd.f32 %v1521, %v2004
      %v2039 = vld [vmem:[#allocation2 + $0x10] sm:$0xff]
      %v2040 = vld [vmem:[#allocation2 + $0x18] sm:$0xff]
      %v2041 = vld [vmem:[#allocation2 + $0x20] sm:$0xff]
      %v2042 = vld [vmem:[#allocation2 + $0x28] sm:$0xff]
      %v2043 = vld [vmem:[#allocation2 + $0x30] sm:$0xff]
      %v2044 = vld [vmem:[#allocation2 + $0x38] sm:$0xff]
      %v2045 = vld [vmem:[#allocation2 + $0x40] sm:$0xff]
      %v2046 = vld [vmem:[#allocation2 + $0x48] sm:$0xff]
      %v2047 = vld [vmem:[#allocation2 + $0x50] sm:$0xff]
      %v2048 = vld [vmem:[#allocation2 + $0x58] sm:$0xff]
      %v2049 = vld [vmem:[#allocation2 + $0x60] sm:$0xff]
      %v2050 = vld [vmem:[#allocation2 + $0x68] sm:$0xff]
      %v2051 = vld [vmem:[#allocation2 + $0x70] sm:$0xff]
      %v2052 = vld [vmem:[#allocation2 + $0x78] sm:$0xff]
      %v2053 = vld [vmem:[#allocation2 + $0x80] sm:$0xff]
      %v2054 = vld [vmem:[#allocation2 + $0x88] sm:$0xff]
      %v2055 = vld [vmem:[#allocation2 + $0x90] sm:$0xff]
      %v2056 = vld [vmem:[#allocation2 + $0x98] sm:$0xff]
      %v2057 = vld [vmem:[#allocation2 + $0xa0] sm:$0xff]
      %v2058 = vld [vmem:[#allocation2 + $0xa8] sm:$0xff]
      %v2059 = vld [vmem:[#allocation2 + $0xb0] sm:$0xff]
      %v2060 = vld [vmem:[#allocation2 + $0xb8] sm:$0xff]
      %v2061 = vld [vmem:[#allocation2 + $0xc0] sm:$0xff]
      %v2062 = vld [vmem:[#allocation2 + $0xc8] sm:$0xff]
      %v2063 = vld [vmem:[#allocation2 + $0xd0] sm:$0xff]
      %v2064 = vld [vmem:[#allocation2 + $0xd8] sm:$0xff]
      %v2065 = vld [vmem:[#allocation2 + $0xe0] sm:$0xff]
      %v2066 = vld [vmem:[#allocation2 + $0xe8] sm:$0xff]
      %v2067 = vld [vmem:[#allocation2 + $0xf0] sm:$0xff]
      %v2068 = vld [vmem:[#allocation2 + $0xf8] sm:$0xff]
      %v2069 = vld [vmem:[#allocation2 + $0x100] sm:$0xff]
      %v2070 = vld [vmem:[#allocation2 + $0x108] sm:$0xff]
      %v2071 = vsel %vm783, %v2039, 0.0
      %v2072 = vsel %vm784, %v2040, 0.0
      %v2073 = vsel %vm785, %v2041, 0.0
      %v2074 = vsel %vm786, %v2042, 0.0
      %v2075 = vsel %vm787, %v2043, 0.0
      %v2076 = vsel %vm788, %v2044, 0.0
      %v2077 = vsel %vm789, %v2045, 0.0
      %v2078 = vsel %vm790, %v2046, 0.0
      %v2079 = vsel %vm791, %v2047, 0.0
      %v2080 = vsel %vm792, %v2048, 0.0
      %v2081 = vsel %vm793, %v2049, 0.0
      %v2082 = vsel %vm794, %v2050, 0.0
      %v2083 = vsel %vm795, %v2051, 0.0
      %v2084 = vsel %vm796, %v2052, 0.0
      %v2085 = vsel %vm797, %v2053, 0.0
      %v2086 = vsel %vm798, %v2054, 0.0
      %v2087 = vsel %vm799, %v2055, 0.0
      %v2088 = vsel %vm800, %v2056, 0.0
      %v2089 = vsel %vm801, %v2057, 0.0
      %v2090 = vsel %vm802, %v2058, 0.0
      %v2091 = vsel %vm803, %v2059, 0.0
      %v2092 = vsel %vm804, %v2060, 0.0
      %v2093 = vsel %vm805, %v2061, 0.0
      %v2094 = vsel %vm806, %v2062, 0.0
      %v2095 = vsel %vm807, %v2063, 0.0
      %v2096 = vsel %vm808, %v2064, 0.0
      %v2097 = vsel %vm809, %v2065, 0.0
      %v2098 = vsel %vm810, %v2066, 0.0
      %v2099 = vsel %vm811, %v2067, 0.0
      %v2100 = vsel %vm812, %v2068, 0.0
      %v2101 = vsel %vm813, %v2069, 0.0
      %v2102 = vsel %vm814, %v2070, 0.0
      %s2103 = scalar_lea.vmem %s1, 24
      %v2104 = vld [vmem:[%s2103] sm:$0xff]
      %v2106 = vsel %vm198, %v2071, 0
      %v2109 = vsel %vm198, %v2072, 0
      %v2112 = vsel %vm198, %v2073, 0
      %v2115 = vsel %vm198, %v2074, 0
      %v2118 = vsel %vm198, %v2075, 0
      %v2121 = vsel %vm198, %v2076, 0
      %v2124 = vsel %vm198, %v2077, 0
      %v2127 = vsel %vm198, %v2078, 0
      %v2130 = vsel %vm198, %v2079, 0
      %v2133 = vsel %vm198, %v2080, 0
      %v2136 = vsel %vm198, %v2081, 0
      %v2139 = vsel %vm198, %v2082, 0
      %v2142 = vsel %vm198, %v2083, 0
      %v2145 = vsel %vm198, %v2084, 0
      %v2148 = vsel %vm198, %v2085, 0
      %v2151 = vsel %vm198, %v2086, 0
      %v2154 = vsel %vm198, %v2087, 0
      %v2157 = vsel %vm198, %v2088, 0
      %v2160 = vsel %vm198, %v2089, 0
      %v2163 = vsel %vm198, %v2090, 0
      %v2166 = vsel %vm198, %v2091, 0
      %v2169 = vsel %vm198, %v2092, 0
      %v2172 = vsel %vm198, %v2093, 0
      %v2175 = vsel %vm198, %v2094, 0
      %v2178 = vsel %vm198, %v2095, 0
      %v2181 = vsel %vm198, %v2096, 0
      %v2184 = vsel %vm198, %v2097, 0
      %v2187 = vsel %vm198, %v2098, 0
      %v2190 = vsel %vm198, %v2099, 0
      %v2193 = vsel %vm198, %v2100, 0
      %v2196 = vsel %vm198, %v2101, 0
      %v2199 = vsel %vm198, %v2102, 0
      %2201 = vmatprep.subr.mxu0 0.0
      %2202 = vmatpush1.msra.mxu0 0.0
      %2203 = vmatprep.subr.mxu0 0.0
      %2204 = vmatpush1.msra.mxu0 0.0
      %2205 = vmatprep.subr.mxu0 0.0
      %2206 = vmatpush1.msra.mxu0 0.0
      %2207 = vmatprep.subr.mxu0 0.0
      %2208 = vmatpush1.msra.mxu0 0.0
      %2209 = vmatprep.subr.mxu0 0.0
      %2210 = vmatpush1.msra.mxu0 0.0
      %2211 = vmatprep.subr.mxu0 0.0
      %2212 = vmatpush1.msra.mxu0 0.0
      %2213 = vmatprep.subr.mxu0 0.0
      %2214 = vmatpush1.msra.mxu0 0.0
      %2215 = vmatprep.subr.mxu0 0.0
      %2216 = vmatpush1.msra.mxu0 0.0
      %2217 = vmatprep.subr.mxu0 0.0
      %2218 = vmatpush1.msra.mxu0 0.0
      %2219 = vmatprep.subr.mxu0 0.0
      %2220 = vmatpush1.msra.mxu0 0.0
      %2221 = vmatprep.subr.mxu0 0.0
      %2222 = vmatpush1.msra.mxu0 0.0
      %2223 = vmatprep.subr.mxu0 0.0
      %2224 = vmatpush1.msra.mxu0 0.0
      %2225 = vmatprep.subr.mxu0 0.0
      %2226 = vmatpush1.msra.mxu0 0.0
      %2227 = vmatprep.subr.mxu0 0.0
      %2228 = vmatpush1.msra.mxu0 0.0
      %2229 = vmatprep.subr.mxu0 0.0
      %2230 = vmatpush1.msra.mxu0 0.0
      %2231 = vmatprep.subr.mxu0 0.0
      %2232 = vmatpush1.msra.mxu0 %v2104
      %2233 = vmatprep.subr.mxu0 0.0
      %2234 = vmatpush2.msra.mxu0 0.0
      %2235 = vmatprep.subr.mxu0 0.0
      %2236 = vmatpush2.msra.mxu0 0.0
      %2237 = vmatprep.subr.mxu0 0.0
      %2238 = vmatpush2.msra.mxu0 0.0
      %2239 = vmatprep.subr.mxu0 0.0
      %2240 = vmatpush2.msra.mxu0 0.0
      %2241 = vmatprep.subr.mxu0 0.0
      %2242 = vmatpush2.msra.mxu0 0.0
      %2243 = vmatprep.subr.mxu0 0.0
      %2244 = vmatpush2.msra.mxu0 0.0
      %2245 = vmatprep.subr.mxu0 0.0
      %2246 = vmatpush2.msra.mxu0 0.0
      %2247 = vmatprep.subr.mxu0 0.0
      %2248 = vmatpush2.msra.mxu0 0.0
      %2249 = vmatprep.subr.mxu0 0.0
      %2250 = vmatpush2.msra.mxu0 0.0
      %2251 = vmatprep.subr.mxu0 0.0
      %2252 = vmatpush2.msra.mxu0 0.0
      %2253 = vmatprep.subr.mxu0 0.0
      %2254 = vmatpush2.msra.mxu0 0.0
      %2255 = vmatprep.subr.mxu0 0.0
      %2256 = vmatpush2.msra.mxu0 0.0
      %2257 = vmatprep.subr.mxu0 0.0
      %2258 = vmatpush2.msra.mxu0 0.0
      %2259 = vmatprep.subr.mxu0 0.0
      %2260 = vmatpush2.msra.mxu0 0.0
      %2261 = vmatprep.subr.mxu0 0.0
      %2262 = vmatpush2.msra.mxu0 0.0
      %2263 = vmatprep.subr.mxu0 0.0
      %2264 = vmatpush2.msra.mxu0 0.0
      %2265 = vmatprep.mubr.f32.mxu0 0.0
      %2266 = vmatmul.mubr.f32.gmra.mxu0 %v2106
      %v2267 = vpop.f32.mrf.mxu0
      %v2268 = vadd.f32 0.0, %v2267
      %v2269 = vpop.f32.mrf.mxu0
      %2270 = vmatprep.mubr.f32.mxu0 0.0
      %2271 = vmatmul.mubr.f32.gmra.mxu0 %v2109
      %v2272 = vpop.f32.mrf.mxu0
      %v2273 = vadd.f32 0.0, %v2272
      %v2274 = vpop.f32.mrf.mxu0
      %2275 = vmatprep.mubr.f32.mxu0 0.0
      %2276 = vmatmul.mubr.f32.gmra.mxu0 %v2112
      %v2277 = vpop.f32.mrf.mxu0
      %v2278 = vadd.f32 0.0, %v2277
      %v2279 = vpop.f32.mrf.mxu0
      %2280 = vmatprep.mubr.f32.mxu0 0.0
      %2281 = vmatmul.mubr.f32.gmra.mxu0 %v2115
      %v2282 = vpop.f32.mrf.mxu0
      %v2283 = vadd.f32 0.0, %v2282
      %v2284 = vpop.f32.mrf.mxu0
      %2285 = vmatprep.mubr.f32.mxu0 0.0
      %2286 = vmatmul.mubr.f32.gmra.mxu0 %v2118
      %v2287 = vpop.f32.mrf.mxu0
      %v2288 = vadd.f32 0.0, %v2287
      %v2289 = vpop.f32.mrf.mxu0
      %2290 = vmatprep.mubr.f32.mxu0 0.0
      %2291 = vmatmul.mubr.f32.gmra.mxu0 %v2121
      %v2292 = vpop.f32.mrf.mxu0
      %v2293 = vadd.f32 0.0, %v2292
      %v2294 = vpop.f32.mrf.mxu0
      %2295 = vmatprep.mubr.f32.mxu0 0.0
      %2296 = vmatmul.mubr.f32.gmra.mxu0 %v2124
      %v2297 = vpop.f32.mrf.mxu0
      %v2298 = vadd.f32 0.0, %v2297
      %v2299 = vpop.f32.mrf.mxu0
      %2300 = vmatprep.mubr.f32.mxu0 0.0
      %2301 = vmatmul.mubr.f32.gmra.mxu0 %v2127
      %v2302 = vpop.f32.mrf.mxu0
      %v2303 = vadd.f32 0.0, %v2302
      %v2304 = vpop.f32.mrf.mxu0
      %2305 = vmatprep.mubr.f32.mxu0 0.0
      %2306 = vmatmul.mubr.f32.gmra.mxu0 %v2130
      %v2307 = vpop.f32.mrf.mxu0
      %v2308 = vadd.f32 0.0, %v2307
      %v2309 = vpop.f32.mrf.mxu0
      %2310 = vmatprep.mubr.f32.mxu0 0.0
      %2311 = vmatmul.mubr.f32.gmra.mxu0 %v2133
      %v2312 = vpop.f32.mrf.mxu0
      %v2313 = vadd.f32 0.0, %v2312
      %v2314 = vpop.f32.mrf.mxu0
      %2315 = vmatprep.mubr.f32.mxu0 0.0
      %2316 = vmatmul.mubr.f32.gmra.mxu0 %v2136
      %v2317 = vpop.f32.mrf.mxu0
      %v2318 = vadd.f32 0.0, %v2317
      %v2319 = vpop.f32.mrf.mxu0
      %2320 = vmatprep.mubr.f32.mxu0 0.0
      %2321 = vmatmul.mubr.f32.gmra.mxu0 %v2139
      %v2322 = vpop.f32.mrf.mxu0
      %v2323 = vadd.f32 0.0, %v2322
      %v2324 = vpop.f32.mrf.mxu0
      %2325 = vmatprep.mubr.f32.mxu0 0.0
      %2326 = vmatmul.mubr.f32.gmra.mxu0 %v2142
      %v2327 = vpop.f32.mrf.mxu0
      %v2328 = vadd.f32 0.0, %v2327
      %v2329 = vpop.f32.mrf.mxu0
      %2330 = vmatprep.mubr.f32.mxu0 0.0
      %2331 = vmatmul.mubr.f32.gmra.mxu0 %v2145
      %v2332 = vpop.f32.mrf.mxu0
      %v2333 = vadd.f32 0.0, %v2332
      %v2334 = vpop.f32.mrf.mxu0
      %2335 = vmatprep.mubr.f32.mxu0 0.0
      %2336 = vmatmul.mubr.f32.gmra.mxu0 %v2148
      %v2337 = vpop.f32.mrf.mxu0
      %v2338 = vadd.f32 0.0, %v2337
      %v2339 = vpop.f32.mrf.mxu0
      %2340 = vmatprep.mubr.f32.mxu0 0.0
      %2341 = vmatmul.mubr.f32.gmra.mxu0 %v2151
      %v2342 = vpop.f32.mrf.mxu0
      %v2343 = vadd.f32 0.0, %v2342
      %v2344 = vpop.f32.mrf.mxu0
      %2345 = vmatprep.mubr.f32.mxu0 0.0
      %2346 = vmatmul.mubr.f32.gmra.mxu0 %v2154
      %v2347 = vpop.f32.mrf.mxu0
      %v2348 = vadd.f32 0.0, %v2347
      %v2349 = vpop.f32.mrf.mxu0
      %2350 = vmatprep.mubr.f32.mxu0 0.0
      %2351 = vmatmul.mubr.f32.gmra.mxu0 %v2157
      %v2352 = vpop.f32.mrf.mxu0
      %v2353 = vadd.f32 0.0, %v2352
      %v2354 = vpop.f32.mrf.mxu0
      %2355 = vmatprep.mubr.f32.mxu0 0.0
      %2356 = vmatmul.mubr.f32.gmra.mxu0 %v2160
      %v2357 = vpop.f32.mrf.mxu0
      %v2358 = vadd.f32 0.0, %v2357
      %v2359 = vpop.f32.mrf.mxu0
      %2360 = vmatprep.mubr.f32.mxu0 0.0
      %2361 = vmatmul.mubr.f32.gmra.mxu0 %v2163
      %v2362 = vpop.f32.mrf.mxu0
      %v2363 = vadd.f32 0.0, %v2362
      %v2364 = vpop.f32.mrf.mxu0
      %2365 = vmatprep.mubr.f32.mxu0 0.0
      %2366 = vmatmul.mubr.f32.gmra.mxu0 %v2166
      %v2367 = vpop.f32.mrf.mxu0
      %v2368 = vadd.f32 0.0, %v2367
      %v2369 = vpop.f32.mrf.mxu0
      %2370 = vmatprep.mubr.f32.mxu0 0.0
      %2371 = vmatmul.mubr.f32.gmra.mxu0 %v2169
      %v2372 = vpop.f32.mrf.mxu0
      %v2373 = vadd.f32 0.0, %v2372
      %v2374 = vpop.f32.mrf.mxu0
      %2375 = vmatprep.mubr.f32.mxu0 0.0
      %2376 = vmatmul.mubr.f32.gmra.mxu0 %v2172
      %v2377 = vpop.f32.mrf.mxu0
      %v2378 = vadd.f32 0.0, %v2377
      %v2379 = vpop.f32.mrf.mxu0
      %2380 = vmatprep.mubr.f32.mxu0 0.0
      %2381 = vmatmul.mubr.f32.gmra.mxu0 %v2175
      %v2382 = vpop.f32.mrf.mxu0
      %v2383 = vadd.f32 0.0, %v2382
      %v2384 = vpop.f32.mrf.mxu0
      %2385 = vmatprep.mubr.f32.mxu0 0.0
      %2386 = vmatmul.mubr.f32.gmra.mxu0 %v2178
      %v2387 = vpop.f32.mrf.mxu0
      %v2388 = vadd.f32 0.0, %v2387
      %v2389 = vpop.f32.mrf.mxu0
      %2390 = vmatprep.mubr.f32.mxu0 0.0
      %2391 = vmatmul.mubr.f32.gmra.mxu0 %v2181
      %v2392 = vpop.f32.mrf.mxu0
      %v2393 = vadd.f32 0.0, %v2392
      %v2394 = vpop.f32.mrf.mxu0
      %2395 = vmatprep.mubr.f32.mxu0 0.0
      %2396 = vmatmul.mubr.f32.gmra.mxu0 %v2184
      %v2397 = vpop.f32.mrf.mxu0
      %v2398 = vadd.f32 0.0, %v2397
      %v2399 = vpop.f32.mrf.mxu0
      %2400 = vmatprep.mubr.f32.mxu0 0.0
      %2401 = vmatmul.mubr.f32.gmra.mxu0 %v2187
      %v2402 = vpop.f32.mrf.mxu0
      %v2403 = vadd.f32 0.0, %v2402
      %v2404 = vpop.f32.mrf.mxu0
      %2405 = vmatprep.mubr.f32.mxu0 0.0
      %2406 = vmatmul.mubr.f32.gmra.mxu0 %v2190
      %v2407 = vpop.f32.mrf.mxu0
      %v2408 = vadd.f32 0.0, %v2407
      %v2409 = vpop.f32.mrf.mxu0
      %2410 = vmatprep.mubr.f32.mxu0 0.0
      %2411 = vmatmul.mubr.f32.gmra.mxu0 %v2193
      %v2412 = vpop.f32.mrf.mxu0
      %v2413 = vadd.f32 0.0, %v2412
      %v2414 = vpop.f32.mrf.mxu0
      %2415 = vmatprep.mubr.f32.mxu0 0.0
      %2416 = vmatmul.mubr.f32.gmra.mxu0 %v2196
      %v2417 = vpop.f32.mrf.mxu0
      %v2418 = vadd.f32 0.0, %v2417
      %v2419 = vpop.f32.mrf.mxu0
      %2420 = vmatprep.mubr.f32.mxu0 0.0
      %2421 = vmatmul.mubr.f32.gmra.mxu0 %v2199
      %v2422 = vpop.f32.mrf.mxu0
      %v2423 = vadd.f32 0.0, %v2422
      %v2424 = vpop.f32.mrf.mxu0
      %2425 = vdwg.mxu0
      %v2426 = vadd.f32 %v2007, %v2268
      %v2427 = vadd.f32 %v2008, %v2273
      %v2428 = vadd.f32 %v2009, %v2278
      %v2429 = vadd.f32 %v2010, %v2283
      %v2430 = vadd.f32 %v2011, %v2288
      %v2431 = vadd.f32 %v2012, %v2293
      %v2432 = vadd.f32 %v2013, %v2298
      %v2433 = vadd.f32 %v2014, %v2303
      %v2434 = vadd.f32 %v2015, %v2308
      %v2435 = vadd.f32 %v2016, %v2313
      %v2436 = vadd.f32 %v2017, %v2318
      %v2437 = vadd.f32 %v2018, %v2323
      %v2438 = vadd.f32 %v2019, %v2328
      %v2439 = vadd.f32 %v2020, %v2333
      %v2440 = vadd.f32 %v2021, %v2338
      %v2441 = vadd.f32 %v2022, %v2343
      %v2442 = vadd.f32 %v2023, %v2348
      %v2443 = vadd.f32 %v2024, %v2353
      %v2444 = vadd.f32 %v2025, %v2358
      %v2445 = vadd.f32 %v2026, %v2363
      %v2446 = vadd.f32 %v2027, %v2368
      %v2447 = vadd.f32 %v2028, %v2373
      %v2448 = vadd.f32 %v2029, %v2378
      %v2449 = vadd.f32 %v2030, %v2383
      %v2450 = vadd.f32 %v2031, %v2388
      %v2451 = vadd.f32 %v2032, %v2393
      %v2452 = vadd.f32 %v2033, %v2398
      %v2453 = vadd.f32 %v2034, %v2403
      %v2454 = vadd.f32 %v2035, %v2408
      %v2455 = vadd.f32 %v2036, %v2413
      %v2456 = vadd.f32 %v2037, %v2418
      %v2457 = vadd.f32 %v2038, %v2423
      %v2458 = vld [vmem:[#allocation2 + $0x11] sm:$0xff]
      %v2459 = vld [vmem:[#allocation2 + $0x19] sm:$0xff]
      %v2460 = vld [vmem:[#allocation2 + $0x21] sm:$0xff]
      %v2461 = vld [vmem:[#allocation2 + $0x29] sm:$0xff]
      %v2462 = vld [vmem:[#allocation2 + $0x31] sm:$0xff]
      %v2463 = vld [vmem:[#allocation2 + $0x39] sm:$0xff]
      %v2464 = vld [vmem:[#allocation2 + $0x41] sm:$0xff]
      %v2465 = vld [vmem:[#allocation2 + $0x49] sm:$0xff]
      %v2466 = vld [vmem:[#allocation2 + $0x51] sm:$0xff]
      %v2467 = vld [vmem:[#allocation2 + $0x59] sm:$0xff]
      %v2468 = vld [vmem:[#allocation2 + $0x61] sm:$0xff]
      %v2469 = vld [vmem:[#allocation2 + $0x69] sm:$0xff]
      %v2470 = vld [vmem:[#allocation2 + $0x71] sm:$0xff]
      %v2471 = vld [vmem:[#allocation2 + $0x79] sm:$0xff]
      %v2472 = vld [vmem:[#allocation2 + $0x81] sm:$0xff]
      %v2473 = vld [vmem:[#allocation2 + $0x89] sm:$0xff]
      %v2474 = vld [vmem:[#allocation2 + $0x91] sm:$0xff]
      %v2475 = vld [vmem:[#allocation2 + $0x99] sm:$0xff]
      %v2476 = vld [vmem:[#allocation2 + $0xa1] sm:$0xff]
      %v2477 = vld [vmem:[#allocation2 + $0xa9] sm:$0xff]
      %v2478 = vld [vmem:[#allocation2 + $0xb1] sm:$0xff]
      %v2479 = vld [vmem:[#allocation2 + $0xb9] sm:$0xff]
      %v2480 = vld [vmem:[#allocation2 + $0xc1] sm:$0xff]
      %v2481 = vld [vmem:[#allocation2 + $0xc9] sm:$0xff]
      %v2482 = vld [vmem:[#allocation2 + $0xd1] sm:$0xff]
      %v2483 = vld [vmem:[#allocation2 + $0xd9] sm:$0xff]
      %v2484 = vld [vmem:[#allocation2 + $0xe1] sm:$0xff]
      %v2485 = vld [vmem:[#allocation2 + $0xe9] sm:$0xff]
      %v2486 = vld [vmem:[#allocation2 + $0xf1] sm:$0xff]
      %v2487 = vld [vmem:[#allocation2 + $0xf9] sm:$0xff]
      %v2488 = vld [vmem:[#allocation2 + $0x101] sm:$0xff]
      %v2489 = vld [vmem:[#allocation2 + $0x109] sm:$0xff]
      %s2490 = scalar_lea.vmem %s1, 32
      %v2491 = vld [vmem:[%s2490] sm:$0xff]
      %v2493 = vsel %vm198, %v2458, 0
      %v2496 = vsel %vm198, %v2459, 0
      %v2499 = vsel %vm198, %v2460, 0
      %v2502 = vsel %vm198, %v2461, 0
      %v2505 = vsel %vm198, %v2462, 0
      %v2508 = vsel %vm198, %v2463, 0
      %v2511 = vsel %vm198, %v2464, 0
      %v2514 = vsel %vm198, %v2465, 0
      %v2517 = vsel %vm198, %v2466, 0
      %v2520 = vsel %vm198, %v2467, 0
      %v2523 = vsel %vm198, %v2468, 0
      %v2526 = vsel %vm198, %v2469, 0
      %v2529 = vsel %vm198, %v2470, 0
      %v2532 = vsel %vm198, %v2471, 0
      %v2535 = vsel %vm198, %v2472, 0
      %v2538 = vsel %vm198, %v2473, 0
      %v2541 = vsel %vm198, %v2474, 0
      %v2544 = vsel %vm198, %v2475, 0
      %v2547 = vsel %vm198, %v2476, 0
      %v2550 = vsel %vm198, %v2477, 0
      %v2553 = vsel %vm198, %v2478, 0
      %v2556 = vsel %vm198, %v2479, 0
      %v2559 = vsel %vm198, %v2480, 0
      %v2562 = vsel %vm198, %v2481, 0
      %v2565 = vsel %vm198, %v2482, 0
      %v2568 = vsel %vm198, %v2483, 0
      %v2571 = vsel %vm198, %v2484, 0
      %v2574 = vsel %vm198, %v2485, 0
      %v2577 = vsel %vm198, %v2486, 0
      %v2580 = vsel %vm198, %v2487, 0
      %v2583 = vsel %vm198, %v2488, 0
      %v2586 = vsel %vm198, %v2489, 0
      %2588 = vmatprep.subr.mxu0 0.0
      %2589 = vmatpush1.msra.mxu0 0.0
      %2590 = vmatprep.subr.mxu0 0.0
      %2591 = vmatpush1.msra.mxu0 0.0
      %2592 = vmatprep.subr.mxu0 0.0
      %2593 = vmatpush1.msra.mxu0 0.0
      %2594 = vmatprep.subr.mxu0 0.0
      %2595 = vmatpush1.msra.mxu0 0.0
      %2596 = vmatprep.subr.mxu0 0.0
      %2597 = vmatpush1.msra.mxu0 0.0
      %2598 = vmatprep.subr.mxu0 0.0
      %2599 = vmatpush1.msra.mxu0 0.0
      %2600 = vmatprep.subr.mxu0 0.0
      %2601 = vmatpush1.msra.mxu0 0.0
      %2602 = vmatprep.subr.mxu0 0.0
      %2603 = vmatpush1.msra.mxu0 0.0
      %2604 = vmatprep.subr.mxu0 0.0
      %2605 = vmatpush1.msra.mxu0 0.0
      %2606 = vmatprep.subr.mxu0 0.0
      %2607 = vmatpush1.msra.mxu0 0.0
      %2608 = vmatprep.subr.mxu0 0.0
      %2609 = vmatpush1.msra.mxu0 0.0
      %2610 = vmatprep.subr.mxu0 0.0
      %2611 = vmatpush1.msra.mxu0 0.0
      %2612 = vmatprep.subr.mxu0 0.0
      %2613 = vmatpush1.msra.mxu0 0.0
      %2614 = vmatprep.subr.mxu0 0.0
      %2615 = vmatpush1.msra.mxu0 0.0
      %2616 = vmatprep.subr.mxu0 0.0
      %2617 = vmatpush1.msra.mxu0 0.0
      %2618 = vmatprep.subr.mxu0 0.0
      %2619 = vmatpush1.msra.mxu0 %v2491
      %2620 = vmatprep.subr.mxu0 0.0
      %2621 = vmatpush2.msra.mxu0 0.0
      %2622 = vmatprep.subr.mxu0 0.0
      %2623 = vmatpush2.msra.mxu0 0.0
      %2624 = vmatprep.subr.mxu0 0.0
      %2625 = vmatpush2.msra.mxu0 0.0
      %2626 = vmatprep.subr.mxu0 0.0
      %2627 = vmatpush2.msra.mxu0 0.0
      %2628 = vmatprep.subr.mxu0 0.0
      %2629 = vmatpush2.msra.mxu0 0.0
      %2630 = vmatprep.subr.mxu0 0.0
      %2631 = vmatpush2.msra.mxu0 0.0
      %2632 = vmatprep.subr.mxu0 0.0
      %2633 = vmatpush2.msra.mxu0 0.0
      %2634 = vmatprep.subr.mxu0 0.0
      %2635 = vmatpush2.msra.mxu0 0.0
      %2636 = vmatprep.subr.mxu0 0.0
      %2637 = vmatpush2.msra.mxu0 0.0
      %2638 = vmatprep.subr.mxu0 0.0
      %2639 = vmatpush2.msra.mxu0 0.0
      %2640 = vmatprep.subr.mxu0 0.0
      %2641 = vmatpush2.msra.mxu0 0.0
      %2642 = vmatprep.subr.mxu0 0.0
      %2643 = vmatpush2.msra.mxu0 0.0
      %2644 = vmatprep.subr.mxu0 0.0
      %2645 = vmatpush2.msra.mxu0 0.0
      %2646 = vmatprep.subr.mxu0 0.0
      %2647 = vmatpush2.msra.mxu0 0.0
      %2648 = vmatprep.subr.mxu0 0.0
      %2649 = vmatpush2.msra.mxu0 0.0
      %2650 = vmatprep.subr.mxu0 0.0
      %2651 = vmatpush2.msra.mxu0 0.0
      %2652 = vmatprep.mubr.f32.mxu0 0.0
      %2653 = vmatmul.mubr.f32.gmra.mxu0 %v2493
      %v2654 = vpop.f32.mrf.mxu0
      %v2655 = vadd.f32 0.0, %v2654
      %v2656 = vpop.f32.mrf.mxu0
      %2657 = vmatprep.mubr.f32.mxu0 0.0
      %2658 = vmatmul.mubr.f32.gmra.mxu0 %v2496
      %v2659 = vpop.f32.mrf.mxu0
      %v2660 = vadd.f32 0.0, %v2659
      %v2661 = vpop.f32.mrf.mxu0
      %2662 = vmatprep.mubr.f32.mxu0 0.0
      %2663 = vmatmul.mubr.f32.gmra.mxu0 %v2499
      %v2664 = vpop.f32.mrf.mxu0
      %v2665 = vadd.f32 0.0, %v2664
      %v2666 = vpop.f32.mrf.mxu0
      %2667 = vmatprep.mubr.f32.mxu0 0.0
      %2668 = vmatmul.mubr.f32.gmra.mxu0 %v2502
      %v2669 = vpop.f32.mrf.mxu0
      %v2670 = vadd.f32 0.0, %v2669
      %v2671 = vpop.f32.mrf.mxu0
      %2672 = vmatprep.mubr.f32.mxu0 0.0
      %2673 = vmatmul.mubr.f32.gmra.mxu0 %v2505
      %v2674 = vpop.f32.mrf.mxu0
      %v2675 = vadd.f32 0.0, %v2674
      %v2676 = vpop.f32.mrf.mxu0
      %2677 = vmatprep.mubr.f32.mxu0 0.0
      %2678 = vmatmul.mubr.f32.gmra.mxu0 %v2508
      %v2679 = vpop.f32.mrf.mxu0
      %v2680 = vadd.f32 0.0, %v2679
      %v2681 = vpop.f32.mrf.mxu0
      %2682 = vmatprep.mubr.f32.mxu0 0.0
      %2683 = vmatmul.mubr.f32.gmra.mxu0 %v2511
      %v2684 = vpop.f32.mrf.mxu0
      %v2685 = vadd.f32 0.0, %v2684
      %v2686 = vpop.f32.mrf.mxu0
      %2687 = vmatprep.mubr.f32.mxu0 0.0
      %2688 = vmatmul.mubr.f32.gmra.mxu0 %v2514
      %v2689 = vpop.f32.mrf.mxu0
      %v2690 = vadd.f32 0.0, %v2689
      %v2691 = vpop.f32.mrf.mxu0
      %2692 = vmatprep.mubr.f32.mxu0 0.0
      %2693 = vmatmul.mubr.f32.gmra.mxu0 %v2517
      %v2694 = vpop.f32.mrf.mxu0
      %v2695 = vadd.f32 0.0, %v2694
      %v2696 = vpop.f32.mrf.mxu0
      %2697 = vmatprep.mubr.f32.mxu0 0.0
      %2698 = vmatmul.mubr.f32.gmra.mxu0 %v2520
      %v2699 = vpop.f32.mrf.mxu0
      %v2700 = vadd.f32 0.0, %v2699
      %v2701 = vpop.f32.mrf.mxu0
      %2702 = vmatprep.mubr.f32.mxu0 0.0
      %2703 = vmatmul.mubr.f32.gmra.mxu0 %v2523
      %v2704 = vpop.f32.mrf.mxu0
      %v2705 = vadd.f32 0.0, %v2704
      %v2706 = vpop.f32.mrf.mxu0
      %2707 = vmatprep.mubr.f32.mxu0 0.0
      %2708 = vmatmul.mubr.f32.gmra.mxu0 %v2526
      %v2709 = vpop.f32.mrf.mxu0
      %v2710 = vadd.f32 0.0, %v2709
      %v2711 = vpop.f32.mrf.mxu0
      %2712 = vmatprep.mubr.f32.mxu0 0.0
      %2713 = vmatmul.mubr.f32.gmra.mxu0 %v2529
      %v2714 = vpop.f32.mrf.mxu0
      %v2715 = vadd.f32 0.0, %v2714
      %v2716 = vpop.f32.mrf.mxu0
      %2717 = vmatprep.mubr.f32.mxu0 0.0
      %2718 = vmatmul.mubr.f32.gmra.mxu0 %v2532
      %v2719 = vpop.f32.mrf.mxu0
      %v2720 = vadd.f32 0.0, %v2719
      %v2721 = vpop.f32.mrf.mxu0
      %2722 = vmatprep.mubr.f32.mxu0 0.0
      %2723 = vmatmul.mubr.f32.gmra.mxu0 %v2535
      %v2724 = vpop.f32.mrf.mxu0
      %v2725 = vadd.f32 0.0, %v2724
      %v2726 = vpop.f32.mrf.mxu0
      %2727 = vmatprep.mubr.f32.mxu0 0.0
      %2728 = vmatmul.mubr.f32.gmra.mxu0 %v2538
      %v2729 = vpop.f32.mrf.mxu0
      %v2730 = vadd.f32 0.0, %v2729
      %v2731 = vpop.f32.mrf.mxu0
      %2732 = vmatprep.mubr.f32.mxu0 0.0
      %2733 = vmatmul.mubr.f32.gmra.mxu0 %v2541
      %v2734 = vpop.f32.mrf.mxu0
      %v2735 = vadd.f32 0.0, %v2734
      %v2736 = vpop.f32.mrf.mxu0
      %2737 = vmatprep.mubr.f32.mxu0 0.0
      %2738 = vmatmul.mubr.f32.gmra.mxu0 %v2544
      %v2739 = vpop.f32.mrf.mxu0
      %v2740 = vadd.f32 0.0, %v2739
      %v2741 = vpop.f32.mrf.mxu0
      %2742 = vmatprep.mubr.f32.mxu0 0.0
      %2743 = vmatmul.mubr.f32.gmra.mxu0 %v2547
      %v2744 = vpop.f32.mrf.mxu0
      %v2745 = vadd.f32 0.0, %v2744
      %v2746 = vpop.f32.mrf.mxu0
      %2747 = vmatprep.mubr.f32.mxu0 0.0
      %2748 = vmatmul.mubr.f32.gmra.mxu0 %v2550
      %v2749 = vpop.f32.mrf.mxu0
      %v2750 = vadd.f32 0.0, %v2749
      %v2751 = vpop.f32.mrf.mxu0
      %2752 = vmatprep.mubr.f32.mxu0 0.0
      %2753 = vmatmul.mubr.f32.gmra.mxu0 %v2553
      %v2754 = vpop.f32.mrf.mxu0
      %v2755 = vadd.f32 0.0, %v2754
      %v2756 = vpop.f32.mrf.mxu0
      %2757 = vmatprep.mubr.f32.mxu0 0.0
      %2758 = vmatmul.mubr.f32.gmra.mxu0 %v2556
      %v2759 = vpop.f32.mrf.mxu0
      %v2760 = vadd.f32 0.0, %v2759
      %v2761 = vpop.f32.mrf.mxu0
      %2762 = vmatprep.mubr.f32.mxu0 0.0
      %2763 = vmatmul.mubr.f32.gmra.mxu0 %v2559
      %v2764 = vpop.f32.mrf.mxu0
      %v2765 = vadd.f32 0.0, %v2764
      %v2766 = vpop.f32.mrf.mxu0
      %2767 = vmatprep.mubr.f32.mxu0 0.0
      %2768 = vmatmul.mubr.f32.gmra.mxu0 %v2562
      %v2769 = vpop.f32.mrf.mxu0
      %v2770 = vadd.f32 0.0, %v2769
      %v2771 = vpop.f32.mrf.mxu0
      %2772 = vmatprep.mubr.f32.mxu0 0.0
      %2773 = vmatmul.mubr.f32.gmra.mxu0 %v2565
      %v2774 = vpop.f32.mrf.mxu0
      %v2775 = vadd.f32 0.0, %v2774
      %v2776 = vpop.f32.mrf.mxu0
      %2777 = vmatprep.mubr.f32.mxu0 0.0
      %2778 = vmatmul.mubr.f32.gmra.mxu0 %v2568
      %v2779 = vpop.f32.mrf.mxu0
      %v2780 = vadd.f32 0.0, %v2779
      %v2781 = vpop.f32.mrf.mxu0
      %2782 = vmatprep.mubr.f32.mxu0 0.0
      %2783 = vmatmul.mubr.f32.gmra.mxu0 %v2571
      %v2784 = vpop.f32.mrf.mxu0
      %v2785 = vadd.f32 0.0, %v2784
      %v2786 = vpop.f32.mrf.mxu0
      %2787 = vmatprep.mubr.f32.mxu0 0.0
      %2788 = vmatmul.mubr.f32.gmra.mxu0 %v2574
      %v2789 = vpop.f32.mrf.mxu0
      %v2790 = vadd.f32 0.0, %v2789
      %v2791 = vpop.f32.mrf.mxu0
      %2792 = vmatprep.mubr.f32.mxu0 0.0
      %2793 = vmatmul.mubr.f32.gmra.mxu0 %v2577
      %v2794 = vpop.f32.mrf.mxu0
      %v2795 = vadd.f32 0.0, %v2794
      %v2796 = vpop.f32.mrf.mxu0
      %2797 = vmatprep.mubr.f32.mxu0 0.0
      %2798 = vmatmul.mubr.f32.gmra.mxu0 %v2580
      %v2799 = vpop.f32.mrf.mxu0
      %v2800 = vadd.f32 0.0, %v2799
      %v2801 = vpop.f32.mrf.mxu0
      %2802 = vmatprep.mubr.f32.mxu0 0.0
      %2803 = vmatmul.mubr.f32.gmra.mxu0 %v2583
      %v2804 = vpop.f32.mrf.mxu0
      %v2805 = vadd.f32 0.0, %v2804
      %v2806 = vpop.f32.mrf.mxu0
      %2807 = vmatprep.mubr.f32.mxu0 0.0
      %2808 = vmatmul.mubr.f32.gmra.mxu0 %v2586
      %v2809 = vpop.f32.mrf.mxu0
      %v2810 = vadd.f32 0.0, %v2809
      %v2811 = vpop.f32.mrf.mxu0
      %2812 = vdwg.mxu0
      %v2813 = vadd.f32 %v2426, %v2655
      %v2814 = vadd.f32 %v2427, %v2660
      %v2815 = vadd.f32 %v2428, %v2665
      %v2816 = vadd.f32 %v2429, %v2670
      %v2817 = vadd.f32 %v2430, %v2675
      %v2818 = vadd.f32 %v2431, %v2680
      %v2819 = vadd.f32 %v2432, %v2685
      %v2820 = vadd.f32 %v2433, %v2690
      %v2821 = vadd.f32 %v2434, %v2695
      %v2822 = vadd.f32 %v2435, %v2700
      %v2823 = vadd.f32 %v2436, %v2705
      %v2824 = vadd.f32 %v2437, %v2710
      %v2825 = vadd.f32 %v2438, %v2715
      %v2826 = vadd.f32 %v2439, %v2720
      %v2827 = vadd.f32 %v2440, %v2725
      %v2828 = vadd.f32 %v2441, %v2730
      %v2829 = vadd.f32 %v2442, %v2735
      %v2830 = vadd.f32 %v2443, %v2740
      %v2831 = vadd.f32 %v2444, %v2745
      %v2832 = vadd.f32 %v2445, %v2750
      %v2833 = vadd.f32 %v2446, %v2755
      %v2834 = vadd.f32 %v2447, %v2760
      %v2835 = vadd.f32 %v2448, %v2765
      %v2836 = vadd.f32 %v2449, %v2770
      %v2837 = vadd.f32 %v2450, %v2775
      %v2838 = vadd.f32 %v2451, %v2780
      %v2839 = vadd.f32 %v2452, %v2785
      %v2840 = vadd.f32 %v2453, %v2790
      %v2841 = vadd.f32 %v2454, %v2795
      %v2842 = vadd.f32 %v2455, %v2800
      %v2843 = vadd.f32 %v2456, %v2805
      %v2844 = vadd.f32 %v2457, %v2810
      %v2845 = vld [vmem:[#allocation2 + $0x12] sm:$0xff]
      %v2846 = vld [vmem:[#allocation2 + $0x1a] sm:$0xff]
      %v2847 = vld [vmem:[#allocation2 + $0x22] sm:$0xff]
      %v2848 = vld [vmem:[#allocation2 + $0x2a] sm:$0xff]
      %v2849 = vld [vmem:[#allocation2 + $0x32] sm:$0xff]
      %v2850 = vld [vmem:[#allocation2 + $0x3a] sm:$0xff]
      %v2851 = vld [vmem:[#allocation2 + $0x42] sm:$0xff]
      %v2852 = vld [vmem:[#allocation2 + $0x4a] sm:$0xff]
      %v2853 = vld [vmem:[#allocation2 + $0x52] sm:$0xff]
      %v2854 = vld [vmem:[#allocation2 + $0x5a] sm:$0xff]
      %v2855 = vld [vmem:[#allocation2 + $0x62] sm:$0xff]
      %v2856 = vld [vmem:[#allocation2 + $0x6a] sm:$0xff]
      %v2857 = vld [vmem:[#allocation2 + $0x72] sm:$0xff]
      %v2858 = vld [vmem:[#allocation2 + $0x7a] sm:$0xff]
      %v2859 = vld [vmem:[#allocation2 + $0x82] sm:$0xff]
      %v2860 = vld [vmem:[#allocation2 + $0x8a] sm:$0xff]
      %v2861 = vld [vmem:[#allocation2 + $0x92] sm:$0xff]
      %v2862 = vld [vmem:[#allocation2 + $0x9a] sm:$0xff]
      %v2863 = vld [vmem:[#allocation2 + $0xa2] sm:$0xff]
      %v2864 = vld [vmem:[#allocation2 + $0xaa] sm:$0xff]
      %v2865 = vld [vmem:[#allocation2 + $0xb2] sm:$0xff]
      %v2866 = vld [vmem:[#allocation2 + $0xba] sm:$0xff]
      %v2867 = vld [vmem:[#allocation2 + $0xc2] sm:$0xff]
      %v2868 = vld [vmem:[#allocation2 + $0xca] sm:$0xff]
      %v2869 = vld [vmem:[#allocation2 + $0xd2] sm:$0xff]
      %v2870 = vld [vmem:[#allocation2 + $0xda] sm:$0xff]
      %v2871 = vld [vmem:[#allocation2 + $0xe2] sm:$0xff]
      %v2872 = vld [vmem:[#allocation2 + $0xea] sm:$0xff]
      %v2873 = vld [vmem:[#allocation2 + $0xf2] sm:$0xff]
      %v2874 = vld [vmem:[#allocation2 + $0xfa] sm:$0xff]
      %v2875 = vld [vmem:[#allocation2 + $0x102] sm:$0xff]
      %v2876 = vld [vmem:[#allocation2 + $0x10a] sm:$0xff]
      %v2877 = vsel %vm1620, %v2845, 0.0
      %v2878 = vsel %vm1621, %v2846, 0.0
      %v2879 = vsel %vm1622, %v2847, 0.0
      %v2880 = vsel %vm1623, %v2848, 0.0
      %v2881 = vsel %vm1624, %v2849, 0.0
      %v2882 = vsel %vm1625, %v2850, 0.0
      %v2883 = vsel %vm1626, %v2851, 0.0
      %v2884 = vsel %vm1627, %v2852, 0.0
      %v2885 = vsel %vm1628, %v2853, 0.0
      %v2886 = vsel %vm1629, %v2854, 0.0
      %v2887 = vsel %vm1630, %v2855, 0.0
      %v2888 = vsel %vm1631, %v2856, 0.0
      %v2889 = vsel %vm1632, %v2857, 0.0
      %v2890 = vsel %vm1633, %v2858, 0.0
      %v2891 = vsel %vm1634, %v2859, 0.0
      %v2892 = vsel %vm1635, %v2860, 0.0
      %v2893 = vsel %vm1636, %v2861, 0.0
      %v2894 = vsel %vm1637, %v2862, 0.0
      %v2895 = vsel %vm1638, %v2863, 0.0
      %v2896 = vsel %vm1639, %v2864, 0.0
      %v2897 = vsel %vm1640, %v2865, 0.0
      %v2898 = vsel %vm1641, %v2866, 0.0
      %v2899 = vsel %vm1642, %v2867, 0.0
      %v2900 = vsel %vm1643, %v2868, 0.0
      %v2901 = vsel %vm1644, %v2869, 0.0
      %v2902 = vsel %vm1645, %v2870, 0.0
      %v2903 = vsel %vm1646, %v2871, 0.0
      %v2904 = vsel %vm1647, %v2872, 0.0
      %v2905 = vsel %vm1648, %v2873, 0.0
      %v2906 = vsel %vm1649, %v2874, 0.0
      %v2907 = vsel %vm1650, %v2875, 0.0
      %v2908 = vsel %vm1651, %v2876, 0.0
      %s2909 = scalar_lea.vmem %s1, 40
      %v2910 = vld [vmem:[%s2909] sm:$0xff]
      %v2912 = vsel %vm198, %v2877, 0
      %v2915 = vsel %vm198, %v2878, 0
      %v2918 = vsel %vm198, %v2879, 0
      %v2921 = vsel %vm198, %v2880, 0
      %v2924 = vsel %vm198, %v2881, 0
      %v2927 = vsel %vm198, %v2882, 0
      %v2930 = vsel %vm198, %v2883, 0
      %v2933 = vsel %vm198, %v2884, 0
      %v2936 = vsel %vm198, %v2885, 0
      %v2939 = vsel %vm198, %v2886, 0
      %v2942 = vsel %vm198, %v2887, 0
      %v2945 = vsel %vm198, %v2888, 0
      %v2948 = vsel %vm198, %v2889, 0
      %v2951 = vsel %vm198, %v2890, 0
      %v2954 = vsel %vm198, %v2891, 0
      %v2957 = vsel %vm198, %v2892, 0
      %v2960 = vsel %vm198, %v2893, 0
      %v2963 = vsel %vm198, %v2894, 0
      %v2966 = vsel %vm198, %v2895, 0
      %v2969 = vsel %vm198, %v2896, 0
      %v2972 = vsel %vm198, %v2897, 0
      %v2975 = vsel %vm198, %v2898, 0
      %v2978 = vsel %vm198, %v2899, 0
      %v2981 = vsel %vm198, %v2900, 0
      %v2984 = vsel %vm198, %v2901, 0
      %v2987 = vsel %vm198, %v2902, 0
      %v2990 = vsel %vm198, %v2903, 0
      %v2993 = vsel %vm198, %v2904, 0
      %v2996 = vsel %vm198, %v2905, 0
      %v2999 = vsel %vm198, %v2906, 0
      %v3002 = vsel %vm198, %v2907, 0
      %v3005 = vsel %vm198, %v2908, 0
      %3007 = vmatprep.subr.mxu0 0.0
      %3008 = vmatpush1.msra.mxu0 0.0
      %3009 = vmatprep.subr.mxu0 0.0
      %3010 = vmatpush1.msra.mxu0 0.0
      %3011 = vmatprep.subr.mxu0 0.0
      %3012 = vmatpush1.msra.mxu0 0.0
      %3013 = vmatprep.subr.mxu0 0.0
      %3014 = vmatpush1.msra.mxu0 0.0
      %3015 = vmatprep.subr.mxu0 0.0
      %3016 = vmatpush1.msra.mxu0 0.0
      %3017 = vmatprep.subr.mxu0 0.0
      %3018 = vmatpush1.msra.mxu0 0.0
      %3019 = vmatprep.subr.mxu0 0.0
      %3020 = vmatpush1.msra.mxu0 0.0
      %3021 = vmatprep.subr.mxu0 0.0
      %3022 = vmatpush1.msra.mxu0 0.0
      %3023 = vmatprep.subr.mxu0 0.0
      %3024 = vmatpush1.msra.mxu0 0.0
      %3025 = vmatprep.subr.mxu0 0.0
      %3026 = vmatpush1.msra.mxu0 0.0
      %3027 = vmatprep.subr.mxu0 0.0
      %3028 = vmatpush1.msra.mxu0 0.0
      %3029 = vmatprep.subr.mxu0 0.0
      %3030 = vmatpush1.msra.mxu0 0.0
      %3031 = vmatprep.subr.mxu0 0.0
      %3032 = vmatpush1.msra.mxu0 0.0
      %3033 = vmatprep.subr.mxu0 0.0
      %3034 = vmatpush1.msra.mxu0 0.0
      %3035 = vmatprep.subr.mxu0 0.0
      %3036 = vmatpush1.msra.mxu0 0.0
      %3037 = vmatprep.subr.mxu0 0.0
      %3038 = vmatpush1.msra.mxu0 %v2910
      %3039 = vmatprep.subr.mxu0 0.0
      %3040 = vmatpush2.msra.mxu0 0.0
      %3041 = vmatprep.subr.mxu0 0.0
      %3042 = vmatpush2.msra.mxu0 0.0
      %3043 = vmatprep.subr.mxu0 0.0
      %3044 = vmatpush2.msra.mxu0 0.0
      %3045 = vmatprep.subr.mxu0 0.0
      %3046 = vmatpush2.msra.mxu0 0.0
      %3047 = vmatprep.subr.mxu0 0.0
      %3048 = vmatpush2.msra.mxu0 0.0
      %3049 = vmatprep.subr.mxu0 0.0
      %3050 = vmatpush2.msra.mxu0 0.0
      %3051 = vmatprep.subr.mxu0 0.0
      %3052 = vmatpush2.msra.mxu0 0.0
      %3053 = vmatprep.subr.mxu0 0.0
      %3054 = vmatpush2.msra.mxu0 0.0
      %3055 = vmatprep.subr.mxu0 0.0
      %3056 = vmatpush2.msra.mxu0 0.0
      %3057 = vmatprep.subr.mxu0 0.0
      %3058 = vmatpush2.msra.mxu0 0.0
      %3059 = vmatprep.subr.mxu0 0.0
      %3060 = vmatpush2.msra.mxu0 0.0
      %3061 = vmatprep.subr.mxu0 0.0
      %3062 = vmatpush2.msra.mxu0 0.0
      %3063 = vmatprep.subr.mxu0 0.0
      %3064 = vmatpush2.msra.mxu0 0.0
      %3065 = vmatprep.subr.mxu0 0.0
      %3066 = vmatpush2.msra.mxu0 0.0
      %3067 = vmatprep.subr.mxu0 0.0
      %3068 = vmatpush2.msra.mxu0 0.0
      %3069 = vmatprep.subr.mxu0 0.0
      %3070 = vmatpush2.msra.mxu0 0.0
      %3071 = vmatprep.mubr.f32.mxu0 0.0
      %3072 = vmatmul.mubr.f32.gmra.mxu0 %v2912
      %v3073 = vpop.f32.mrf.mxu0
      %v3074 = vadd.f32 0.0, %v3073
      %v3075 = vpop.f32.mrf.mxu0
      %3076 = vmatprep.mubr.f32.mxu0 0.0
      %3077 = vmatmul.mubr.f32.gmra.mxu0 %v2915
      %v3078 = vpop.f32.mrf.mxu0
      %v3079 = vadd.f32 0.0, %v3078
      %v3080 = vpop.f32.mrf.mxu0
      %3081 = vmatprep.mubr.f32.mxu0 0.0
      %3082 = vmatmul.mubr.f32.gmra.mxu0 %v2918
      %v3083 = vpop.f32.mrf.mxu0
      %v3084 = vadd.f32 0.0, %v3083
      %v3085 = vpop.f32.mrf.mxu0
      %3086 = vmatprep.mubr.f32.mxu0 0.0
      %3087 = vmatmul.mubr.f32.gmra.mxu0 %v2921
      %v3088 = vpop.f32.mrf.mxu0
      %v3089 = vadd.f32 0.0, %v3088
      %v3090 = vpop.f32.mrf.mxu0
      %3091 = vmatprep.mubr.f32.mxu0 0.0
      %3092 = vmatmul.mubr.f32.gmra.mxu0 %v2924
      %v3093 = vpop.f32.mrf.mxu0
      %v3094 = vadd.f32 0.0, %v3093
      %v3095 = vpop.f32.mrf.mxu0
      %3096 = vmatprep.mubr.f32.mxu0 0.0
      %3097 = vmatmul.mubr.f32.gmra.mxu0 %v2927
      %v3098 = vpop.f32.mrf.mxu0
      %v3099 = vadd.f32 0.0, %v3098
      %v3100 = vpop.f32.mrf.mxu0
      %3101 = vmatprep.mubr.f32.mxu0 0.0
      %3102 = vmatmul.mubr.f32.gmra.mxu0 %v2930
      %v3103 = vpop.f32.mrf.mxu0
      %v3104 = vadd.f32 0.0, %v3103
      %v3105 = vpop.f32.mrf.mxu0
      %3106 = vmatprep.mubr.f32.mxu0 0.0
      %3107 = vmatmul.mubr.f32.gmra.mxu0 %v2933
      %v3108 = vpop.f32.mrf.mxu0
      %v3109 = vadd.f32 0.0, %v3108
      %v3110 = vpop.f32.mrf.mxu0
      %3111 = vmatprep.mubr.f32.mxu0 0.0
      %3112 = vmatmul.mubr.f32.gmra.mxu0 %v2936
      %v3113 = vpop.f32.mrf.mxu0
      %v3114 = vadd.f32 0.0, %v3113
      %v3115 = vpop.f32.mrf.mxu0
      %3116 = vmatprep.mubr.f32.mxu0 0.0
      %3117 = vmatmul.mubr.f32.gmra.mxu0 %v2939
      %v3118 = vpop.f32.mrf.mxu0
      %v3119 = vadd.f32 0.0, %v3118
      %v3120 = vpop.f32.mrf.mxu0
      %3121 = vmatprep.mubr.f32.mxu0 0.0
      %3122 = vmatmul.mubr.f32.gmra.mxu0 %v2942
      %v3123 = vpop.f32.mrf.mxu0
      %v3124 = vadd.f32 0.0, %v3123
      %v3125 = vpop.f32.mrf.mxu0
      %3126 = vmatprep.mubr.f32.mxu0 0.0
      %3127 = vmatmul.mubr.f32.gmra.mxu0 %v2945
      %v3128 = vpop.f32.mrf.mxu0
      %v3129 = vadd.f32 0.0, %v3128
      %v3130 = vpop.f32.mrf.mxu0
      %3131 = vmatprep.mubr.f32.mxu0 0.0
      %3132 = vmatmul.mubr.f32.gmra.mxu0 %v2948
      %v3133 = vpop.f32.mrf.mxu0
      %v3134 = vadd.f32 0.0, %v3133
      %v3135 = vpop.f32.mrf.mxu0
      %3136 = vmatprep.mubr.f32.mxu0 0.0
      %3137 = vmatmul.mubr.f32.gmra.mxu0 %v2951
      %v3138 = vpop.f32.mrf.mxu0
      %v3139 = vadd.f32 0.0, %v3138
      %v3140 = vpop.f32.mrf.mxu0
      %3141 = vmatprep.mubr.f32.mxu0 0.0
      %3142 = vmatmul.mubr.f32.gmra.mxu0 %v2954
      %v3143 = vpop.f32.mrf.mxu0
      %v3144 = vadd.f32 0.0, %v3143
      %v3145 = vpop.f32.mrf.mxu0
      %3146 = vmatprep.mubr.f32.mxu0 0.0
      %3147 = vmatmul.mubr.f32.gmra.mxu0 %v2957
      %v3148 = vpop.f32.mrf.mxu0
      %v3149 = vadd.f32 0.0, %v3148
      %v3150 = vpop.f32.mrf.mxu0
      %3151 = vmatprep.mubr.f32.mxu0 0.0
      %3152 = vmatmul.mubr.f32.gmra.mxu0 %v2960
      %v3153 = vpop.f32.mrf.mxu0
      %v3154 = vadd.f32 0.0, %v3153
      %v3155 = vpop.f32.mrf.mxu0
      %3156 = vmatprep.mubr.f32.mxu0 0.0
      %3157 = vmatmul.mubr.f32.gmra.mxu0 %v2963
      %v3158 = vpop.f32.mrf.mxu0
      %v3159 = vadd.f32 0.0, %v3158
      %v3160 = vpop.f32.mrf.mxu0
      %3161 = vmatprep.mubr.f32.mxu0 0.0
      %3162 = vmatmul.mubr.f32.gmra.mxu0 %v2966
      %v3163 = vpop.f32.mrf.mxu0
      %v3164 = vadd.f32 0.0, %v3163
      %v3165 = vpop.f32.mrf.mxu0
      %3166 = vmatprep.mubr.f32.mxu0 0.0
      %3167 = vmatmul.mubr.f32.gmra.mxu0 %v2969
      %v3168 = vpop.f32.mrf.mxu0
      %v3169 = vadd.f32 0.0, %v3168
      %v3170 = vpop.f32.mrf.mxu0
      %3171 = vmatprep.mubr.f32.mxu0 0.0
      %3172 = vmatmul.mubr.f32.gmra.mxu0 %v2972
      %v3173 = vpop.f32.mrf.mxu0
      %v3174 = vadd.f32 0.0, %v3173
      %v3175 = vpop.f32.mrf.mxu0
      %3176 = vmatprep.mubr.f32.mxu0 0.0
      %3177 = vmatmul.mubr.f32.gmra.mxu0 %v2975
      %v3178 = vpop.f32.mrf.mxu0
      %v3179 = vadd.f32 0.0, %v3178
      %v3180 = vpop.f32.mrf.mxu0
      %3181 = vmatprep.mubr.f32.mxu0 0.0
      %3182 = vmatmul.mubr.f32.gmra.mxu0 %v2978
      %v3183 = vpop.f32.mrf.mxu0
      %v3184 = vadd.f32 0.0, %v3183
      %v3185 = vpop.f32.mrf.mxu0
      %3186 = vmatprep.mubr.f32.mxu0 0.0
      %3187 = vmatmul.mubr.f32.gmra.mxu0 %v2981
      %v3188 = vpop.f32.mrf.mxu0
      %v3189 = vadd.f32 0.0, %v3188
      %v3190 = vpop.f32.mrf.mxu0
      %3191 = vmatprep.mubr.f32.mxu0 0.0
      %3192 = vmatmul.mubr.f32.gmra.mxu0 %v2984
      %v3193 = vpop.f32.mrf.mxu0
      %v3194 = vadd.f32 0.0, %v3193
      %v3195 = vpop.f32.mrf.mxu0
      %3196 = vmatprep.mubr.f32.mxu0 0.0
      %3197 = vmatmul.mubr.f32.gmra.mxu0 %v2987
      %v3198 = vpop.f32.mrf.mxu0
      %v3199 = vadd.f32 0.0, %v3198
      %v3200 = vpop.f32.mrf.mxu0
      %3201 = vmatprep.mubr.f32.mxu0 0.0
      %3202 = vmatmul.mubr.f32.gmra.mxu0 %v2990
      %v3203 = vpop.f32.mrf.mxu0
      %v3204 = vadd.f32 0.0, %v3203
      %v3205 = vpop.f32.mrf.mxu0
      %3206 = vmatprep.mubr.f32.mxu0 0.0
      %3207 = vmatmul.mubr.f32.gmra.mxu0 %v2993
      %v3208 = vpop.f32.mrf.mxu0
      %v3209 = vadd.f32 0.0, %v3208
      %v3210 = vpop.f32.mrf.mxu0
      %3211 = vmatprep.mubr.f32.mxu0 0.0
      %3212 = vmatmul.mubr.f32.gmra.mxu0 %v2996
      %v3213 = vpop.f32.mrf.mxu0
      %v3214 = vadd.f32 0.0, %v3213
      %v3215 = vpop.f32.mrf.mxu0
      %3216 = vmatprep.mubr.f32.mxu0 0.0
      %3217 = vmatmul.mubr.f32.gmra.mxu0 %v2999
      %v3218 = vpop.f32.mrf.mxu0
      %v3219 = vadd.f32 0.0, %v3218
      %v3220 = vpop.f32.mrf.mxu0
      %3221 = vmatprep.mubr.f32.mxu0 0.0
      %3222 = vmatmul.mubr.f32.gmra.mxu0 %v3002
      %v3223 = vpop.f32.mrf.mxu0
      %v3224 = vadd.f32 0.0, %v3223
      %v3225 = vpop.f32.mrf.mxu0
      %3226 = vmatprep.mubr.f32.mxu0 0.0
      %3227 = vmatmul.mubr.f32.gmra.mxu0 %v3005
      %v3228 = vpop.f32.mrf.mxu0
      %v3229 = vadd.f32 0.0, %v3228
      %v3230 = vpop.f32.mrf.mxu0
      %3231 = vdwg.mxu0
      %v3232 = vadd.f32 %v2813, %v3074
      %v3233 = vadd.f32 %v2814, %v3079
      %v3234 = vadd.f32 %v2815, %v3084
      %v3235 = vadd.f32 %v2816, %v3089
      %v3236 = vadd.f32 %v2817, %v3094
      %v3237 = vadd.f32 %v2818, %v3099
      %v3238 = vadd.f32 %v2819, %v3104
      %v3239 = vadd.f32 %v2820, %v3109
      %v3240 = vadd.f32 %v2821, %v3114
      %v3241 = vadd.f32 %v2822, %v3119
      %v3242 = vadd.f32 %v2823, %v3124
      %v3243 = vadd.f32 %v2824, %v3129
      %v3244 = vadd.f32 %v2825, %v3134
      %v3245 = vadd.f32 %v2826, %v3139
      %v3246 = vadd.f32 %v2827, %v3144
      %v3247 = vadd.f32 %v2828, %v3149
      %v3248 = vadd.f32 %v2829, %v3154
      %v3249 = vadd.f32 %v2830, %v3159
      %v3250 = vadd.f32 %v2831, %v3164
      %v3251 = vadd.f32 %v2832, %v3169
      %v3252 = vadd.f32 %v2833, %v3174
      %v3253 = vadd.f32 %v2834, %v3179
      %v3254 = vadd.f32 %v2835, %v3184
      %v3255 = vadd.f32 %v2836, %v3189
      %v3256 = vadd.f32 %v2837, %v3194
      %v3257 = vadd.f32 %v2838, %v3199
      %v3258 = vadd.f32 %v2839, %v3204
      %v3259 = vadd.f32 %v2840, %v3209
      %v3260 = vadd.f32 %v2841, %v3214
      %v3261 = vadd.f32 %v2842, %v3219
      %v3262 = vadd.f32 %v2843, %v3224
      %v3263 = vadd.f32 %v2844, %v3229
      %v3264 = vld [vmem:[#allocation2 + $0x20] sm:$0xff]
      %v3265 = vld [vmem:[#allocation2 + $0x28] sm:$0xff]
      %v3266 = vld [vmem:[#allocation2 + $0x30] sm:$0xff]
      %v3267 = vld [vmem:[#allocation2 + $0x38] sm:$0xff]
      %v3268 = vld [vmem:[#allocation2 + $0x40] sm:$0xff]
      %v3269 = vld [vmem:[#allocation2 + $0x48] sm:$0xff]
      %v3270 = vld [vmem:[#allocation2 + $0x50] sm:$0xff]
      %v3271 = vld [vmem:[#allocation2 + $0x58] sm:$0xff]
      %v3272 = vld [vmem:[#allocation2 + $0x60] sm:$0xff]
      %v3273 = vld [vmem:[#allocation2 + $0x68] sm:$0xff]
      %v3274 = vld [vmem:[#allocation2 + $0x70] sm:$0xff]
      %v3275 = vld [vmem:[#allocation2 + $0x78] sm:$0xff]
      %v3276 = vld [vmem:[#allocation2 + $0x80] sm:$0xff]
      %v3277 = vld [vmem:[#allocation2 + $0x88] sm:$0xff]
      %v3278 = vld [vmem:[#allocation2 + $0x90] sm:$0xff]
      %v3279 = vld [vmem:[#allocation2 + $0x98] sm:$0xff]
      %v3280 = vld [vmem:[#allocation2 + $0xa0] sm:$0xff]
      %v3281 = vld [vmem:[#allocation2 + $0xa8] sm:$0xff]
      %v3282 = vld [vmem:[#allocation2 + $0xb0] sm:$0xff]
      %v3283 = vld [vmem:[#allocation2 + $0xb8] sm:$0xff]
      %v3284 = vld [vmem:[#allocation2 + $0xc0] sm:$0xff]
      %v3285 = vld [vmem:[#allocation2 + $0xc8] sm:$0xff]
      %v3286 = vld [vmem:[#allocation2 + $0xd0] sm:$0xff]
      %v3287 = vld [vmem:[#allocation2 + $0xd8] sm:$0xff]
      %v3288 = vld [vmem:[#allocation2 + $0xe0] sm:$0xff]
      %v3289 = vld [vmem:[#allocation2 + $0xe8] sm:$0xff]
      %v3290 = vld [vmem:[#allocation2 + $0xf0] sm:$0xff]
      %v3291 = vld [vmem:[#allocation2 + $0xf8] sm:$0xff]
      %v3292 = vld [vmem:[#allocation2 + $0x100] sm:$0xff]
      %v3293 = vld [vmem:[#allocation2 + $0x108] sm:$0xff]
      %v3294 = vld [vmem:[#allocation2 + $0x110] sm:$0xff]
      %v3295 = vld [vmem:[#allocation2 + $0x118] sm:$0xff]
      %v3296 = vsel %vm783, %v3264, 0.0
      %v3297 = vsel %vm784, %v3265, 0.0
      %v3298 = vsel %vm785, %v3266, 0.0
      %v3299 = vsel %vm786, %v3267, 0.0
      %v3300 = vsel %vm787, %v3268, 0.0
      %v3301 = vsel %vm788, %v3269, 0.0
      %v3302 = vsel %vm789, %v3270, 0.0
      %v3303 = vsel %vm790, %v3271, 0.0
      %v3304 = vsel %vm791, %v3272, 0.0
      %v3305 = vsel %vm792, %v3273, 0.0
      %v3306 = vsel %vm793, %v3274, 0.0
      %v3307 = vsel %vm794, %v3275, 0.0
      %v3308 = vsel %vm795, %v3276, 0.0
      %v3309 = vsel %vm796, %v3277, 0.0
      %v3310 = vsel %vm797, %v3278, 0.0
      %v3311 = vsel %vm798, %v3279, 0.0
      %v3312 = vsel %vm799, %v3280, 0.0
      %v3313 = vsel %vm800, %v3281, 0.0
      %v3314 = vsel %vm801, %v3282, 0.0
      %v3315 = vsel %vm802, %v3283, 0.0
      %v3316 = vsel %vm803, %v3284, 0.0
      %v3317 = vsel %vm804, %v3285, 0.0
      %v3318 = vsel %vm805, %v3286, 0.0
      %v3319 = vsel %vm806, %v3287, 0.0
      %v3320 = vsel %vm807, %v3288, 0.0
      %v3321 = vsel %vm808, %v3289, 0.0
      %v3322 = vsel %vm809, %v3290, 0.0
      %v3323 = vsel %vm810, %v3291, 0.0
      %v3324 = vsel %vm811, %v3292, 0.0
      %v3325 = vsel %vm812, %v3293, 0.0
      %v3326 = vsel %vm813, %v3294, 0.0
      %v3327 = vsel %vm814, %v3295, 0.0
      %s3328 = scalar_lea.vmem %s1, 48
      %v3329 = vld [vmem:[%s3328] sm:$0xff]
      %v3331 = vsel %vm198, %v3296, 0
      %v3334 = vsel %vm198, %v3297, 0
      %v3337 = vsel %vm198, %v3298, 0
      %v3340 = vsel %vm198, %v3299, 0
      %v3343 = vsel %vm198, %v3300, 0
      %v3346 = vsel %vm198, %v3301, 0
      %v3349 = vsel %vm198, %v3302, 0
      %v3352 = vsel %vm198, %v3303, 0
      %v3355 = vsel %vm198, %v3304, 0
      %v3358 = vsel %vm198, %v3305, 0
      %v3361 = vsel %vm198, %v3306, 0
      %v3364 = vsel %vm198, %v3307, 0
      %v3367 = vsel %vm198, %v3308, 0
      %v3370 = vsel %vm198, %v3309, 0
      %v3373 = vsel %vm198, %v3310, 0
      %v3376 = vsel %vm198, %v3311, 0
      %v3379 = vsel %vm198, %v3312, 0
      %v3382 = vsel %vm198, %v3313, 0
      %v3385 = vsel %vm198, %v3314, 0
      %v3388 = vsel %vm198, %v3315, 0
      %v3391 = vsel %vm198, %v3316, 0
      %v3394 = vsel %vm198, %v3317, 0
      %v3397 = vsel %vm198, %v3318, 0
      %v3400 = vsel %vm198, %v3319, 0
      %v3403 = vsel %vm198, %v3320, 0
      %v3406 = vsel %vm198, %v3321, 0
      %v3409 = vsel %vm198, %v3322, 0
      %v3412 = vsel %vm198, %v3323, 0
      %v3415 = vsel %vm198, %v3324, 0
      %v3418 = vsel %vm198, %v3325, 0
      %v3421 = vsel %vm198, %v3326, 0
      %v3424 = vsel %vm198, %v3327, 0
      %3426 = vmatprep.subr.mxu0 0.0
      %3427 = vmatpush1.msra.mxu0 0.0
      %3428 = vmatprep.subr.mxu0 0.0
      %3429 = vmatpush1.msra.mxu0 0.0
      %3430 = vmatprep.subr.mxu0 0.0
      %3431 = vmatpush1.msra.mxu0 0.0
      %3432 = vmatprep.subr.mxu0 0.0
      %3433 = vmatpush1.msra.mxu0 0.0
      %3434 = vmatprep.subr.mxu0 0.0
      %3435 = vmatpush1.msra.mxu0 0.0
      %3436 = vmatprep.subr.mxu0 0.0
      %3437 = vmatpush1.msra.mxu0 0.0
      %3438 = vmatprep.subr.mxu0 0.0
      %3439 = vmatpush1.msra.mxu0 0.0
      %3440 = vmatprep.subr.mxu0 0.0
      %3441 = vmatpush1.msra.mxu0 0.0
      %3442 = vmatprep.subr.mxu0 0.0
      %3443 = vmatpush1.msra.mxu0 0.0
      %3444 = vmatprep.subr.mxu0 0.0
      %3445 = vmatpush1.msra.mxu0 0.0
      %3446 = vmatprep.subr.mxu0 0.0
      %3447 = vmatpush1.msra.mxu0 0.0
      %3448 = vmatprep.subr.mxu0 0.0
      %3449 = vmatpush1.msra.mxu0 0.0
      %3450 = vmatprep.subr.mxu0 0.0
      %3451 = vmatpush1.msra.mxu0 0.0
      %3452 = vmatprep.subr.mxu0 0.0
      %3453 = vmatpush1.msra.mxu0 0.0
      %3454 = vmatprep.subr.mxu0 0.0
      %3455 = vmatpush1.msra.mxu0 0.0
      %3456 = vmatprep.subr.mxu0 0.0
      %3457 = vmatpush1.msra.mxu0 %v3329
      %3458 = vmatprep.subr.mxu0 0.0
      %3459 = vmatpush2.msra.mxu0 0.0
      %3460 = vmatprep.subr.mxu0 0.0
      %3461 = vmatpush2.msra.mxu0 0.0
      %3462 = vmatprep.subr.mxu0 0.0
      %3463 = vmatpush2.msra.mxu0 0.0
      %3464 = vmatprep.subr.mxu0 0.0
      %3465 = vmatpush2.msra.mxu0 0.0
      %3466 = vmatprep.subr.mxu0 0.0
      %3467 = vmatpush2.msra.mxu0 0.0
      %3468 = vmatprep.subr.mxu0 0.0
      %3469 = vmatpush2.msra.mxu0 0.0
      %3470 = vmatprep.subr.mxu0 0.0
      %3471 = vmatpush2.msra.mxu0 0.0
      %3472 = vmatprep.subr.mxu0 0.0
      %3473 = vmatpush2.msra.mxu0 0.0
      %3474 = vmatprep.subr.mxu0 0.0
      %3475 = vmatpush2.msra.mxu0 0.0
      %3476 = vmatprep.subr.mxu0 0.0
      %3477 = vmatpush2.msra.mxu0 0.0
      %3478 = vmatprep.subr.mxu0 0.0
      %3479 = vmatpush2.msra.mxu0 0.0
      %3480 = vmatprep.subr.mxu0 0.0
      %3481 = vmatpush2.msra.mxu0 0.0
      %3482 = vmatprep.subr.mxu0 0.0
      %3483 = vmatpush2.msra.mxu0 0.0
      %3484 = vmatprep.subr.mxu0 0.0
      %3485 = vmatpush2.msra.mxu0 0.0
      %3486 = vmatprep.subr.mxu0 0.0
      %3487 = vmatpush2.msra.mxu0 0.0
      %3488 = vmatprep.subr.mxu0 0.0
      %3489 = vmatpush2.msra.mxu0 0.0
      %3490 = vmatprep.mubr.f32.mxu0 0.0
      %3491 = vmatmul.mubr.f32.gmra.mxu0 %v3331
      %v3492 = vpop.f32.mrf.mxu0
      %v3493 = vadd.f32 0.0, %v3492
      %v3494 = vpop.f32.mrf.mxu0
      %3495 = vmatprep.mubr.f32.mxu0 0.0
      %3496 = vmatmul.mubr.f32.gmra.mxu0 %v3334
      %v3497 = vpop.f32.mrf.mxu0
      %v3498 = vadd.f32 0.0, %v3497
      %v3499 = vpop.f32.mrf.mxu0
      %3500 = vmatprep.mubr.f32.mxu0 0.0
      %3501 = vmatmul.mubr.f32.gmra.mxu0 %v3337
      %v3502 = vpop.f32.mrf.mxu0
      %v3503 = vadd.f32 0.0, %v3502
      %v3504 = vpop.f32.mrf.mxu0
      %3505 = vmatprep.mubr.f32.mxu0 0.0
      %3506 = vmatmul.mubr.f32.gmra.mxu0 %v3340
      %v3507 = vpop.f32.mrf.mxu0
      %v3508 = vadd.f32 0.0, %v3507
      %v3509 = vpop.f32.mrf.mxu0
      %3510 = vmatprep.mubr.f32.mxu0 0.0
      %3511 = vmatmul.mubr.f32.gmra.mxu0 %v3343
      %v3512 = vpop.f32.mrf.mxu0
      %v3513 = vadd.f32 0.0, %v3512
      %v3514 = vpop.f32.mrf.mxu0
      %3515 = vmatprep.mubr.f32.mxu0 0.0
      %3516 = vmatmul.mubr.f32.gmra.mxu0 %v3346
      %v3517 = vpop.f32.mrf.mxu0
      %v3518 = vadd.f32 0.0, %v3517
      %v3519 = vpop.f32.mrf.mxu0
      %3520 = vmatprep.mubr.f32.mxu0 0.0
      %3521 = vmatmul.mubr.f32.gmra.mxu0 %v3349
      %v3522 = vpop.f32.mrf.mxu0
      %v3523 = vadd.f32 0.0, %v3522
      %v3524 = vpop.f32.mrf.mxu0
      %3525 = vmatprep.mubr.f32.mxu0 0.0
      %3526 = vmatmul.mubr.f32.gmra.mxu0 %v3352
      %v3527 = vpop.f32.mrf.mxu0
      %v3528 = vadd.f32 0.0, %v3527
      %v3529 = vpop.f32.mrf.mxu0
      %3530 = vmatprep.mubr.f32.mxu0 0.0
      %3531 = vmatmul.mubr.f32.gmra.mxu0 %v3355
      %v3532 = vpop.f32.mrf.mxu0
      %v3533 = vadd.f32 0.0, %v3532
      %v3534 = vpop.f32.mrf.mxu0
      %3535 = vmatprep.mubr.f32.mxu0 0.0
      %3536 = vmatmul.mubr.f32.gmra.mxu0 %v3358
      %v3537 = vpop.f32.mrf.mxu0
      %v3538 = vadd.f32 0.0, %v3537
      %v3539 = vpop.f32.mrf.mxu0
      %3540 = vmatprep.mubr.f32.mxu0 0.0
      %3541 = vmatmul.mubr.f32.gmra.mxu0 %v3361
      %v3542 = vpop.f32.mrf.mxu0
      %v3543 = vadd.f32 0.0, %v3542
      %v3544 = vpop.f32.mrf.mxu0
      %3545 = vmatprep.mubr.f32.mxu0 0.0
      %3546 = vmatmul.mubr.f32.gmra.mxu0 %v3364
      %v3547 = vpop.f32.mrf.mxu0
      %v3548 = vadd.f32 0.0, %v3547
      %v3549 = vpop.f32.mrf.mxu0
      %3550 = vmatprep.mubr.f32.mxu0 0.0
      %3551 = vmatmul.mubr.f32.gmra.mxu0 %v3367
      %v3552 = vpop.f32.mrf.mxu0
      %v3553 = vadd.f32 0.0, %v3552
      %v3554 = vpop.f32.mrf.mxu0
      %3555 = vmatprep.mubr.f32.mxu0 0.0
      %3556 = vmatmul.mubr.f32.gmra.mxu0 %v3370
      %v3557 = vpop.f32.mrf.mxu0
      %v3558 = vadd.f32 0.0, %v3557
      %v3559 = vpop.f32.mrf.mxu0
      %3560 = vmatprep.mubr.f32.mxu0 0.0
      %3561 = vmatmul.mubr.f32.gmra.mxu0 %v3373
      %v3562 = vpop.f32.mrf.mxu0
      %v3563 = vadd.f32 0.0, %v3562
      %v3564 = vpop.f32.mrf.mxu0
      %3565 = vmatprep.mubr.f32.mxu0 0.0
      %3566 = vmatmul.mubr.f32.gmra.mxu0 %v3376
      %v3567 = vpop.f32.mrf.mxu0
      %v3568 = vadd.f32 0.0, %v3567
      %v3569 = vpop.f32.mrf.mxu0
      %3570 = vmatprep.mubr.f32.mxu0 0.0
      %3571 = vmatmul.mubr.f32.gmra.mxu0 %v3379
      %v3572 = vpop.f32.mrf.mxu0
      %v3573 = vadd.f32 0.0, %v3572
      %v3574 = vpop.f32.mrf.mxu0
      %3575 = vmatprep.mubr.f32.mxu0 0.0
      %3576 = vmatmul.mubr.f32.gmra.mxu0 %v3382
      %v3577 = vpop.f32.mrf.mxu0
      %v3578 = vadd.f32 0.0, %v3577
      %v3579 = vpop.f32.mrf.mxu0
      %3580 = vmatprep.mubr.f32.mxu0 0.0
      %3581 = vmatmul.mubr.f32.gmra.mxu0 %v3385
      %v3582 = vpop.f32.mrf.mxu0
      %v3583 = vadd.f32 0.0, %v3582
      %v3584 = vpop.f32.mrf.mxu0
      %3585 = vmatprep.mubr.f32.mxu0 0.0
      %3586 = vmatmul.mubr.f32.gmra.mxu0 %v3388
      %v3587 = vpop.f32.mrf.mxu0
      %v3588 = vadd.f32 0.0, %v3587
      %v3589 = vpop.f32.mrf.mxu0
      %3590 = vmatprep.mubr.f32.mxu0 0.0
      %3591 = vmatmul.mubr.f32.gmra.mxu0 %v3391
      %v3592 = vpop.f32.mrf.mxu0
      %v3593 = vadd.f32 0.0, %v3592
      %v3594 = vpop.f32.mrf.mxu0
      %3595 = vmatprep.mubr.f32.mxu0 0.0
      %3596 = vmatmul.mubr.f32.gmra.mxu0 %v3394
      %v3597 = vpop.f32.mrf.mxu0
      %v3598 = vadd.f32 0.0, %v3597
      %v3599 = vpop.f32.mrf.mxu0
      %3600 = vmatprep.mubr.f32.mxu0 0.0
      %3601 = vmatmul.mubr.f32.gmra.mxu0 %v3397
      %v3602 = vpop.f32.mrf.mxu0
      %v3603 = vadd.f32 0.0, %v3602
      %v3604 = vpop.f32.mrf.mxu0
      %3605 = vmatprep.mubr.f32.mxu0 0.0
      %3606 = vmatmul.mubr.f32.gmra.mxu0 %v3400
      %v3607 = vpop.f32.mrf.mxu0
      %v3608 = vadd.f32 0.0, %v3607
      %v3609 = vpop.f32.mrf.mxu0
      %3610 = vmatprep.mubr.f32.mxu0 0.0
      %3611 = vmatmul.mubr.f32.gmra.mxu0 %v3403
      %v3612 = vpop.f32.mrf.mxu0
      %v3613 = vadd.f32 0.0, %v3612
      %v3614 = vpop.f32.mrf.mxu0
      %3615 = vmatprep.mubr.f32.mxu0 0.0
      %3616 = vmatmul.mubr.f32.gmra.mxu0 %v3406
      %v3617 = vpop.f32.mrf.mxu0
      %v3618 = vadd.f32 0.0, %v3617
      %v3619 = vpop.f32.mrf.mxu0
      %3620 = vmatprep.mubr.f32.mxu0 0.0
      %3621 = vmatmul.mubr.f32.gmra.mxu0 %v3409
      %v3622 = vpop.f32.mrf.mxu0
      %v3623 = vadd.f32 0.0, %v3622
      %v3624 = vpop.f32.mrf.mxu0
      %3625 = vmatprep.mubr.f32.mxu0 0.0
      %3626 = vmatmul.mubr.f32.gmra.mxu0 %v3412
      %v3627 = vpop.f32.mrf.mxu0
      %v3628 = vadd.f32 0.0, %v3627
      %v3629 = vpop.f32.mrf.mxu0
      %3630 = vmatprep.mubr.f32.mxu0 0.0
      %3631 = vmatmul.mubr.f32.gmra.mxu0 %v3415
      %v3632 = vpop.f32.mrf.mxu0
      %v3633 = vadd.f32 0.0, %v3632
      %v3634 = vpop.f32.mrf.mxu0
      %3635 = vmatprep.mubr.f32.mxu0 0.0
      %3636 = vmatmul.mubr.f32.gmra.mxu0 %v3418
      %v3637 = vpop.f32.mrf.mxu0
      %v3638 = vadd.f32 0.0, %v3637
      %v3639 = vpop.f32.mrf.mxu0
      %3640 = vmatprep.mubr.f32.mxu0 0.0
      %3641 = vmatmul.mubr.f32.gmra.mxu0 %v3421
      %v3642 = vpop.f32.mrf.mxu0
      %v3643 = vadd.f32 0.0, %v3642
      %v3644 = vpop.f32.mrf.mxu0
      %3645 = vmatprep.mubr.f32.mxu0 0.0
      %3646 = vmatmul.mubr.f32.gmra.mxu0 %v3424
      %v3647 = vpop.f32.mrf.mxu0
      %v3648 = vadd.f32 0.0, %v3647
      %v3649 = vpop.f32.mrf.mxu0
      %3650 = vdwg.mxu0
      %v3651 = vadd.f32 %v3232, %v3493
      %v3652 = vadd.f32 %v3233, %v3498
      %v3653 = vadd.f32 %v3234, %v3503
      %v3654 = vadd.f32 %v3235, %v3508
      %v3655 = vadd.f32 %v3236, %v3513
      %v3656 = vadd.f32 %v3237, %v3518
      %v3657 = vadd.f32 %v3238, %v3523
      %v3658 = vadd.f32 %v3239, %v3528
      %v3659 = vadd.f32 %v3240, %v3533
      %v3660 = vadd.f32 %v3241, %v3538
      %v3661 = vadd.f32 %v3242, %v3543
      %v3662 = vadd.f32 %v3243, %v3548
      %v3663 = vadd.f32 %v3244, %v3553
      %v3664 = vadd.f32 %v3245, %v3558
      %v3665 = vadd.f32 %v3246, %v3563
      %v3666 = vadd.f32 %v3247, %v3568
      %v3667 = vadd.f32 %v3248, %v3573
      %v3668 = vadd.f32 %v3249, %v3578
      %v3669 = vadd.f32 %v3250, %v3583
      %v3670 = vadd.f32 %v3251, %v3588
      %v3671 = vadd.f32 %v3252, %v3593
      %v3672 = vadd.f32 %v3253, %v3598
      %v3673 = vadd.f32 %v3254, %v3603
      %v3674 = vadd.f32 %v3255, %v3608
      %v3675 = vadd.f32 %v3256, %v3613
      %v3676 = vadd.f32 %v3257, %v3618
      %v3677 = vadd.f32 %v3258, %v3623
      %v3678 = vadd.f32 %v3259, %v3628
      %v3679 = vadd.f32 %v3260, %v3633
      %v3680 = vadd.f32 %v3261, %v3638
      %v3681 = vadd.f32 %v3262, %v3643
      %v3682 = vadd.f32 %v3263, %v3648
      %v3683 = vld [vmem:[#allocation2 + $0x21] sm:$0xff]
      %v3684 = vld [vmem:[#allocation2 + $0x29] sm:$0xff]
      %v3685 = vld [vmem:[#allocation2 + $0x31] sm:$0xff]
      %v3686 = vld [vmem:[#allocation2 + $0x39] sm:$0xff]
      %v3687 = vld [vmem:[#allocation2 + $0x41] sm:$0xff]
      %v3688 = vld [vmem:[#allocation2 + $0x49] sm:$0xff]
      %v3689 = vld [vmem:[#allocation2 + $0x51] sm:$0xff]
      %v3690 = vld [vmem:[#allocation2 + $0x59] sm:$0xff]
      %v3691 = vld [vmem:[#allocation2 + $0x61] sm:$0xff]
      %v3692 = vld [vmem:[#allocation2 + $0x69] sm:$0xff]
      %v3693 = vld [vmem:[#allocation2 + $0x71] sm:$0xff]
      %v3694 = vld [vmem:[#allocation2 + $0x79] sm:$0xff]
      %v3695 = vld [vmem:[#allocation2 + $0x81] sm:$0xff]
      %v3696 = vld [vmem:[#allocation2 + $0x89] sm:$0xff]
      %v3697 = vld [vmem:[#allocation2 + $0x91] sm:$0xff]
      %v3698 = vld [vmem:[#allocation2 + $0x99] sm:$0xff]
      %v3699 = vld [vmem:[#allocation2 + $0xa1] sm:$0xff]
      %v3700 = vld [vmem:[#allocation2 + $0xa9] sm:$0xff]
      %v3701 = vld [vmem:[#allocation2 + $0xb1] sm:$0xff]
      %v3702 = vld [vmem:[#allocation2 + $0xb9] sm:$0xff]
      %v3703 = vld [vmem:[#allocation2 + $0xc1] sm:$0xff]
      %v3704 = vld [vmem:[#allocation2 + $0xc9] sm:$0xff]
      %v3705 = vld [vmem:[#allocation2 + $0xd1] sm:$0xff]
      %v3706 = vld [vmem:[#allocation2 + $0xd9] sm:$0xff]
      %v3707 = vld [vmem:[#allocation2 + $0xe1] sm:$0xff]
      %v3708 = vld [vmem:[#allocation2 + $0xe9] sm:$0xff]
      %v3709 = vld [vmem:[#allocation2 + $0xf1] sm:$0xff]
      %v3710 = vld [vmem:[#allocation2 + $0xf9] sm:$0xff]
      %v3711 = vld [vmem:[#allocation2 + $0x101] sm:$0xff]
      %v3712 = vld [vmem:[#allocation2 + $0x109] sm:$0xff]
      %v3713 = vld [vmem:[#allocation2 + $0x111] sm:$0xff]
      %v3714 = vld [vmem:[#allocation2 + $0x119] sm:$0xff]
      %s3715 = scalar_lea.vmem %s1, 56
      %v3716 = vld [vmem:[%s3715] sm:$0xff]
      %v3718 = vsel %vm198, %v3683, 0
      %v3721 = vsel %vm198, %v3684, 0
      %v3724 = vsel %vm198, %v3685, 0
      %v3727 = vsel %vm198, %v3686, 0
      %v3730 = vsel %vm198, %v3687, 0
      %v3733 = vsel %vm198, %v3688, 0
      %v3736 = vsel %vm198, %v3689, 0
      %v3739 = vsel %vm198, %v3690, 0
      %v3742 = vsel %vm198, %v3691, 0
      %v3745 = vsel %vm198, %v3692, 0
      %v3748 = vsel %vm198, %v3693, 0
      %v3751 = vsel %vm198, %v3694, 0
      %v3754 = vsel %vm198, %v3695, 0
      %v3757 = vsel %vm198, %v3696, 0
      %v3760 = vsel %vm198, %v3697, 0
      %v3763 = vsel %vm198, %v3698, 0
      %v3766 = vsel %vm198, %v3699, 0
      %v3769 = vsel %vm198, %v3700, 0
      %v3772 = vsel %vm198, %v3701, 0
      %v3775 = vsel %vm198, %v3702, 0
      %v3778 = vsel %vm198, %v3703, 0
      %v3781 = vsel %vm198, %v3704, 0
      %v3784 = vsel %vm198, %v3705, 0
      %v3787 = vsel %vm198, %v3706, 0
      %v3790 = vsel %vm198, %v3707, 0
      %v3793 = vsel %vm198, %v3708, 0
      %v3796 = vsel %vm198, %v3709, 0
      %v3799 = vsel %vm198, %v3710, 0
      %v3802 = vsel %vm198, %v3711, 0
      %v3805 = vsel %vm198, %v3712, 0
      %v3808 = vsel %vm198, %v3713, 0
      %v3811 = vsel %vm198, %v3714, 0
      %3813 = vmatprep.subr.mxu0 0.0
      %3814 = vmatpush1.msra.mxu0 0.0
      %3815 = vmatprep.subr.mxu0 0.0
      %3816 = vmatpush1.msra.mxu0 0.0
      %3817 = vmatprep.subr.mxu0 0.0
      %3818 = vmatpush1.msra.mxu0 0.0
      %3819 = vmatprep.subr.mxu0 0.0
      %3820 = vmatpush1.msra.mxu0 0.0
      %3821 = vmatprep.subr.mxu0 0.0
      %3822 = vmatpush1.msra.mxu0 0.0
      %3823 = vmatprep.subr.mxu0 0.0
      %3824 = vmatpush1.msra.mxu0 0.0
      %3825 = vmatprep.subr.mxu0 0.0
      %3826 = vmatpush1.msra.mxu0 0.0
      %3827 = vmatprep.subr.mxu0 0.0
      %3828 = vmatpush1.msra.mxu0 0.0
      %3829 = vmatprep.subr.mxu0 0.0
      %3830 = vmatpush1.msra.mxu0 0.0
      %3831 = vmatprep.subr.mxu0 0.0
      %3832 = vmatpush1.msra.mxu0 0.0
      %3833 = vmatprep.subr.mxu0 0.0
      %3834 = vmatpush1.msra.mxu0 0.0
      %3835 = vmatprep.subr.mxu0 0.0
      %3836 = vmatpush1.msra.mxu0 0.0
      %3837 = vmatprep.subr.mxu0 0.0
      %3838 = vmatpush1.msra.mxu0 0.0
      %3839 = vmatprep.subr.mxu0 0.0
      %3840 = vmatpush1.msra.mxu0 0.0
      %3841 = vmatprep.subr.mxu0 0.0
      %3842 = vmatpush1.msra.mxu0 0.0
      %3843 = vmatprep.subr.mxu0 0.0
      %3844 = vmatpush1.msra.mxu0 %v3716
      %3845 = vmatprep.subr.mxu0 0.0
      %3846 = vmatpush2.msra.mxu0 0.0
      %3847 = vmatprep.subr.mxu0 0.0
      %3848 = vmatpush2.msra.mxu0 0.0
      %3849 = vmatprep.subr.mxu0 0.0
      %3850 = vmatpush2.msra.mxu0 0.0
      %3851 = vmatprep.subr.mxu0 0.0
      %3852 = vmatpush2.msra.mxu0 0.0
      %3853 = vmatprep.subr.mxu0 0.0
      %3854 = vmatpush2.msra.mxu0 0.0
      %3855 = vmatprep.subr.mxu0 0.0
      %3856 = vmatpush2.msra.mxu0 0.0
      %3857 = vmatprep.subr.mxu0 0.0
      %3858 = vmatpush2.msra.mxu0 0.0
      %3859 = vmatprep.subr.mxu0 0.0
      %3860 = vmatpush2.msra.mxu0 0.0
      %3861 = vmatprep.subr.mxu0 0.0
      %3862 = vmatpush2.msra.mxu0 0.0
      %3863 = vmatprep.subr.mxu0 0.0
      %3864 = vmatpush2.msra.mxu0 0.0
      %3865 = vmatprep.subr.mxu0 0.0
      %3866 = vmatpush2.msra.mxu0 0.0
      %3867 = vmatprep.subr.mxu0 0.0
      %3868 = vmatpush2.msra.mxu0 0.0
      %3869 = vmatprep.subr.mxu0 0.0
      %3870 = vmatpush2.msra.mxu0 0.0
      %3871 = vmatprep.subr.mxu0 0.0
      %3872 = vmatpush2.msra.mxu0 0.0
      %3873 = vmatprep.subr.mxu0 0.0
      %3874 = vmatpush2.msra.mxu0 0.0
      %3875 = vmatprep.subr.mxu0 0.0
      %3876 = vmatpush2.msra.mxu0 0.0
      %3877 = vmatprep.mubr.f32.mxu0 0.0
      %3878 = vmatmul.mubr.f32.gmra.mxu0 %v3718
      %v3879 = vpop.f32.mrf.mxu0
      %v3880 = vadd.f32 0.0, %v3879
      %v3881 = vpop.f32.mrf.mxu0
      %3882 = vmatprep.mubr.f32.mxu0 0.0
      %3883 = vmatmul.mubr.f32.gmra.mxu0 %v3721
      %v3884 = vpop.f32.mrf.mxu0
      %v3885 = vadd.f32 0.0, %v3884
      %v3886 = vpop.f32.mrf.mxu0
      %3887 = vmatprep.mubr.f32.mxu0 0.0
      %3888 = vmatmul.mubr.f32.gmra.mxu0 %v3724
      %v3889 = vpop.f32.mrf.mxu0
      %v3890 = vadd.f32 0.0, %v3889
      %v3891 = vpop.f32.mrf.mxu0
      %3892 = vmatprep.mubr.f32.mxu0 0.0
      %3893 = vmatmul.mubr.f32.gmra.mxu0 %v3727
      %v3894 = vpop.f32.mrf.mxu0
      %v3895 = vadd.f32 0.0, %v3894
      %v3896 = vpop.f32.mrf.mxu0
      %3897 = vmatprep.mubr.f32.mxu0 0.0
      %3898 = vmatmul.mubr.f32.gmra.mxu0 %v3730
      %v3899 = vpop.f32.mrf.mxu0
      %v3900 = vadd.f32 0.0, %v3899
      %v3901 = vpop.f32.mrf.mxu0
      %3902 = vmatprep.mubr.f32.mxu0 0.0
      %3903 = vmatmul.mubr.f32.gmra.mxu0 %v3733
      %v3904 = vpop.f32.mrf.mxu0
      %v3905 = vadd.f32 0.0, %v3904
      %v3906 = vpop.f32.mrf.mxu0
      %3907 = vmatprep.mubr.f32.mxu0 0.0
      %3908 = vmatmul.mubr.f32.gmra.mxu0 %v3736
      %v3909 = vpop.f32.mrf.mxu0
      %v3910 = vadd.f32 0.0, %v3909
      %v3911 = vpop.f32.mrf.mxu0
      %3912 = vmatprep.mubr.f32.mxu0 0.0
      %3913 = vmatmul.mubr.f32.gmra.mxu0 %v3739
      %v3914 = vpop.f32.mrf.mxu0
      %v3915 = vadd.f32 0.0, %v3914
      %v3916 = vpop.f32.mrf.mxu0
      %3917 = vmatprep.mubr.f32.mxu0 0.0
      %3918 = vmatmul.mubr.f32.gmra.mxu0 %v3742
      %v3919 = vpop.f32.mrf.mxu0
      %v3920 = vadd.f32 0.0, %v3919
      %v3921 = vpop.f32.mrf.mxu0
      %3922 = vmatprep.mubr.f32.mxu0 0.0
      %3923 = vmatmul.mubr.f32.gmra.mxu0 %v3745
      %v3924 = vpop.f32.mrf.mxu0
      %v3925 = vadd.f32 0.0, %v3924
      %v3926 = vpop.f32.mrf.mxu0
      %3927 = vmatprep.mubr.f32.mxu0 0.0
      %3928 = vmatmul.mubr.f32.gmra.mxu0 %v3748
      %v3929 = vpop.f32.mrf.mxu0
      %v3930 = vadd.f32 0.0, %v3929
      %v3931 = vpop.f32.mrf.mxu0
      %3932 = vmatprep.mubr.f32.mxu0 0.0
      %3933 = vmatmul.mubr.f32.gmra.mxu0 %v3751
      %v3934 = vpop.f32.mrf.mxu0
      %v3935 = vadd.f32 0.0, %v3934
      %v3936 = vpop.f32.mrf.mxu0
      %3937 = vmatprep.mubr.f32.mxu0 0.0
      %3938 = vmatmul.mubr.f32.gmra.mxu0 %v3754
      %v3939 = vpop.f32.mrf.mxu0
      %v3940 = vadd.f32 0.0, %v3939
      %v3941 = vpop.f32.mrf.mxu0
      %3942 = vmatprep.mubr.f32.mxu0 0.0
      %3943 = vmatmul.mubr.f32.gmra.mxu0 %v3757
      %v3944 = vpop.f32.mrf.mxu0
      %v3945 = vadd.f32 0.0, %v3944
      %v3946 = vpop.f32.mrf.mxu0
      %3947 = vmatprep.mubr.f32.mxu0 0.0
      %3948 = vmatmul.mubr.f32.gmra.mxu0 %v3760
      %v3949 = vpop.f32.mrf.mxu0
      %v3950 = vadd.f32 0.0, %v3949
      %v3951 = vpop.f32.mrf.mxu0
      %3952 = vmatprep.mubr.f32.mxu0 0.0
      %3953 = vmatmul.mubr.f32.gmra.mxu0 %v3763
      %v3954 = vpop.f32.mrf.mxu0
      %v3955 = vadd.f32 0.0, %v3954
      %v3956 = vpop.f32.mrf.mxu0
      %3957 = vmatprep.mubr.f32.mxu0 0.0
      %3958 = vmatmul.mubr.f32.gmra.mxu0 %v3766
      %v3959 = vpop.f32.mrf.mxu0
      %v3960 = vadd.f32 0.0, %v3959
      %v3961 = vpop.f32.mrf.mxu0
      %3962 = vmatprep.mubr.f32.mxu0 0.0
      %3963 = vmatmul.mubr.f32.gmra.mxu0 %v3769
      %v3964 = vpop.f32.mrf.mxu0
      %v3965 = vadd.f32 0.0, %v3964
      %v3966 = vpop.f32.mrf.mxu0
      %3967 = vmatprep.mubr.f32.mxu0 0.0
      %3968 = vmatmul.mubr.f32.gmra.mxu0 %v3772
      %v3969 = vpop.f32.mrf.mxu0
      %v3970 = vadd.f32 0.0, %v3969
      %v3971 = vpop.f32.mrf.mxu0
      %3972 = vmatprep.mubr.f32.mxu0 0.0
      %3973 = vmatmul.mubr.f32.gmra.mxu0 %v3775
      %v3974 = vpop.f32.mrf.mxu0
      %v3975 = vadd.f32 0.0, %v3974
      %v3976 = vpop.f32.mrf.mxu0
      %3977 = vmatprep.mubr.f32.mxu0 0.0
      %3978 = vmatmul.mubr.f32.gmra.mxu0 %v3778
      %v3979 = vpop.f32.mrf.mxu0
      %v3980 = vadd.f32 0.0, %v3979
      %v3981 = vpop.f32.mrf.mxu0
      %3982 = vmatprep.mubr.f32.mxu0 0.0
      %3983 = vmatmul.mubr.f32.gmra.mxu0 %v3781
      %v3984 = vpop.f32.mrf.mxu0
      %v3985 = vadd.f32 0.0, %v3984
      %v3986 = vpop.f32.mrf.mxu0
      %3987 = vmatprep.mubr.f32.mxu0 0.0
      %3988 = vmatmul.mubr.f32.gmra.mxu0 %v3784
      %v3989 = vpop.f32.mrf.mxu0
      %v3990 = vadd.f32 0.0, %v3989
      %v3991 = vpop.f32.mrf.mxu0
      %3992 = vmatprep.mubr.f32.mxu0 0.0
      %3993 = vmatmul.mubr.f32.gmra.mxu0 %v3787
      %v3994 = vpop.f32.mrf.mxu0
      %v3995 = vadd.f32 0.0, %v3994
      %v3996 = vpop.f32.mrf.mxu0
      %3997 = vmatprep.mubr.f32.mxu0 0.0
      %3998 = vmatmul.mubr.f32.gmra.mxu0 %v3790
      %v3999 = vpop.f32.mrf.mxu0
      %v4000 = vadd.f32 0.0, %v3999
      %v4001 = vpop.f32.mrf.mxu0
      %4002 = vmatprep.mubr.f32.mxu0 0.0
      %4003 = vmatmul.mubr.f32.gmra.mxu0 %v3793
      %v4004 = vpop.f32.mrf.mxu0
      %v4005 = vadd.f32 0.0, %v4004
      %v4006 = vpop.f32.mrf.mxu0
      %4007 = vmatprep.mubr.f32.mxu0 0.0
      %4008 = vmatmul.mubr.f32.gmra.mxu0 %v3796
      %v4009 = vpop.f32.mrf.mxu0
      %v4010 = vadd.f32 0.0, %v4009
      %v4011 = vpop.f32.mrf.mxu0
      %4012 = vmatprep.mubr.f32.mxu0 0.0
      %4013 = vmatmul.mubr.f32.gmra.mxu0 %v3799
      %v4014 = vpop.f32.mrf.mxu0
      %v4015 = vadd.f32 0.0, %v4014
      %v4016 = vpop.f32.mrf.mxu0
      %4017 = vmatprep.mubr.f32.mxu0 0.0
      %4018 = vmatmul.mubr.f32.gmra.mxu0 %v3802
      %v4019 = vpop.f32.mrf.mxu0
      %v4020 = vadd.f32 0.0, %v4019
      %v4021 = vpop.f32.mrf.mxu0
      %4022 = vmatprep.mubr.f32.mxu0 0.0
      %4023 = vmatmul.mubr.f32.gmra.mxu0 %v3805
      %v4024 = vpop.f32.mrf.mxu0
      %v4025 = vadd.f32 0.0, %v4024
      %v4026 = vpop.f32.mrf.mxu0
      %4027 = vmatprep.mubr.f32.mxu0 0.0
      %4028 = vmatmul.mubr.f32.gmra.mxu0 %v3808
      %v4029 = vpop.f32.mrf.mxu0
      %v4030 = vadd.f32 0.0, %v4029
      %v4031 = vpop.f32.mrf.mxu0
      %4032 = vmatprep.mubr.f32.mxu0 0.0
      %4033 = vmatmul.mubr.f32.gmra.mxu0 %v3811
      %v4034 = vpop.f32.mrf.mxu0
      %v4035 = vadd.f32 0.0, %v4034
      %v4036 = vpop.f32.mrf.mxu0
      %4037 = vdwg.mxu0
      %v4038 = vadd.f32 %v3651, %v3880
      %v4039 = vadd.f32 %v3652, %v3885
      %v4040 = vadd.f32 %v3653, %v3890
      %v4041 = vadd.f32 %v3654, %v3895
      %v4042 = vadd.f32 %v3655, %v3900
      %v4043 = vadd.f32 %v3656, %v3905
      %v4044 = vadd.f32 %v3657, %v3910
      %v4045 = vadd.f32 %v3658, %v3915
      %v4046 = vadd.f32 %v3659, %v3920
      %v4047 = vadd.f32 %v3660, %v3925
      %v4048 = vadd.f32 %v3661, %v3930
      %v4049 = vadd.f32 %v3662, %v3935
      %v4050 = vadd.f32 %v3663, %v3940
      %v4051 = vadd.f32 %v3664, %v3945
      %v4052 = vadd.f32 %v3665, %v3950
      %v4053 = vadd.f32 %v3666, %v3955
      %v4054 = vadd.f32 %v3667, %v3960
      %v4055 = vadd.f32 %v3668, %v3965
      %v4056 = vadd.f32 %v3669, %v3970
      %v4057 = vadd.f32 %v3670, %v3975
      %v4058 = vadd.f32 %v3671, %v3980
      %v4059 = vadd.f32 %v3672, %v3985
      %v4060 = vadd.f32 %v3673, %v3990
      %v4061 = vadd.f32 %v3674, %v3995
      %v4062 = vadd.f32 %v3675, %v4000
      %v4063 = vadd.f32 %v3676, %v4005
      %v4064 = vadd.f32 %v3677, %v4010
      %v4065 = vadd.f32 %v3678, %v4015
      %v4066 = vadd.f32 %v3679, %v4020
      %v4067 = vadd.f32 %v3680, %v4025
      %v4068 = vadd.f32 %v3681, %v4030
      %v4069 = vadd.f32 %v3682, %v4035
      %v4070 = vld [vmem:[#allocation2 + $0x22] sm:$0xff]
      %v4071 = vld [vmem:[#allocation2 + $0x2a] sm:$0xff]
      %v4072 = vld [vmem:[#allocation2 + $0x32] sm:$0xff]
      %v4073 = vld [vmem:[#allocation2 + $0x3a] sm:$0xff]
      %v4074 = vld [vmem:[#allocation2 + $0x42] sm:$0xff]
      %v4075 = vld [vmem:[#allocation2 + $0x4a] sm:$0xff]
      %v4076 = vld [vmem:[#allocation2 + $0x52] sm:$0xff]
      %v4077 = vld [vmem:[#allocation2 + $0x5a] sm:$0xff]
      %v4078 = vld [vmem:[#allocation2 + $0x62] sm:$0xff]
      %v4079 = vld [vmem:[#allocation2 + $0x6a] sm:$0xff]
      %v4080 = vld [vmem:[#allocation2 + $0x72] sm:$0xff]
      %v4081 = vld [vmem:[#allocation2 + $0x7a] sm:$0xff]
      %v4082 = vld [vmem:[#allocation2 + $0x82] sm:$0xff]
      %v4083 = vld [vmem:[#allocation2 + $0x8a] sm:$0xff]
      %v4084 = vld [vmem:[#allocation2 + $0x92] sm:$0xff]
      %v4085 = vld [vmem:[#allocation2 + $0x9a] sm:$0xff]
      %v4086 = vld [vmem:[#allocation2 + $0xa2] sm:$0xff]
      %v4087 = vld [vmem:[#allocation2 + $0xaa] sm:$0xff]
      %v4088 = vld [vmem:[#allocation2 + $0xb2] sm:$0xff]
      %v4089 = vld [vmem:[#allocation2 + $0xba] sm:$0xff]
      %v4090 = vld [vmem:[#allocation2 + $0xc2] sm:$0xff]
      %v4091 = vld [vmem:[#allocation2 + $0xca] sm:$0xff]
      %v4092 = vld [vmem:[#allocation2 + $0xd2] sm:$0xff]
      %v4093 = vld [vmem:[#allocation2 + $0xda] sm:$0xff]
      %v4094 = vld [vmem:[#allocation2 + $0xe2] sm:$0xff]
      %v4095 = vld [vmem:[#allocation2 + $0xea] sm:$0xff]
      %v4096 = vld [vmem:[#allocation2 + $0xf2] sm:$0xff]
      %v4097 = vld [vmem:[#allocation2 + $0xfa] sm:$0xff]
      %v4098 = vld [vmem:[#allocation2 + $0x102] sm:$0xff]
      %v4099 = vld [vmem:[#allocation2 + $0x10a] sm:$0xff]
      %v4100 = vld [vmem:[#allocation2 + $0x112] sm:$0xff]
      %v4101 = vld [vmem:[#allocation2 + $0x11a] sm:$0xff]
      %v4102 = vsel %vm1620, %v4070, 0.0
      %v4103 = vsel %vm1621, %v4071, 0.0
      %v4104 = vsel %vm1622, %v4072, 0.0
      %v4105 = vsel %vm1623, %v4073, 0.0
      %v4106 = vsel %vm1624, %v4074, 0.0
      %v4107 = vsel %vm1625, %v4075, 0.0
      %v4108 = vsel %vm1626, %v4076, 0.0
      %v4109 = vsel %vm1627, %v4077, 0.0
      %v4110 = vsel %vm1628, %v4078, 0.0
      %v4111 = vsel %vm1629, %v4079, 0.0
      %v4112 = vsel %vm1630, %v4080, 0.0
      %v4113 = vsel %vm1631, %v4081, 0.0
      %v4114 = vsel %vm1632, %v4082, 0.0
      %v4115 = vsel %vm1633, %v4083, 0.0
      %v4116 = vsel %vm1634, %v4084, 0.0
      %v4117 = vsel %vm1635, %v4085, 0.0
      %v4118 = vsel %vm1636, %v4086, 0.0
      %v4119 = vsel %vm1637, %v4087, 0.0
      %v4120 = vsel %vm1638, %v4088, 0.0
      %v4121 = vsel %vm1639, %v4089, 0.0
      %v4122 = vsel %vm1640, %v4090, 0.0
      %v4123 = vsel %vm1641, %v4091, 0.0
      %v4124 = vsel %vm1642, %v4092, 0.0
      %v4125 = vsel %vm1643, %v4093, 0.0
      %v4126 = vsel %vm1644, %v4094, 0.0
      %v4127 = vsel %vm1645, %v4095, 0.0
      %v4128 = vsel %vm1646, %v4096, 0.0
      %v4129 = vsel %vm1647, %v4097, 0.0
      %v4130 = vsel %vm1648, %v4098, 0.0
      %v4131 = vsel %vm1649, %v4099, 0.0
      %v4132 = vsel %vm1650, %v4100, 0.0
      %v4133 = vsel %vm1651, %v4101, 0.0
      %s4134 = scalar_lea.vmem %s1, 64
      %v4135 = vld [vmem:[%s4134] sm:$0xff]
      %v4137 = vsel %vm198, %v4102, 0
      %v4140 = vsel %vm198, %v4103, 0
      %v4143 = vsel %vm198, %v4104, 0
      %v4146 = vsel %vm198, %v4105, 0
      %v4149 = vsel %vm198, %v4106, 0
      %v4152 = vsel %vm198, %v4107, 0
      %v4155 = vsel %vm198, %v4108, 0
      %v4158 = vsel %vm198, %v4109, 0
      %v4161 = vsel %vm198, %v4110, 0
      %v4164 = vsel %vm198, %v4111, 0
      %v4167 = vsel %vm198, %v4112, 0
      %v4170 = vsel %vm198, %v4113, 0
      %v4173 = vsel %vm198, %v4114, 0
      %v4176 = vsel %vm198, %v4115, 0
      %v4179 = vsel %vm198, %v4116, 0
      %v4182 = vsel %vm198, %v4117, 0
      %v4185 = vsel %vm198, %v4118, 0
      %v4188 = vsel %vm198, %v4119, 0
      %v4191 = vsel %vm198, %v4120, 0
      %v4194 = vsel %vm198, %v4121, 0
      %v4197 = vsel %vm198, %v4122, 0
      %v4200 = vsel %vm198, %v4123, 0
      %v4203 = vsel %vm198, %v4124, 0
      %v4206 = vsel %vm198, %v4125, 0
      %v4209 = vsel %vm198, %v4126, 0
      %v4212 = vsel %vm198, %v4127, 0
      %v4215 = vsel %vm198, %v4128, 0
      %v4218 = vsel %vm198, %v4129, 0
      %v4221 = vsel %vm198, %v4130, 0
      %v4224 = vsel %vm198, %v4131, 0
      %v4227 = vsel %vm198, %v4132, 0
      %v4230 = vsel %vm198, %v4133, 0
      %4232 = vmatprep.subr.mxu0 0.0
      %4233 = vmatpush1.msra.mxu0 0.0
      %4234 = vmatprep.subr.mxu0 0.0
      %4235 = vmatpush1.msra.mxu0 0.0
      %4236 = vmatprep.subr.mxu0 0.0
      %4237 = vmatpush1.msra.mxu0 0.0
      %4238 = vmatprep.subr.mxu0 0.0
      %4239 = vmatpush1.msra.mxu0 0.0
      %4240 = vmatprep.subr.mxu0 0.0
      %4241 = vmatpush1.msra.mxu0 0.0
      %4242 = vmatprep.subr.mxu0 0.0
      %4243 = vmatpush1.msra.mxu0 0.0
      %4244 = vmatprep.subr.mxu0 0.0
      %4245 = vmatpush1.msra.mxu0 0.0
      %4246 = vmatprep.subr.mxu0 0.0
      %4247 = vmatpush1.msra.mxu0 0.0
      %4248 = vmatprep.subr.mxu0 0.0
      %4249 = vmatpush1.msra.mxu0 0.0
      %4250 = vmatprep.subr.mxu0 0.0
      %4251 = vmatpush1.msra.mxu0 0.0
      %4252 = vmatprep.subr.mxu0 0.0
      %4253 = vmatpush1.msra.mxu0 0.0
      %4254 = vmatprep.subr.mxu0 0.0
      %4255 = vmatpush1.msra.mxu0 0.0
      %4256 = vmatprep.subr.mxu0 0.0
      %4257 = vmatpush1.msra.mxu0 0.0
      %4258 = vmatprep.subr.mxu0 0.0
      %4259 = vmatpush1.msra.mxu0 0.0
      %4260 = vmatprep.subr.mxu0 0.0
      %4261 = vmatpush1.msra.mxu0 0.0
      %4262 = vmatprep.subr.mxu0 0.0
      %4263 = vmatpush1.msra.mxu0 %v4135
      %4264 = vmatprep.subr.mxu0 0.0
      %4265 = vmatpush2.msra.mxu0 0.0
      %4266 = vmatprep.subr.mxu0 0.0
      %4267 = vmatpush2.msra.mxu0 0.0
      %4268 = vmatprep.subr.mxu0 0.0
      %4269 = vmatpush2.msra.mxu0 0.0
      %4270 = vmatprep.subr.mxu0 0.0
      %4271 = vmatpush2.msra.mxu0 0.0
      %4272 = vmatprep.subr.mxu0 0.0
      %4273 = vmatpush2.msra.mxu0 0.0
      %4274 = vmatprep.subr.mxu0 0.0
      %4275 = vmatpush2.msra.mxu0 0.0
      %4276 = vmatprep.subr.mxu0 0.0
      %4277 = vmatpush2.msra.mxu0 0.0
      %4278 = vmatprep.subr.mxu0 0.0
      %4279 = vmatpush2.msra.mxu0 0.0
      %4280 = vmatprep.subr.mxu0 0.0
      %4281 = vmatpush2.msra.mxu0 0.0
      %4282 = vmatprep.subr.mxu0 0.0
      %4283 = vmatpush2.msra.mxu0 0.0
      %4284 = vmatprep.subr.mxu0 0.0
      %4285 = vmatpush2.msra.mxu0 0.0
      %4286 = vmatprep.subr.mxu0 0.0
      %4287 = vmatpush2.msra.mxu0 0.0
      %4288 = vmatprep.subr.mxu0 0.0
      %4289 = vmatpush2.msra.mxu0 0.0
      %4290 = vmatprep.subr.mxu0 0.0
      %4291 = vmatpush2.msra.mxu0 0.0
      %4292 = vmatprep.subr.mxu0 0.0
      %4293 = vmatpush2.msra.mxu0 0.0
      %4294 = vmatprep.subr.mxu0 0.0
      %4295 = vmatpush2.msra.mxu0 0.0
      %4296 = vmatprep.mubr.f32.mxu0 0.0
      %4297 = vmatmul.mubr.f32.gmra.mxu0 %v4137
      %v4298 = vpop.f32.mrf.mxu0
      %v4299 = vadd.f32 0.0, %v4298
      %v4300 = vpop.f32.mrf.mxu0
      %4301 = vmatprep.mubr.f32.mxu0 0.0
      %4302 = vmatmul.mubr.f32.gmra.mxu0 %v4140
      %v4303 = vpop.f32.mrf.mxu0
      %v4304 = vadd.f32 0.0, %v4303
      %v4305 = vpop.f32.mrf.mxu0
      %4306 = vmatprep.mubr.f32.mxu0 0.0
      %4307 = vmatmul.mubr.f32.gmra.mxu0 %v4143
      %v4308 = vpop.f32.mrf.mxu0
      %v4309 = vadd.f32 0.0, %v4308
      %v4310 = vpop.f32.mrf.mxu0
      %4311 = vmatprep.mubr.f32.mxu0 0.0
      %4312 = vmatmul.mubr.f32.gmra.mxu0 %v4146
      %v4313 = vpop.f32.mrf.mxu0
      %v4314 = vadd.f32 0.0, %v4313
      %v4315 = vpop.f32.mrf.mxu0
      %4316 = vmatprep.mubr.f32.mxu0 0.0
      %4317 = vmatmul.mubr.f32.gmra.mxu0 %v4149
      %v4318 = vpop.f32.mrf.mxu0
      %v4319 = vadd.f32 0.0, %v4318
      %v4320 = vpop.f32.mrf.mxu0
      %4321 = vmatprep.mubr.f32.mxu0 0.0
      %4322 = vmatmul.mubr.f32.gmra.mxu0 %v4152
      %v4323 = vpop.f32.mrf.mxu0
      %v4324 = vadd.f32 0.0, %v4323
      %v4325 = vpop.f32.mrf.mxu0
      %4326 = vmatprep.mubr.f32.mxu0 0.0
      %4327 = vmatmul.mubr.f32.gmra.mxu0 %v4155
      %v4328 = vpop.f32.mrf.mxu0
      %v4329 = vadd.f32 0.0, %v4328
      %v4330 = vpop.f32.mrf.mxu0
      %4331 = vmatprep.mubr.f32.mxu0 0.0
      %4332 = vmatmul.mubr.f32.gmra.mxu0 %v4158
      %v4333 = vpop.f32.mrf.mxu0
      %v4334 = vadd.f32 0.0, %v4333
      %v4335 = vpop.f32.mrf.mxu0
      %4336 = vmatprep.mubr.f32.mxu0 0.0
      %4337 = vmatmul.mubr.f32.gmra.mxu0 %v4161
      %v4338 = vpop.f32.mrf.mxu0
      %v4339 = vadd.f32 0.0, %v4338
      %v4340 = vpop.f32.mrf.mxu0
      %4341 = vmatprep.mubr.f32.mxu0 0.0
      %4342 = vmatmul.mubr.f32.gmra.mxu0 %v4164
      %v4343 = vpop.f32.mrf.mxu0
      %v4344 = vadd.f32 0.0, %v4343
      %v4345 = vpop.f32.mrf.mxu0
      %4346 = vmatprep.mubr.f32.mxu0 0.0
      %4347 = vmatmul.mubr.f32.gmra.mxu0 %v4167
      %v4348 = vpop.f32.mrf.mxu0
      %v4349 = vadd.f32 0.0, %v4348
      %v4350 = vpop.f32.mrf.mxu0
      %4351 = vmatprep.mubr.f32.mxu0 0.0
      %4352 = vmatmul.mubr.f32.gmra.mxu0 %v4170
      %v4353 = vpop.f32.mrf.mxu0
      %v4354 = vadd.f32 0.0, %v4353
      %v4355 = vpop.f32.mrf.mxu0
      %4356 = vmatprep.mubr.f32.mxu0 0.0
      %4357 = vmatmul.mubr.f32.gmra.mxu0 %v4173
      %v4358 = vpop.f32.mrf.mxu0
      %v4359 = vadd.f32 0.0, %v4358
      %v4360 = vpop.f32.mrf.mxu0
      %4361 = vmatprep.mubr.f32.mxu0 0.0
      %4362 = vmatmul.mubr.f32.gmra.mxu0 %v4176
      %v4363 = vpop.f32.mrf.mxu0
      %v4364 = vadd.f32 0.0, %v4363
      %v4365 = vpop.f32.mrf.mxu0
      %4366 = vmatprep.mubr.f32.mxu0 0.0
      %4367 = vmatmul.mubr.f32.gmra.mxu0 %v4179
      %v4368 = vpop.f32.mrf.mxu0
      %v4369 = vadd.f32 0.0, %v4368
      %v4370 = vpop.f32.mrf.mxu0
      %4371 = vmatprep.mubr.f32.mxu0 0.0
      %4372 = vmatmul.mubr.f32.gmra.mxu0 %v4182
      %v4373 = vpop.f32.mrf.mxu0
      %v4374 = vadd.f32 0.0, %v4373
      %v4375 = vpop.f32.mrf.mxu0
      %4376 = vmatprep.mubr.f32.mxu0 0.0
      %4377 = vmatmul.mubr.f32.gmra.mxu0 %v4185
      %v4378 = vpop.f32.mrf.mxu0
      %v4379 = vadd.f32 0.0, %v4378
      %v4380 = vpop.f32.mrf.mxu0
      %4381 = vmatprep.mubr.f32.mxu0 0.0
      %4382 = vmatmul.mubr.f32.gmra.mxu0 %v4188
      %v4383 = vpop.f32.mrf.mxu0
      %v4384 = vadd.f32 0.0, %v4383
      %v4385 = vpop.f32.mrf.mxu0
      %4386 = vmatprep.mubr.f32.mxu0 0.0
      %4387 = vmatmul.mubr.f32.gmra.mxu0 %v4191
      %v4388 = vpop.f32.mrf.mxu0
      %v4389 = vadd.f32 0.0, %v4388
      %v4390 = vpop.f32.mrf.mxu0
      %4391 = vmatprep.mubr.f32.mxu0 0.0
      %4392 = vmatmul.mubr.f32.gmra.mxu0 %v4194
      %v4393 = vpop.f32.mrf.mxu0
      %v4394 = vadd.f32 0.0, %v4393
      %v4395 = vpop.f32.mrf.mxu0
      %4396 = vmatprep.mubr.f32.mxu0 0.0
      %4397 = vmatmul.mubr.f32.gmra.mxu0 %v4197
      %v4398 = vpop.f32.mrf.mxu0
      %v4399 = vadd.f32 0.0, %v4398
      %v4400 = vpop.f32.mrf.mxu0
      %4401 = vmatprep.mubr.f32.mxu0 0.0
      %4402 = vmatmul.mubr.f32.gmra.mxu0 %v4200
      %v4403 = vpop.f32.mrf.mxu0
      %v4404 = vadd.f32 0.0, %v4403
      %v4405 = vpop.f32.mrf.mxu0
      %4406 = vmatprep.mubr.f32.mxu0 0.0
      %4407 = vmatmul.mubr.f32.gmra.mxu0 %v4203
      %v4408 = vpop.f32.mrf.mxu0
      %v4409 = vadd.f32 0.0, %v4408
      %v4410 = vpop.f32.mrf.mxu0
      %4411 = vmatprep.mubr.f32.mxu0 0.0
      %4412 = vmatmul.mubr.f32.gmra.mxu0 %v4206
      %v4413 = vpop.f32.mrf.mxu0
      %v4414 = vadd.f32 0.0, %v4413
      %v4415 = vpop.f32.mrf.mxu0
      %4416 = vmatprep.mubr.f32.mxu0 0.0
      %4417 = vmatmul.mubr.f32.gmra.mxu0 %v4209
      %v4418 = vpop.f32.mrf.mxu0
      %v4419 = vadd.f32 0.0, %v4418
      %v4420 = vpop.f32.mrf.mxu0
      %4421 = vmatprep.mubr.f32.mxu0 0.0
      %4422 = vmatmul.mubr.f32.gmra.mxu0 %v4212
      %v4423 = vpop.f32.mrf.mxu0
      %v4424 = vadd.f32 0.0, %v4423
      %v4425 = vpop.f32.mrf.mxu0
      %4426 = vmatprep.mubr.f32.mxu0 0.0
      %4427 = vmatmul.mubr.f32.gmra.mxu0 %v4215
      %v4428 = vpop.f32.mrf.mxu0
      %v4429 = vadd.f32 0.0, %v4428
      %v4430 = vpop.f32.mrf.mxu0
      %4431 = vmatprep.mubr.f32.mxu0 0.0
      %4432 = vmatmul.mubr.f32.gmra.mxu0 %v4218
      %v4433 = vpop.f32.mrf.mxu0
      %v4434 = vadd.f32 0.0, %v4433
      %v4435 = vpop.f32.mrf.mxu0
      %4436 = vmatprep.mubr.f32.mxu0 0.0
      %4437 = vmatmul.mubr.f32.gmra.mxu0 %v4221
      %v4438 = vpop.f32.mrf.mxu0
      %v4439 = vadd.f32 0.0, %v4438
      %v4440 = vpop.f32.mrf.mxu0
      %4441 = vmatprep.mubr.f32.mxu0 0.0
      %4442 = vmatmul.mubr.f32.gmra.mxu0 %v4224
      %v4443 = vpop.f32.mrf.mxu0
      %v4444 = vadd.f32 0.0, %v4443
      %v4445 = vpop.f32.mrf.mxu0
      %4446 = vmatprep.mubr.f32.mxu0 0.0
      %4447 = vmatmul.mubr.f32.gmra.mxu0 %v4227
      %v4448 = vpop.f32.mrf.mxu0
      %v4449 = vadd.f32 0.0, %v4448
      %v4450 = vpop.f32.mrf.mxu0
      %4451 = vmatprep.mubr.f32.mxu0 0.0
      %4452 = vmatmul.mubr.f32.gmra.mxu0 %v4230
      %v4453 = vpop.f32.mrf.mxu0
      %v4454 = vadd.f32 0.0, %v4453
      %v4455 = vpop.f32.mrf.mxu0
      %4456 = vdwg.mxu0
      %v4457 = vadd.f32 %v4038, %v4299
      %v4458 = vadd.f32 %v4039, %v4304
      %v4459 = vadd.f32 %v4040, %v4309
      %v4460 = vadd.f32 %v4041, %v4314
      %v4461 = vadd.f32 %v4042, %v4319
      %v4462 = vadd.f32 %v4043, %v4324
      %v4463 = vadd.f32 %v4044, %v4329
      %v4464 = vadd.f32 %v4045, %v4334
      %v4465 = vadd.f32 %v4046, %v4339
      %v4466 = vadd.f32 %v4047, %v4344
      %v4467 = vadd.f32 %v4048, %v4349
      %v4468 = vadd.f32 %v4049, %v4354
      %v4469 = vadd.f32 %v4050, %v4359
      %v4470 = vadd.f32 %v4051, %v4364
      %v4471 = vadd.f32 %v4052, %v4369
      %v4472 = vadd.f32 %v4053, %v4374
      %v4473 = vadd.f32 %v4054, %v4379
      %v4474 = vadd.f32 %v4055, %v4384
      %v4475 = vadd.f32 %v4056, %v4389
      %v4476 = vadd.f32 %v4057, %v4394
      %v4477 = vadd.f32 %v4058, %v4399
      %v4478 = vadd.f32 %v4059, %v4404
      %v4479 = vadd.f32 %v4060, %v4409
      %v4480 = vadd.f32 %v4061, %v4414
      %v4481 = vadd.f32 %v4062, %v4419
      %v4482 = vadd.f32 %v4063, %v4424
      %v4483 = vadd.f32 %v4064, %v4429
      %v4484 = vadd.f32 %v4065, %v4434
      %v4485 = vadd.f32 %v4066, %v4439
      %v4486 = vadd.f32 %v4067, %v4444
      %v4487 = vadd.f32 %v4068, %v4449
      %v4488 = vadd.f32 %v4069, %v4454
      %v4489 = vld [vmem:[%s2] sm:$0x1]
      %v4491 = vlaneseq
      %v4492 = vshrl.u32 %v4491, 7
      %v4493 = vsub.s32 0, %v4492
      %v4494 = vrot.slane %v4489, %v4493
      %v4496 = vmul.f32 %v4457, %v4494
      %v4497 = vmul.f32 %v4458, %v4494
      %v4498 = vmul.f32 %v4459, %v4494
      %v4499 = vmul.f32 %v4460, %v4494
      %v4500 = vmul.f32 %v4461, %v4494
      %v4501 = vmul.f32 %v4462, %v4494
      %v4502 = vmul.f32 %v4463, %v4494
      %v4503 = vmul.f32 %v4464, %v4494
      %v4504 = vmul.f32 %v4465, %v4494
      %v4505 = vmul.f32 %v4466, %v4494
      %v4506 = vmul.f32 %v4467, %v4494
      %v4507 = vmul.f32 %v4468, %v4494
      %v4508 = vmul.f32 %v4469, %v4494
      %v4509 = vmul.f32 %v4470, %v4494
      %v4510 = vmul.f32 %v4471, %v4494
      %v4511 = vmul.f32 %v4472, %v4494
      %v4512 = vmul.f32 %v4473, %v4494
      %v4513 = vmul.f32 %v4474, %v4494
      %v4514 = vmul.f32 %v4475, %v4494
      %v4515 = vmul.f32 %v4476, %v4494
      %v4516 = vmul.f32 %v4477, %v4494
      %v4517 = vmul.f32 %v4478, %v4494
      %v4518 = vmul.f32 %v4479, %v4494
      %v4519 = vmul.f32 %v4480, %v4494
      %v4520 = vmul.f32 %v4481, %v4494
      %v4521 = vmul.f32 %v4482, %v4494
      %v4522 = vmul.f32 %v4483, %v4494
      %v4523 = vmul.f32 %v4484, %v4494
      %v4524 = vmul.f32 %v4485, %v4494
      %v4525 = vmul.f32 %v4486, %v4494
      %v4526 = vmul.f32 %v4487, %v4494
      %v4527 = vmul.f32 %v4488, %v4494
      %v4528 = vld [vmem:[%s3] sm:$0x1]
      %v4530 = vlaneseq
      %v4531 = vshrl.u32 %v4530, 7
      %v4532 = vsub.s32 0, %v4531
      %v4533 = vrot.slane %v4528, %v4532
      %v4535 = vadd.f32 %v4496, %v4533
      %v4536 = vadd.f32 %v4497, %v4533
      %v4537 = vadd.f32 %v4498, %v4533
      %v4538 = vadd.f32 %v4499, %v4533
      %v4539 = vadd.f32 %v4500, %v4533
      %v4540 = vadd.f32 %v4501, %v4533
      %v4541 = vadd.f32 %v4502, %v4533
      %v4542 = vadd.f32 %v4503, %v4533
      %v4543 = vadd.f32 %v4504, %v4533
      %v4544 = vadd.f32 %v4505, %v4533
      %v4545 = vadd.f32 %v4506, %v4533
      %v4546 = vadd.f32 %v4507, %v4533
      %v4547 = vadd.f32 %v4508, %v4533
      %v4548 = vadd.f32 %v4509, %v4533
      %v4549 = vadd.f32 %v4510, %v4533
      %v4550 = vadd.f32 %v4511, %v4533
      %v4551 = vadd.f32 %v4512, %v4533
      %v4552 = vadd.f32 %v4513, %v4533
      %v4553 = vadd.f32 %v4514, %v4533
      %v4554 = vadd.f32 %v4515, %v4533
      %v4555 = vadd.f32 %v4516, %v4533
      %v4556 = vadd.f32 %v4517, %v4533
      %v4557 = vadd.f32 %v4518, %v4533
      %v4558 = vadd.f32 %v4519, %v4533
      %v4559 = vadd.f32 %v4520, %v4533
      %v4560 = vadd.f32 %v4521, %v4533
      %v4561 = vadd.f32 %v4522, %v4533
      %v4562 = vadd.f32 %v4523, %v4533
      %v4563 = vadd.f32 %v4524, %v4533
      %v4564 = vadd.f32 %v4525, %v4533
      %v4565 = vadd.f32 %v4526, %v4533
      %v4566 = vadd.f32 %v4527, %v4533
      %v4567 = vxor.u32 %v4535, 2147483648
      %v4568 = vxor.u32 %v4536, 2147483648
      %v4569 = vxor.u32 %v4537, 2147483648
      %v4570 = vxor.u32 %v4538, 2147483648
      %v4571 = vxor.u32 %v4539, 2147483648
      %v4572 = vxor.u32 %v4540, 2147483648
      %v4573 = vxor.u32 %v4541, 2147483648
      %v4574 = vxor.u32 %v4542, 2147483648
      %v4575 = vxor.u32 %v4543, 2147483648
      %v4576 = vxor.u32 %v4544, 2147483648
      %v4577 = vxor.u32 %v4545, 2147483648
      %v4578 = vxor.u32 %v4546, 2147483648
      %v4579 = vxor.u32 %v4547, 2147483648
      %v4580 = vxor.u32 %v4548, 2147483648
      %v4581 = vxor.u32 %v4549, 2147483648
      %v4582 = vxor.u32 %v4550, 2147483648
      %v4583 = vxor.u32 %v4551, 2147483648
      %v4584 = vxor.u32 %v4552, 2147483648
      %v4585 = vxor.u32 %v4553, 2147483648
      %v4586 = vxor.u32 %v4554, 2147483648
      %v4587 = vxor.u32 %v4555, 2147483648
      %v4588 = vxor.u32 %v4556, 2147483648
      %v4589 = vxor.u32 %v4557, 2147483648
      %v4590 = vxor.u32 %v4558, 2147483648
      %v4591 = vxor.u32 %v4559, 2147483648
      %v4592 = vxor.u32 %v4560, 2147483648
      %v4593 = vxor.u32 %v4561, 2147483648
      %v4594 = vxor.u32 %v4562, 2147483648
      %v4595 = vxor.u32 %v4563, 2147483648
      %v4596 = vxor.u32 %v4564, 2147483648
      %v4597 = vxor.u32 %v4565, 2147483648
      %v4598 = vxor.u32 %v4566, 2147483648
      %v4599 = vmul.f32 %v4567, 1.442695
      %v4600 = vpow.pop %v4599
      %v4601 = vmul.f32 %v4568, 1.442695
      %v4602 = vpow.pop %v4601
      %v4603 = vmul.f32 %v4569, 1.442695
      %v4604 = vpow.pop %v4603
      %v4605 = vmul.f32 %v4570, 1.442695
      %v4606 = vpow.pop %v4605
      %v4607 = vmul.f32 %v4571, 1.442695
      %v4608 = vpow.pop %v4607
      %v4609 = vmul.f32 %v4572, 1.442695
      %v4610 = vpow.pop %v4609
      %v4611 = vmul.f32 %v4573, 1.442695
      %v4612 = vpow.pop %v4611
      %v4613 = vmul.f32 %v4574, 1.442695
      %v4614 = vpow.pop %v4613
      %v4615 = vmul.f32 %v4575, 1.442695
      %v4616 = vpow.pop %v4615
      %v4617 = vmul.f32 %v4576, 1.442695
      %v4618 = vpow.pop %v4617
      %v4619 = vmul.f32 %v4577, 1.442695
      %v4620 = vpow.pop %v4619
      %v4621 = vmul.f32 %v4578, 1.442695
      %v4622 = vpow.pop %v4621
      %v4623 = vmul.f32 %v4579, 1.442695
      %v4624 = vpow.pop %v4623
      %v4625 = vmul.f32 %v4580, 1.442695
      %v4626 = vpow.pop %v4625
      %v4627 = vmul.f32 %v4581, 1.442695
      %v4628 = vpow.pop %v4627
      %v4629 = vmul.f32 %v4582, 1.442695
      %v4630 = vpow.pop %v4629
      %v4631 = vmul.f32 %v4583, 1.442695
      %v4632 = vpow.pop %v4631
      %v4633 = vmul.f32 %v4584, 1.442695
      %v4634 = vpow.pop %v4633
      %v4635 = vmul.f32 %v4585, 1.442695
      %v4636 = vpow.pop %v4635
      %v4637 = vmul.f32 %v4586, 1.442695
      %v4638 = vpow.pop %v4637
      %v4639 = vmul.f32 %v4587, 1.442695
      %v4640 = vpow.pop %v4639
      %v4641 = vmul.f32 %v4588, 1.442695
      %v4642 = vpow.pop %v4641
      %v4643 = vmul.f32 %v4589, 1.442695
      %v4644 = vpow.pop %v4643
      %v4645 = vmul.f32 %v4590, 1.442695
      %v4646 = vpow.pop %v4645
      %v4647 = vmul.f32 %v4591, 1.442695
      %v4648 = vpow.pop %v4647
      %v4649 = vmul.f32 %v4592, 1.442695
      %v4650 = vpow.pop %v4649
      %v4651 = vmul.f32 %v4593, 1.442695
      %v4652 = vpow.pop %v4651
      %v4653 = vmul.f32 %v4594, 1.442695
      %v4654 = vpow.pop %v4653
      %v4655 = vmul.f32 %v4595, 1.442695
      %v4656 = vpow.pop %v4655
      %v4657 = vmul.f32 %v4596, 1.442695
      %v4658 = vpow.pop %v4657
      %v4659 = vmul.f32 %v4597, 1.442695
      %v4660 = vpow.pop %v4659
      %v4661 = vmul.f32 %v4598, 1.442695
      %v4662 = vpow.pop %v4661
      %v4663 = vadd.f32 %v4600, 1.0
      %v4664 = vadd.f32 %v4602, 1.0
      %v4665 = vadd.f32 %v4604, 1.0
      %v4666 = vadd.f32 %v4606, 1.0
      %v4667 = vadd.f32 %v4608, 1.0
      %v4668 = vadd.f32 %v4610, 1.0
      %v4669 = vadd.f32 %v4612, 1.0
      %v4670 = vadd.f32 %v4614, 1.0
      %v4671 = vadd.f32 %v4616, 1.0
      %v4672 = vadd.f32 %v4618, 1.0
      %v4673 = vadd.f32 %v4620, 1.0
      %v4674 = vadd.f32 %v4622, 1.0
      %v4675 = vadd.f32 %v4624, 1.0
      %v4676 = vadd.f32 %v4626, 1.0
      %v4677 = vadd.f32 %v4628, 1.0
      %v4678 = vadd.f32 %v4630, 1.0
      %v4679 = vadd.f32 %v4632, 1.0
      %v4680 = vadd.f32 %v4634, 1.0
      %v4681 = vadd.f32 %v4636, 1.0
      %v4682 = vadd.f32 %v4638, 1.0
      %v4683 = vadd.f32 %v4640, 1.0
      %v4684 = vadd.f32 %v4642, 1.0
      %v4685 = vadd.f32 %v4644, 1.0
      %v4686 = vadd.f32 %v4646, 1.0
      %v4687 = vadd.f32 %v4648, 1.0
      %v4688 = vadd.f32 %v4650, 1.0
      %v4689 = vadd.f32 %v4652, 1.0
      %v4690 = vadd.f32 %v4654, 1.0
      %v4691 = vadd.f32 %v4656, 1.0
      %v4692 = vadd.f32 %v4658, 1.0
      %v4693 = vadd.f32 %v4660, 1.0
      %v4694 = vadd.f32 %v4662, 1.0
      %v4695 = vrcp.pop %v4663
      %v4696 = vmul.f32 1.0, %v4695
      %v4697 = vrcp.pop %v4664
      %v4698 = vmul.f32 1.0, %v4697
      %v4699 = vrcp.pop %v4665
      %v4700 = vmul.f32 1.0, %v4699
      %v4701 = vrcp.pop %v4666
      %v4702 = vmul.f32 1.0, %v4701
      %v4703 = vrcp.pop %v4667
      %v4704 = vmul.f32 1.0, %v4703
      %v4705 = vrcp.pop %v4668
      %v4706 = vmul.f32 1.0, %v4705
      %v4707 = vrcp.pop %v4669
      %v4708 = vmul.f32 1.0, %v4707
      %v4709 = vrcp.pop %v4670
      %v4710 = vmul.f32 1.0, %v4709
      %v4711 = vrcp.pop %v4671
      %v4712 = vmul.f32 1.0, %v4711
      %v4713 = vrcp.pop %v4672
      %v4714 = vmul.f32 1.0, %v4713
      %v4715 = vrcp.pop %v4673
      %v4716 = vmul.f32 1.0, %v4715
      %v4717 = vrcp.pop %v4674
      %v4718 = vmul.f32 1.0, %v4717
      %v4719 = vrcp.pop %v4675
      %v4720 = vmul.f32 1.0, %v4719
      %v4721 = vrcp.pop %v4676
      %v4722 = vmul.f32 1.0, %v4721
      %v4723 = vrcp.pop %v4677
      %v4724 = vmul.f32 1.0, %v4723
      %v4725 = vrcp.pop %v4678
      %v4726 = vmul.f32 1.0, %v4725
      %v4727 = vrcp.pop %v4679
      %v4728 = vmul.f32 1.0, %v4727
      %v4729 = vrcp.pop %v4680
      %v4730 = vmul.f32 1.0, %v4729
      %v4731 = vrcp.pop %v4681
      %v4732 = vmul.f32 1.0, %v4731
      %v4733 = vrcp.pop %v4682
      %v4734 = vmul.f32 1.0, %v4733
      %v4735 = vrcp.pop %v4683
      %v4736 = vmul.f32 1.0, %v4735
      %v4737 = vrcp.pop %v4684
      %v4738 = vmul.f32 1.0, %v4737
      %v4739 = vrcp.pop %v4685
      %v4740 = vmul.f32 1.0, %v4739
      %v4741 = vrcp.pop %v4686
      %v4742 = vmul.f32 1.0, %v4741
      %v4743 = vrcp.pop %v4687
      %v4744 = vmul.f32 1.0, %v4743
      %v4745 = vrcp.pop %v4688
      %v4746 = vmul.f32 1.0, %v4745
      %v4747 = vrcp.pop %v4689
      %v4748 = vmul.f32 1.0, %v4747
      %v4749 = vrcp.pop %v4690
      %v4750 = vmul.f32 1.0, %v4749
      %v4751 = vrcp.pop %v4691
      %v4752 = vmul.f32 1.0, %v4751
      %v4753 = vrcp.pop %v4692
      %v4754 = vmul.f32 1.0, %v4753
      %v4755 = vrcp.pop %v4693
      %v4756 = vmul.f32 1.0, %v4755
      %v4757 = vrcp.pop %v4694
      %v4758 = vmul.f32 1.0, %v4757
      %v4759 = vmul.f32 %v4535, %v4696
      %v4760 = vmul.f32 %v4536, %v4698
      %v4761 = vmul.f32 %v4537, %v4700
      %v4762 = vmul.f32 %v4538, %v4702
      %v4763 = vmul.f32 %v4539, %v4704
      %v4764 = vmul.f32 %v4540, %v4706
      %v4765 = vmul.f32 %v4541, %v4708
      %v4766 = vmul.f32 %v4542, %v4710
      %v4767 = vmul.f32 %v4543, %v4712
      %v4768 = vmul.f32 %v4544, %v4714
      %v4769 = vmul.f32 %v4545, %v4716
      %v4770 = vmul.f32 %v4546, %v4718
      %v4771 = vmul.f32 %v4547, %v4720
      %v4772 = vmul.f32 %v4548, %v4722
      %v4773 = vmul.f32 %v4549, %v4724
      %v4774 = vmul.f32 %v4550, %v4726
      %v4775 = vmul.f32 %v4551, %v4728
      %v4776 = vmul.f32 %v4552, %v4730
      %v4777 = vmul.f32 %v4553, %v4732
      %v4778 = vmul.f32 %v4554, %v4734
      %v4779 = vmul.f32 %v4555, %v4736
      %v4780 = vmul.f32 %v4556, %v4738
      %v4781 = vmul.f32 %v4557, %v4740
      %v4782 = vmul.f32 %v4558, %v4742
      %v4783 = vmul.f32 %v4559, %v4744
      %v4784 = vmul.f32 %v4560, %v4746
      %v4785 = vmul.f32 %v4561, %v4748
      %v4786 = vmul.f32 %v4562, %v4750
      %v4787 = vmul.f32 %v4563, %v4752
      %v4788 = vmul.f32 %v4564, %v4754
      %v4789 = vmul.f32 %v4565, %v4756
      %v4790 = vmul.f32 %v4566, %v4758
      %v4791 = vadd.f32 %v4759, %v206
      %v4792 = vadd.f32 %v4760, %v207
      %v4793 = vadd.f32 %v4761, %v208
      %v4794 = vadd.f32 %v4762, %v209
      %v4795 = vadd.f32 %v4763, %v210
      %v4796 = vadd.f32 %v4764, %v211
      %v4797 = vadd.f32 %v4765, %v212
      %v4798 = vadd.f32 %v4766, %v213
      %v4799 = vadd.f32 %v4767, %v214
      %v4800 = vadd.f32 %v4768, %v215
      %v4801 = vadd.f32 %v4769, %v216
      %v4802 = vadd.f32 %v4770, %v217
      %v4803 = vadd.f32 %v4771, %v218
      %v4804 = vadd.f32 %v4772, %v219
      %v4805 = vadd.f32 %v4773, %v220
      %v4806 = vadd.f32 %v4774, %v221
      %v4807 = vadd.f32 %v4775, %v222
      %v4808 = vadd.f32 %v4776, %v223
      %v4809 = vadd.f32 %v4777, %v224
      %v4810 = vadd.f32 %v4778, %v225
      %v4811 = vadd.f32 %v4779, %v226
      %v4812 = vadd.f32 %v4780, %v227
      %v4813 = vadd.f32 %v4781, %v228
      %v4814 = vadd.f32 %v4782, %v229
      %v4815 = vadd.f32 %v4783, %v230
      %v4816 = vadd.f32 %v4784, %v231
      %v4817 = vadd.f32 %v4785, %v232
      %v4818 = vadd.f32 %v4786, %v233
      %v4819 = vadd.f32 %v4787, %v234
      %v4820 = vadd.f32 %v4788, %v235
      %v4821 = vadd.f32 %v4789, %v236
      %v4822 = vadd.f32 %v4790, %v237
      %4823 = vst.msk [vmem:[%s197] sm:$0xff] %vm198, %v4791
      %4824 = vst.msk [vmem:[%s197 + $0x8] sm:$0xff] %vm198, %v4792
      %4825 = vst.msk [vmem:[%s197 + $0x10] sm:$0xff] %vm198, %v4793
      %4826 = vst.msk [vmem:[%s197 + $0x18] sm:$0xff] %vm198, %v4794
      %4827 = vst.msk [vmem:[%s197 + $0x20] sm:$0xff] %vm198, %v4795
      %4828 = vst.msk [vmem:[%s197 + $0x28] sm:$0xff] %vm198, %v4796
      %4829 = vst.msk [vmem:[%s197 + $0x30] sm:$0xff] %vm198, %v4797
      %4830 = vst.msk [vmem:[%s197 + $0x38] sm:$0xff] %vm198, %v4798
      %4831 = vst.msk [vmem:[%s197 + $0x40] sm:$0xff] %vm198, %v4799
      %4832 = vst.msk [vmem:[%s197 + $0x48] sm:$0xff] %vm198, %v4800
      %4833 = vst.msk [vmem:[%s197 + $0x50] sm:$0xff] %vm198, %v4801
      %4834 = vst.msk [vmem:[%s197 + $0x58] sm:$0xff] %vm198, %v4802
      %4835 = vst.msk [vmem:[%s197 + $0x60] sm:$0xff] %vm198, %v4803
      %4836 = vst.msk [vmem:[%s197 + $0x68] sm:$0xff] %vm198, %v4804
      %4837 = vst.msk [vmem:[%s197 + $0x70] sm:$0xff] %vm198, %v4805
      %4838 = vst.msk [vmem:[%s197 + $0x78] sm:$0xff] %vm198, %v4806
      %4839 = vst.msk [vmem:[%s197 + $0x80] sm:$0xff] %vm198, %v4807
      %4840 = vst.msk [vmem:[%s197 + $0x88] sm:$0xff] %vm198, %v4808
      %4841 = vst.msk [vmem:[%s197 + $0x90] sm:$0xff] %vm198, %v4809
      %4842 = vst.msk [vmem:[%s197 + $0x98] sm:$0xff] %vm198, %v4810
      %4843 = vst.msk [vmem:[%s197 + $0xa0] sm:$0xff] %vm198, %v4811
      %4844 = vst.msk [vmem:[%s197 + $0xa8] sm:$0xff] %vm198, %v4812
      %4845 = vst.msk [vmem:[%s197 + $0xb0] sm:$0xff] %vm198, %v4813
      %4846 = vst.msk [vmem:[%s197 + $0xb8] sm:$0xff] %vm198, %v4814
      %4847 = vst.msk [vmem:[%s197 + $0xc0] sm:$0xff] %vm198, %v4815
      %4848 = vst.msk [vmem:[%s197 + $0xc8] sm:$0xff] %vm198, %v4816
      %4849 = vst.msk [vmem:[%s197 + $0xd0] sm:$0xff] %vm198, %v4817
      %4850 = vst.msk [vmem:[%s197 + $0xd8] sm:$0xff] %vm198, %v4818
      %4851 = vst.msk [vmem:[%s197 + $0xe0] sm:$0xff] %vm198, %v4819
      %4852 = vst.msk [vmem:[%s197 + $0xe8] sm:$0xff] %vm198, %v4820
      %4853 = vst.msk [vmem:[%s197 + $0xf0] sm:$0xff] %vm198, %v4821
      %4854 = vst.msk [vmem:[%s197 + $0xf8] sm:$0xff] %vm198, %v4822
      %p4855 = scmp.lt.s32.totalorder %s15, 1
      %s4856 = scalar_select %p4855, %s15, 1
      %s4857 = smul.addr %s4856, 32
      %s4858 = smul.addr %s4857, 8
      %s4859 = scalar_lea.vmem %s4, %s4858
      // Predicated region
      $region37: #{c1_forward.3} parent=35 // pred_check
        %p4860 = pneg %p122
      $region38: #{c1_forward.3} parent=35 // pred_check_branch
        %4862 = sbr.rel (%p4860) target = $region40
      $region39: #{c1_forward.3} parent=35 // pred_region
        _
      $region40: #{c1_forward.3} parent=35 // pred_fallthru
        _
    $region36: #{c1_forward.3} parent=5 // pred_fallthru
      _
    %p4863 = scmp.le.s32.totalorder 2, %s10
    // Predicated region
    $region41: #{c1_forward.3} parent=5 // pred_check
      %p4864 = pneg %p4863
    $region42: #{c1_forward.3} parent=5 // pred_check_branch
      %4866 = sbr.rel (%p4864) target = $region44
    $region43: #{c1_forward.3} parent=5 // pred_region
      %s4867 = ssub.s32 %s10, 2
      // Predicated region
      $region45: #{c1_forward.3} parent=43 // pred_check
        %p4868 = pneg %p128
      $region46: #{c1_forward.3} parent=43 // pred_check_branch
        %4870 = sbr.rel (%p4868) target = $region48
      $region47: #{c1_forward.3} parent=43 // pred_region
        %p4871 = scmp.lt.s32.totalorder %s16, 1
        %s4872 = scalar_select %p4871, %s16, 1
        %s4873 = smul.addr %s4872, 32
        %s4874 = smul.addr %s4873, 8
        %s4875 = scalar_lea.vmem %s4, %s4874
      $region48: #{c1_forward.3} parent=43 // pred_fallthru
        _
    $region44: #{c1_forward.3} parent=5 // pred_fallthru
      _
  $region6: #{c1_forward.3} parent=0 // loop_footer
    %s14 = sadd.s32 1, %s10
  $region7: #{c1_forward.3} parent=0 // loop_footer_branch
    %9 = sbr.rel target = $region3
  $region8: #{c1_forward.3} parent=0 // loop_exit
    _

</llo_original>
